<compile_context>
chip_gen: v7x
topology: tpu7x:2x2x1
jax: 0.10.0
libtpu: 0.0.40
codegen_flags: <defaults>
</compile_context>

<pallas_src>
import functools

import jax
import jax.numpy as jnp
from jax import lax
from jax.experimental import pallas as pl
from jax.experimental.pallas import tpu as pltpu

EPS_LN = 1e-5            # LayerNorm eps (matches torch code)
EPS_NORM = 1e-12         # F.normalize default eps
INV_SQRT2 = 0.7071067811865476


def _gelu_exact(x):
    # F.gelu default is the exact (erf) form.
    return 0.5 * x * (1.0 + lax.erf(x * INV_SQRT2))


def _pick_tile(n, cap=1024):
    """Largest multiple-of-128 tile <= cap dividing n, else the full extent."""
    t = (min(cap, n) // 128) * 128
    while t >= 128:
        if n % t == 0:
            return t
        t -= 128
    # TODO(synk): ragged last-tile grid (pl.cdiv) for HW with no 128-multiple divisor.
    return n


def _pick_ctile(cc, cap=32):
    """Largest multiple-of-8 channel tile <= cap dividing cc, else full cc."""
    t = (min(cap, cc) // 8) * 8
    while t >= 8:
        if cc % t == 0:
            return t
        t -= 8
    return cc


def _params(semantics, vmem_est=None):
    kw = {"dimension_semantics": semantics}
    if vmem_est is not None and vmem_est > 16 * 1024 * 1024:
        kw["vmem_limit_bytes"] = min(int(vmem_est * 1.5), 100 * 1024 * 1024)
    return pltpu.CompilerParams(**kw)


# ----------------------------- Pallas kernels ------------------------------

def ln_conv1x1_kernel(x_ref, w_ref, b_ref, o_ref):
    """Fused WithBias-LayerNorm (over channels) + 1x1 conv.

    The LN affine (weight/bias) is pre-folded into w_ref/b_ref in the wrapper,
    so the kernel only normalizes.  Block: x (1, C, tn) f32 -> out (1, Cout, tn)
    bf16, pixels on lanes.
    """
    x = x_ref[0]                                          # (C, tn) f32
    mu = jnp.mean(x, axis=0, keepdims=True)
    xc = x - mu
    var = jnp.mean(xc * xc, axis=0, keepdims=True)        # biased variance
    y = (xc * lax.rsqrt(var + EPS_LN)).astype(jnp.bfloat16)
    o_ref[0] = (jnp.dot(w_ref[...], y, preferred_element_type=jnp.float32)
                + b_ref[...]).astype(o_ref.dtype)


def dwconv3x3_kernel(x_ref, w_ref, b_ref, o_ref, *, width):
    """Depthwise 3x3 conv, stride 1, zero pad 1; halo handled in-kernel.

    Block: (1, Ct, H*W) flattened row-major.  Shifts are pltpu.roll on the
    lane axis (XLU); zero padding is a single edge mask per direction.
    Input/output bf16, arithmetic in f32 (portable to v5e).
    """
    x = x_ref[0].astype(jnp.float32)                      # (Ct, HW)
    ct, hw = x.shape
    pos = lax.broadcasted_iota(jnp.int32, (1, hw), 1)
    col = pos % width

    # dx = -1 / +1 within each image row (zero at row edges).
    xl = jnp.where(col != 0, pltpu.roll(x, 1, 1), 0.0)
    xr = jnp.where(col != width - 1, pltpu.roll(x, hw - 1, 1), 0.0)

    def wcol(k):                                          # per-channel tap weight
        return w_ref[:, k:k + 1]                          # (Ct, 1)

    def rowtaps(ky):                                      # dx-mixed taps of one kernel row
        return xl * wcol(3 * ky) + x * wcol(3 * ky + 1) + xr * wcol(3 * ky + 2)

    mid = rowtaps(1)                                      # source row y
    # source row y-1 -> shift forward by W, zero first image row
    top_s = jnp.where(pos >= width, pltpu.roll(rowtaps(0), width, 1), 0.0)
    # source row y+1 -> shift back by W, zero last image row
    bot_s = jnp.where(pos < hw - width, pltpu.roll(rowtaps(2), hw - width, 1), 0.0)

    o_ref[0] = (mid + top_s + bot_s + b_ref[...]).astype(o_ref.dtype)


def cmsa_proj_kernel(q_ref, k_ref, v_ref, wp_ref, bp_ref, res_ref, temp_ref,
                     o_ref, acc_ref):
    """Channel attention for one (batch, head) with incremental output proj.

    Grid: (B, num_heads); heads are a reduction axis.  Each head's output is
    immediately projected (acc += W_h @ out_h, f32 accumulation) so the MXU
    work overlaps the next head's DMA; bias + residual are added once at the
    last head (a single lane-dense f32 store of the new residual stream).
    """
    h = pl.program_id(1)
    nh = pl.num_programs(1)

    @pl.when(h == 0)
    def _():
        acc_ref[...] = jnp.zeros_like(acc_ref)

    q = q_ref[0]                                          # (ch, HW) bf16
    k = k_ref[0]
    v = v_ref[0]
    qf = q.astype(jnp.float32)
    kf = k.astype(jnp.float32)

    # F.normalize(dim=-1): x / max(||x||, eps) == x * rsqrt(max(||x||^2, eps^2))
    q_scale = lax.rsqrt(jnp.maximum(jnp.sum(qf * qf, -1, keepdims=True),
                                    EPS_NORM * EPS_NORM))
    k_scale = lax.rsqrt(jnp.maximum(jnp.sum(kf * kf, -1, keepdims=True),
                                    EPS_NORM * EPS_NORM))
    qn = (qf * q_scale).astype(jnp.bfloat16)
    kn = (kf * k_scale).astype(jnp.bfloat16)

    # (ch, ch) gram over the spatial axis; softmax in f32 (tiny matrix).
    attn = lax.dot_general(qn, kn, (((1,), (1,)), ((), ())),
                           preferred_element_type=jnp.float32)
    attn = attn * temp_ref[h]
    attn = attn - jnp.max(attn, -1, keepdims=True)
    attn = jnp.exp(attn)
    attn = attn / jnp.sum(attn, -1, keepdims=True)

    out_h = jnp.dot(attn.astype(jnp.bfloat16), v,
                    preferred_element_type=jnp.float32)   # (ch, HW) f32

    # Incremental projection: acc += W_proj[:, head slice] @ out_h.
    acc_ref[...] += jnp.dot(wp_ref[0], out_h.astype(jnp.bfloat16),
                            preferred_element_type=jnp.float32)

    @pl.when(h == nh - 1)
    def _():
        o_ref[0] = acc_ref[...] + bp_ref[...] + res_ref[0]


def gated_ffn_out_kernel(y_ref, w_ref, b_ref, res_ref, o_ref):
    """Fused channel split + GELU gate + 1x1 output conv + residual add."""
    y = y_ref[0].astype(jnp.float32)                      # (2*hidden, tn)
    hd = y.shape[0] // 2
    g = (_gelu_exact(y[:hd]) * y[hd:]).astype(jnp.bfloat16)
    o_ref[0] = (jnp.dot(w_ref[...], g, preferred_element_type=jnp.float32)
                + b_ref[...] + res_ref[0])


# --------------------------- pallas_call wrappers ---------------------------

def ln_conv1x1(x, ln_w, ln_b, conv_w, conv_b, tile_cap=1024):
    """x: (B, C, HW) f32 -> (B, Cout, HW) bf16; LN affine folded into the conv."""
    b, c, hw = x.shape
    cout = conv_w.shape[0]
    tn = _pick_tile(hw, tile_cap)
    w2 = conv_w.reshape(cout, c)
    w_bf = (w2 * ln_w.reshape(1, c)).astype(jnp.bfloat16)          # fold LN scale
    bias = conv_b.reshape(cout, 1) + w2 @ ln_b.reshape(c, 1)       # fold LN bias
    return pl.pallas_call(
        ln_conv1x1_kernel,
        out_shape=jax.ShapeDtypeStruct((b, cout, hw), jnp.bfloat16),
        grid=(b, hw // tn),
        in_specs=[pl.BlockSpec((1, c, tn), lambda i, j: (i, 0, j)),
                  pl.BlockSpec((cout, c), lambda i, j: (0, 0)),
                  pl.BlockSpec((cout, 1), lambda i, j: (0, 0))],
        out_specs=pl.BlockSpec((1, cout, tn), lambda i, j: (i, 0, j)),
        compiler_params=_params(("parallel", "parallel")),
    )(x, w_bf, bias)


def dwconv3x3(x, w_dw, b_dw, width, c_cap=32):
    """x: (B, Cc, HW) bf16 -> (B, Cc, HW) bf16 depthwise 3x3, channel-tiled."""
    b, cc, hw = x.shape
    ct = _pick_ctile(cc, c_cap)
    w2 = w_dw.reshape(cc, 9)                 # (Cc,1,3,3) -> (Cc, ky*3+kx)
    bias = b_dw.reshape(cc, 1)
    kernel = functools.partial(dwconv3x3_kernel, width=width)
    vmem_est = 4 * ct * hw * 2 + 4 * ct * 10 * 4 + 4096   # in/out double-buffered
    return pl.pallas_call(
        kernel,
        out_shape=jax.ShapeDtypeStruct((b, cc, hw), jnp.bfloat16),
        grid=(b, cc // ct),
        in_specs=[pl.BlockSpec((1, ct, hw), lambda i, j: (i, j, 0)),
                  pl.BlockSpec((ct, 9), lambda i, j: (j, 0)),
                  pl.BlockSpec((ct, 1), lambda i, j: (j, 0))],
        out_specs=pl.BlockSpec((1, ct, hw), lambda i, j: (i, j, 0)),
        compiler_params=_params(("parallel", "parallel"), vmem_est),
    )(x, w2, bias)


def cmsa_proj_residual(qkv, w_proj, b_proj, temperature, res, num_heads):
    """qkv: (B, 3C, HW) bf16; res: (B, C, HW) f32 -> res + proj(channel_attn(qkv))."""
    b, c3, hw = qkv.shape
    c = c3 // 3
    assert c % num_heads == 0
    ch = c // num_heads
    assert ch % 8 == 0, "per-head channels must be a multiple of 8 (sublane tiling)"
    # Per-head projection weight slabs: (num_heads, C, ch), bf16.
    wp = (w_proj.reshape(c, c).reshape(c, num_heads, ch)
          .transpose(1, 0, 2).astype(jnp.bfloat16))
    bias = b_proj.reshape(c, 1)
    temp = temperature.reshape(num_heads)
    vmem_est = (3 * 2 * ch * hw * 2          # q/k/v bf16, double-buffered
                + 2 * 2 * c * hw * 4         # residual + output f32, double-buffered
                + c * hw * 4                 # f32 accumulator scratch
                + num_heads * c * ch * 2 + c * 4 + 4096)
    return pl.pallas_call(
        cmsa_proj_kernel,
        out_shape=jax.ShapeDtypeStruct((b, c, hw), jnp.float32),
        grid=(b, num_heads),
        in_specs=[
            pl.BlockSpec((1, ch, hw), lambda i, h: (i, h, 0)),                  # q head
            pl.BlockSpec((1, ch, hw), lambda i, h: (i, num_heads + h, 0)),      # k head
            pl.BlockSpec((1, ch, hw), lambda i, h: (i, 2 * num_heads + h, 0)),  # v head
            pl.BlockSpec((1, c, ch), lambda i, h: (h, 0, 0)),                   # proj slab
            pl.BlockSpec((c, 1), lambda i, h: (0, 0)),                          # proj bias
            pl.BlockSpec((1, c, hw), lambda i, h: (i, 0, 0)),                   # residual
            pl.BlockSpec(memory_space=pltpu.MemorySpace.SMEM),                  # temperature
        ],
        out_specs=pl.BlockSpec((1, c, hw), lambda i, h: (i, 0, 0)),
        scratch_shapes=[pltpu.VMEM((c, hw), jnp.float32)],
        compiler_params=_params(("parallel", "arbitrary"), vmem_est),
    )(qkv, qkv, qkv, wp, bias, res, temp)


def gated_ffn_out(y, w_out, b_out, res, tile_cap=1024):
    """y: (B, 2*hidden, HW) bf16; res: (B, C, HW) f32 -> res + pout(gelu(y1)*y2)."""
    b, c2h, hw = y.shape
    hd = c2h // 2
    c = res.shape[1]
    tn = _pick_tile(hw, tile_cap)
    w_bf = w_out.reshape(c, hd).astype(jnp.bfloat16)
    bias = b_out.reshape(c, 1)
    return pl.pallas_call(
        gated_ffn_out_kernel,
        out_shape=jax.ShapeDtypeStruct((b, c, hw), jnp.float32),
        grid=(b, hw // tn),
        in_specs=[pl.BlockSpec((1, c2h, tn), lambda i, j: (i, 0, j)),
                  pl.BlockSpec((c, hd), lambda i, j: (0, 0)),
                  pl.BlockSpec((c, 1), lambda i, j: (0, 0)),
                  pl.BlockSpec((1, c, tn), lambda i, j: (i, 0, j))],
        out_specs=pl.BlockSpec((1, c, tn), lambda i, j: (i, 0, j)),
        compiler_params=_params(("parallel", "parallel")),
    )(y, w_bf, bias, res)


# ------------------------------ TransformerBlock ----------------------------

def transformer_block(x_nchw, p, num_heads):
    b, c, h, w = x_nchw.shape
    hw = h * w
    x = x_nchw.reshape(b, c, hw).astype(jnp.float32)     # free reshape (NCHW native)

    # ---- C-MSA branch: x = x + proj(attn(dwconv(qkv(norm1(x))))) ----
    qkv = ln_conv1x1(x, p['norm1_w'], p['norm1_b'], p['qkv_w'], p['qkv_b'])
    qkv = dwconv3x3(qkv, p['qkv_dw_w'], p['qkv_dw_b'], width=w)
    x = cmsa_proj_residual(qkv, p['proj_w'], p['proj_b'], p['temperature'],
                           x, num_heads)

    # ---- FFN branch: x = x + pout(gelu(y1)*y2), y = dwconv(pin(norm2(x))) ----
    y = ln_conv1x1(x, p['norm2_w'], p['norm2_b'], p['pin_w'], p['pin_b'])
    y = dwconv3x3(y, p['ffn_dw_w'], p['ffn_dw_b'], width=w)
    x = gated_ffn_out(y, p['pout_w'], p['pout_b'], x)

    return x.reshape(b, c, h, w)


# -------------------------- pure-JAX reference (check) ----------------------

def ref_transformer_block(x_nchw, p, num_heads):
    x = jnp.transpose(x_nchw, (0, 2, 3, 1)).astype(jnp.float32)
    b, h, w, c = x.shape
    hw = h * w
    ch = c // num_heads

    def ln(t, w_, b_):
        mu = jnp.mean(t, -1, keepdims=True)
        var = jnp.mean((t - mu) ** 2, -1, keepdims=True)
        return (t - mu) / jnp.sqrt(var + EPS_LN) * w_ + b_

    def c1(t, w_, b_):
        cout, cin = w_.shape[0], w_.shape[1]
        return jnp.einsum('bhwi,oi->bhwo', t, w_.reshape(cout, cin)) + b_

    def dw(t, w_, b_):
        cc = t.shape[-1]
        wk = jnp.transpose(w_.reshape(cc, 3, 3), (1, 2, 0))
        tp = jnp.pad(t, ((0, 0), (1, 1), (1, 1), (0, 0)))
        H, W = t.shape[1], t.shape[2]
        acc = jnp.zeros_like(t)
        for dy in range(3):
            for dx in range(3):
                acc = acc + tp[:, dy:dy + H, dx:dx + W, :] * wk[dy, dx]
        return acc + b_

    y = ln(x, p['norm1_w'], p['norm1_b'])
    qkv = dw(c1(y, p['qkv_w'], p['qkv_b']), p['qkv_dw_w'], p['qkv_dw_b'])
    q0, k0, v0 = jnp.split(qkv, 3, axis=-1)

    def heads(t):
        return jnp.transpose(t.reshape(b, hw, num_heads, ch), (0, 2, 3, 1))

    q, k, v = heads(q0), heads(k0), heads(v0)
    qn = q / jnp.maximum(jnp.sqrt(jnp.sum(q * q, -1, keepdims=True)), EPS_NORM)
    kn = k / jnp.maximum(jnp.sqrt(jnp.sum(k * k, -1, keepdims=True)), EPS_NORM)
    attn = jnp.einsum('bhcn,bhdn->bhcd', qn, kn) * p['temperature'][None]
    attn = jax.nn.softmax(attn, axis=-1)
    out = jnp.einsum('bhcd,bhdn->bhcn', attn, v)
    out = jnp.transpose(out, (0, 3, 1, 2)).reshape(b, h, w, c)
    x = x + c1(out, p['proj_w'], p['proj_b'])

    y = ln(x, p['norm2_w'], p['norm2_b'])
    y = dw(c1(y, p['pin_w'], p['pin_b']), p['ffn_dw_w'], p['ffn_dw_b'])
    y1, y2 = jnp.split(y, 2, axis=-1)
    x = x + c1(_gelu_exact(y1) * y2, p['pout_w'], p['pout_b'])
    return jnp.transpose(x, (0, 3, 1, 2))


# --------------------------------- params -----------------------------------

def init_params(key, dim, num_heads, ffn_expansion_factor):
    hidden = int(dim * ffn_expansion_factor)
    ks = jax.random.split(key, 12)

    def conv_w(k, cout, cin, kh=1, kw=1):
        return 0.1 * jax.random.normal(k, (cout, cin, kh, kw), jnp.float32)

    return {
        'norm1_w': jnp.ones((dim,), jnp.float32),
        'norm1_b': jnp.zeros((dim,), jnp.float32),
        'norm2_w': jnp.ones((dim,), jnp.float32),
        'norm2_b': jnp.zeros((dim,), jnp.float32),
        'temperature': jnp.ones((num_heads, 1, 1), jnp.float32),
        'qkv_w': conv_w(ks[0], 3 * dim, dim),
        'qkv_b': 0.1 * jax.random.normal(ks[1], (3 * dim,), jnp.float32),
        'qkv_dw_w': conv_w(ks[2], 3 * dim, 1, 3, 3),
        'qkv_dw_b': 0.1 * jax.random.normal(ks[3], (3 * dim,), jnp.float32),
        'proj_w': conv_w(ks[4], dim, dim),
        'proj_b': 0.1 * jax.random.normal(ks[5], (dim,), jnp.float32),
        'pin_w': conv_w(ks[6], 2 * hidden, dim),
        'pin_b': 0.1 * jax.random.normal(ks[7], (2 * hidden,), jnp.float32),
        'ffn_dw_w': conv_w(ks[8], 2 * hidden, 1, 3, 3),
        'ffn_dw_b': 0.1 * jax.random.normal(ks[9], (2 * hidden,), jnp.float32),
        'pout_w': conv_w(ks[10], dim, hidden),
        'pout_b': 0.1 * jax.random.normal(ks[11], (dim,), jnp.float32),
    }


if __name__ == "__main__":
    dim, num_heads, ffn_factor = 16, 2, 2.0   # num_heads_v unused (as in torch code)
    b, h, w = 2, 16, 16
    key = jax.random.PRNGKey(0)
    kx, kp = jax.random.split(key)
    x = jax.random.normal(kx, (b, dim, h, w), jnp.float32)    # NCHW like PyTorch
    params = init_params(kp, dim, num_heads, ffn_factor)

    fwd = jax.jit(lambda xx: transformer_block(xx, params, num_heads))
    out = jax.block_until_ready(fwd(x))

    ref = jax.block_until_ready(ref_transformer_block(x, params, num_heads))
    assert out.shape == x.shape
    max_err = float(jnp.max(jnp.abs(out - ref)))
    # bf16 intermediates + bf16 MXU operands (f32 accumulation) vs. pure-f32 ref.
    assert max_err < 2e-2, f"max abs error {max_err}"
    print("KERNEL_OK")
</pallas_src>

<mosaic_0001>
module attributes {stable_mosaic.version = 11 : i64} {
  func.func @ln_conv1x1_kernel(%arg0: i32, %arg1: i32, %arg2: memref<1x16x256xf32, #tpu.memory_space<vmem>>, %arg3: memref<48x16xbf16, #tpu.memory_space<vmem>>, %arg4: memref<48x1xf32, #tpu.memory_space<vmem>>, %arg5: memref<1x48x256xbf16, #tpu.memory_space<vmem>>) attributes {dimension_semantics = [#tpu.dimension_semantics<parallel>, #tpu.dimension_semantics<parallel>], iteration_bounds = array<i64: 2, 1>, scalar_prefetch = 0 : i64, scratch_operands = 0 : i64, tpu.core_type = #tpu.core_type<tc>, window_params = [{transform_indices = @transform_0, window_bounds = array<i64: 1, 16, 256>}, {pipeline_mode = #tpu.pipeline_mode<synchronous>, transform_indices = @transform_1, window_bounds = array<i64: 48, 16>}, {pipeline_mode = #tpu.pipeline_mode<synchronous>, transform_indices = @transform_2, window_bounds = array<i64: 48, 1>}, {transform_indices = @transform_3, window_bounds = array<i64: 1, 48, 256>}]} {
    %c0 = arith.constant 0 : index
    %c0_0 = arith.constant 0 : index
    %c0_1 = arith.constant 0 : index
    %0 = vector.load %arg2[%c0, %c0_0, %c0_1] : memref<1x16x256xf32, #tpu.memory_space<vmem>>, vector<1x16x256xf32>
    %1 = vector.shape_cast %0 : vector<1x16x256xf32> to vector<16x256xf32>
    %cst = arith.constant dense<0.000000e+00> : vector<256xf32>
    %2 = vector.multi_reduction <add>, %1, %cst [0] : vector<16x256xf32> to vector<256xf32>
    %3 = vector.shape_cast %2 : vector<256xf32> to vector<1x256xf32>
    %cst_2 = arith.constant 1.600000e+01 : f32
    %4 = vector.broadcast %cst_2 : f32 to vector<1x256xf32>
    %5 = arith.divf %3, %4 : vector<1x256xf32>
    %6 = vector.broadcast %5 : vector<1x256xf32> to vector<16x256xf32>
    %7 = arith.subf %1, %6 : vector<16x256xf32>
    %8 = arith.mulf %7, %7 : vector<16x256xf32>
    %cst_3 = arith.constant dense<0.000000e+00> : vector<256xf32>
    %9 = vector.multi_reduction <add>, %8, %cst_3 [0] : vector<16x256xf32> to vector<256xf32>
    %10 = vector.shape_cast %9 : vector<256xf32> to vector<1x256xf32>
    %cst_4 = arith.constant 1.600000e+01 : f32
    %11 = vector.broadcast %cst_4 : f32 to vector<1x256xf32>
    %12 = arith.divf %10, %11 : vector<1x256xf32>
    %cst_5 = arith.constant 9.99999974E-6 : f32
    %13 = vector.broadcast %cst_5 : f32 to vector<1x256xf32>
    %14 = arith.addf %12, %13 : vector<1x256xf32>
    %15 = math.rsqrt %14 : vector<1x256xf32>
    %16 = vector.broadcast %15 : vector<1x256xf32> to vector<16x256xf32>
    %17 = arith.mulf %7, %16 : vector<16x256xf32>
    %18 = arith.truncf %17 : vector<16x256xf32> to vector<16x256xbf16>
    %c0_6 = arith.constant 0 : index
    %c0_7 = arith.constant 0 : index
    %19 = vector.load %arg3[%c0_6, %c0_7] : memref<48x16xbf16, #tpu.memory_space<vmem>>, vector<48x16xbf16>
    %cst_8 = arith.constant dense<0.000000e+00> : vector<48x256xf32>
    %20 = tpu.matmul %19, %18, %cst_8 {dimension_numbers = #tpu.dot_dimension_numbers<[1], [0], [0], [1], [0, 0, 1, 1], [], []>} : vector<48x16xbf16>, vector<16x256xbf16>, vector<48x256xf32> -> vector<48x256xf32>
    %c0_9 = arith.constant 0 : index
    %c0_10 = arith.constant 0 : index
    %21 = vector.load %arg4[%c0_9, %c0_10] : memref<48x1xf32, #tpu.memory_space<vmem>>, vector<48x1xf32>
    %22 = vector.broadcast %21 : vector<48x1xf32> to vector<48x256xf32>
    %23 = arith.addf %20, %22 : vector<48x256xf32>
    %24 = arith.truncf %23 : vector<48x256xf32> to vector<48x256xbf16>
    %c0_11 = arith.constant 0 : index
    %c0_12 = arith.constant 0 : index
    %c0_13 = arith.constant 0 : index
    %25 = vector.load %arg5[%c0_11, %c0_12, %c0_13] : memref<1x48x256xbf16, #tpu.memory_space<vmem>>, vector<1x48x256xbf16>
    %26 = vector.shape_cast %25 : vector<1x48x256xbf16> to vector<48x256xbf16>
    %27 = vector.shape_cast %24 : vector<48x256xbf16> to vector<1x48x256xbf16>
    tpu.vector_store %arg5[%c0_11, %c0_12, %c0_13], %27 {strides = array<i32>} : memref<1x48x256xbf16, #tpu.memory_space<vmem>>, vector<1x48x256xbf16>,
    return
  }
  func.func @transform_0(%arg0: i32, %arg1: i32) -> (i32, i32, i32) {
    %c0_i32 = arith.constant 0 : i32
    %c0_i32_0 = arith.constant 0 : i32
    return %arg0, %c0_i32, %arg1 : i32, i32, i32
  }
  func.func @transform_1(%arg0: i32, %arg1: i32) -> (i32, i32) {
    %c0_i32 = arith.constant 0 : i32
    %c0_i32_0 = arith.constant 0 : i32
    %c0_i32_1 = arith.constant 0 : i32
    return %c0_i32, %c0_i32_0 : i32, i32
  }
  func.func @transform_2(%arg0: i32, %arg1: i32) -> (i32, i32) {
    %c0_i32 = arith.constant 0 : i32
    %c0_i32_0 = arith.constant 0 : i32
    %c0_i32_1 = arith.constant 0 : i32
    return %c0_i32, %c0_i32_0 : i32, i32
  }
  func.func @transform_3(%arg0: i32, %arg1: i32) -> (i32, i32, i32) {
    %c0_i32 = arith.constant 0 : i32
    %c0_i32_0 = arith.constant 0 : i32
    return %arg0, %c0_i32, %arg1 : i32, i32, i32
  }
}

module attributes {stable_mosaic.version = 11 : i64} {
  func.func @dwconv3x3_kernel(%arg0: i32, %arg1: i32, %arg2: memref<1x24x256xbf16, #tpu.memory_space<vmem>>, %arg3: memref<24x9xf32, #tpu.memory_space<vmem>>, %arg4: memref<24x1xf32, #tpu.memory_space<vmem>>, %arg5: memref<1x24x256xbf16, #tpu.memory_space<vmem>>) attributes {dimension_semantics = [#tpu.dimension_semantics<parallel>, #tpu.dimension_semantics<parallel>], iteration_bounds = array<i64: 2, 2>, scalar_prefetch = 0 : i64, scratch_operands = 0 : i64, tpu.core_type = #tpu.core_type<tc>, window_params = [{transform_indices = @transform_0, window_bounds = array<i64: 1, 24, 256>}, {transform_indices = @transform_1, window_bounds = array<i64: 24, 9>}, {transform_indices = @transform_2, window_bounds = array<i64: 24, 1>}, {transform_indices = @transform_3, window_bounds = array<i64: 1, 24, 256>}]} {
    %c0 = arith.constant 0 : index
    %c0_0 = arith.constant 0 : index
    %c0_1 = arith.constant 0 : index
    %0 = vector.load %arg2[%c0, %c0_0, %c0_1] : memref<1x24x256xbf16, #tpu.memory_space<vmem>>, vector<1x24x256xbf16>
    %1 = vector.shape_cast %0 : vector<1x24x256xbf16> to vector<24x256xbf16>
    %2 = arith.extf %1 : vector<24x256xbf16> to vector<24x256xf32>
    %3 = tpu.iota {dimensions = array<i32: 1>} : vector<1x256xi32>
    %c16_i32 = arith.constant 16 : i32
    %c0_i32 = arith.constant 0 : i32
    %4 = arith.cmpi eq, %c16_i32, %c0_i32 : i32
    %c1_i32 = arith.constant 1 : i32
    %5 = arith.select %4, %c1_i32, %c16_i32 : i32
    %6 = vector.broadcast %5 : i32 to vector<1x256xi32>
    %7 = arith.remsi %3, %6 : vector<1x256xi32>
    %c0_i32_2 = arith.constant 0 : i32
    %8 = vector.broadcast %c0_i32_2 : i32 to vector<1x256xi32>
    %9 = arith.cmpi ne, %7, %8 : vector<1x256xi32>
    %c0_i32_3 = arith.constant 0 : i32
    %10 = vector.broadcast %c0_i32_3 : i32 to vector<1x256xi32>
    %11 = arith.cmpi slt, %7, %10 : vector<1x256xi32>
    %c0_i32_4 = arith.constant 0 : i32
    %12 = arith.cmpi slt, %5, %c0_i32_4 : i32
    %13 = vector.broadcast %12 : i1 to vector<1x256xi1>
    %14 = vector.broadcast %13 : vector<1x256xi1> to vector<1x256xi1>
    %15 = arith.xori %11, %14 : vector<1x256xi1>
    %16 = arith.andi %15, %9 : vector<1x256xi1>
    %17 = vector.broadcast %5 : i32 to vector<1x256xi32>
    %18 = arith.addi %7, %17 : vector<1x256xi32>
    %19 = arith.select %16, %18, %7 : vector<1x256xi1>, vector<1x256xi32>
    %c0_i32_5 = arith.constant 0 : i32
    %20 = vector.broadcast %c0_i32_5 : i32 to vector<1x256xi32>
    %21 = arith.cmpi ne, %19, %20 : vector<1x256xi32>
    %c1_i32_6 = arith.constant 1 : i32
    %22 = tpu.dynamic_rotate %2 by %c1_i32_6 dim 1 : vector<24x256xf32>, i32 -> vector<24x256xf32>
    %cst = arith.constant 0.000000e+00 : f32
    %23 = vector.shape_cast %21 : vector<1x256xi1> to vector<1x256xi1>
    %24 = vector.broadcast %23 : vector<1x256xi1> to vector<24x256xi1>
    %25 = vector.broadcast %cst : f32 to vector<24x256xf32>
    %26 = arith.select %24, %22, %25 : vector<24x256xi1>, vector<24x256xf32>
    %c15_i32 = arith.constant 15 : i32
    %27 = vector.broadcast %c15_i32 : i32 to vector<1x256xi32>
    %28 = arith.cmpi ne, %19, %27 : vector<1x256xi32>
    %c255_i32 = arith.constant 255 : i32
    %29 = tpu.dynamic_rotate %2 by %c255_i32 dim 1 : vector<24x256xf32>, i32 -> vector<24x256xf32>
    %cst_7 = arith.constant 0.000000e+00 : f32
    %30 = vector.shape_cast %28 : vector<1x256xi1> to vector<1x256xi1>
    %31 = vector.broadcast %30 : vector<1x256xi1> to vector<24x256xi1>
    %32 = vector.broadcast %cst_7 : f32 to vector<24x256xf32>
    %33 = arith.select %31, %29, %32 : vector<24x256xi1>, vector<24x256xf32>
    %c0_8 = arith.constant 0 : index
    %c3 = arith.constant 3 : index
    %34 = vector.load %arg3[%c0_8, %c3] : memref<24x9xf32, #tpu.memory_space<vmem>>, vector<24x1xf32>
    %35 = vector.broadcast %34 : vector<24x1xf32> to vector<24x256xf32>
    %36 = arith.mulf %26, %35 : vector<24x256xf32>
    %c0_9 = arith.constant 0 : index
    %c4 = arith.constant 4 : index
    %37 = vector.load %arg3[%c0_9, %c4] : memref<24x9xf32, #tpu.memory_space<vmem>>, vector<24x1xf32>
    %38 = vector.broadcast %37 : vector<24x1xf32> to vector<24x256xf32>
    %39 = arith.mulf %2, %38 : vector<24x256xf32>
    %40 = arith.addf %36, %39 : vector<24x256xf32>
    %c0_10 = arith.constant 0 : index
    %c5 = arith.constant 5 : index
    %41 = vector.load %arg3[%c0_10, %c5] : memref<24x9xf32, #tpu.memory_space<vmem>>, vector<24x1xf32>
    %42 = vector.broadcast %41 : vector<24x1xf32> to vector<24x256xf32>
    %43 = arith.mulf %33, %42 : vector<24x256xf32>
    %44 = arith.addf %40, %43 : vector<24x256xf32>
    %c16_i32_11 = arith.constant 16 : i32
    %45 = vector.broadcast %c16_i32_11 : i32 to vector<1x256xi32>
    %46 = arith.cmpi sge, %3, %45 : vector<1x256xi32>
    %c0_12 = arith.constant 0 : index
    %c0_13 = arith.constant 0 : index
    %47 = vector.load %arg3[%c0_12, %c0_13] : memref<24x9xf32, #tpu.memory_space<vmem>>, vector<24x1xf32>
    %48 = vector.broadcast %47 : vector<24x1xf32> to vector<24x256xf32>
    %49 = arith.mulf %26, %48 : vector<24x256xf32>
    %c0_14 = arith.constant 0 : index
    %c1 = arith.constant 1 : index
    %50 = vector.load %arg3[%c0_14, %c1] : memref<24x9xf32, #tpu.memory_space<vmem>>, vector<24x1xf32>
    %51 = vector.broadcast %50 : vector<24x1xf32> to vector<24x256xf32>
    %52 = arith.mulf %2, %51 : vector<24x256xf32>
    %53 = arith.addf %49, %52 : vector<24x256xf32>
    %c0_15 = arith.constant 0 : index
    %c2 = arith.constant 2 : index
    %54 = vector.load %arg3[%c0_15, %c2] : memref<24x9xf32, #tpu.memory_space<vmem>>, vector<24x1xf32>
    %55 = vector.broadcast %54 : vector<24x1xf32> to vector<24x256xf32>
    %56 = arith.mulf %33, %55 : vector<24x256xf32>
    %57 = arith.addf %53, %56 : vector<24x256xf32>
    %c16_i32_16 = arith.constant 16 : i32
    %58 = tpu.dynamic_rotate %57 by %c16_i32_16 dim 1 : vector<24x256xf32>, i32 -> vector<24x256xf32>
    %cst_17 = arith.constant 0.000000e+00 : f32
    %59 = vector.shape_cast %46 : vector<1x256xi1> to vector<1x256xi1>
    %60 = vector.broadcast %59 : vector<1x256xi1> to vector<24x256xi1>
    %61 = vector.broadcast %cst_17 : f32 to vector<24x256xf32>
    %62 = arith.select %60, %58, %61 : vector<24x256xi1>, vector<24x256xf32>
    %c240_i32 = arith.constant 240 : i32
    %63 = vector.broadcast %c240_i32 : i32 to vector<1x256xi32>
    %64 = arith.cmpi slt, %3, %63 : vector<1x256xi32>
    %c0_18 = arith.constant 0 : index
    %c6 = arith.constant 6 : index
    %65 = vector.load %arg3[%c0_18, %c6] : memref<24x9xf32, #tpu.memory_space<vmem>>, vector<24x1xf32>
    %66 = vector.broadcast %65 : vector<24x1xf32> to vector<24x256xf32>
    %67 = arith.mulf %26, %66 : vector<24x256xf32>
    %c0_19 = arith.constant 0 : index
    %c7 = arith.constant 7 : index
    %68 = vector.load %arg3[%c0_19, %c7] : memref<24x9xf32, #tpu.memory_space<vmem>>, vector<24x1xf32>
    %69 = vector.broadcast %68 : vector<24x1xf32> to vector<24x256xf32>
    %70 = arith.mulf %2, %69 : vector<24x256xf32>
    %71 = arith.addf %67, %70 : vector<24x256xf32>
    %c0_20 = arith.constant 0 : index
    %c8 = arith.constant 8 : index
    %72 = vector.load %arg3[%c0_20, %c8] : memref<24x9xf32, #tpu.memory_space<vmem>>, vector<24x1xf32>
    %73 = vector.broadcast %72 : vector<24x1xf32> to vector<24x256xf32>
    %74 = arith.mulf %33, %73 : vector<24x256xf32>
    %75 = arith.addf %71, %74 : vector<24x256xf32>
    %c240_i32_21 = arith.constant 240 : i32
    %76 = tpu.dynamic_rotate %75 by %c240_i32_21 dim 1 : vector<24x256xf32>, i32 -> vector<24x256xf32>
    %cst_22 = arith.constant 0.000000e+00 : f32
    %77 = vector.shape_cast %64 : vector<1x256xi1> to vector<1x256xi1>
    %78 = vector.broadcast %77 : vector<1x256xi1> to vector<24x256xi1>
    %79 = vector.broadcast %cst_22 : f32 to vector<24x256xf32>
    %80 = arith.select %78, %76, %79 : vector<24x256xi1>, vector<24x256xf32>
    %81 = arith.addf %44, %62 : vector<24x256xf32>
    %82 = arith.addf %81, %80 : vector<24x256xf32>
    %c0_23 = arith.constant 0 : index
    %c0_24 = arith.constant 0 : index
    %83 = vector.load %arg4[%c0_23, %c0_24] : memref<24x1xf32, #tpu.memory_space<vmem>>, vector<24x1xf32>
    %84 = vector.broadcast %83 : vector<24x1xf32> to vector<24x256xf32>
    %85 = arith.addf %82, %84 : vector<24x256xf32>
    %86 = arith.truncf %85 : vector<24x256xf32> to vector<24x256xbf16>
    %c0_25 = arith.constant 0 : index
    %c0_26 = arith.constant 0 : index
    %c0_27 = arith.constant 0 : index
    %87 = vector.load %arg5[%c0_25, %c0_26, %c0_27] : memref<1x24x256xbf16, #tpu.memory_space<vmem>>, vector<1x24x256xbf16>
    %88 = vector.shape_cast %87 : vector<1x24x256xbf16> to vector<24x256xbf16>
    %89 = vector.shape_cast %86 : vector<24x256xbf16> to vector<1x24x256xbf16>
    tpu.vector_store %arg5[%c0_25, %c0_26, %c0_27], %89 {strides = array<i32>} : memref<1x24x256xbf16, #tpu.memory_space<vmem>>, vector<1x24x256xbf16>,
    return
  }
  func.func @transform_0(%arg0: i32, %arg1: i32) -> (i32, i32, i32) {
    %c0_i32 = arith.constant 0 : i32
    %c0_i32_0 = arith.constant 0 : i32
    return %arg0, %arg1, %c0_i32 : i32, i32, i32
  }
  func.func @transform_1(%arg0: i32, %arg1: i32) -> (i32, i32) {
    %c0_i32 = arith.constant 0 : i32
    %c0_i32_0 = arith.constant 0 : i32
    return %arg1, %c0_i32 : i32, i32
  }
  func.func @transform_2(%arg0: i32, %arg1: i32) -> (i32, i32) {
    %c0_i32 = arith.constant 0 : i32
    %c0_i32_0 = arith.constant 0 : i32
    return %arg1, %c0_i32 : i32, i32
  }
  func.func @transform_3(%arg0: i32, %arg1: i32) -> (i32, i32, i32) {
    %c0_i32 = arith.constant 0 : i32
    %c0_i32_0 = arith.constant 0 : i32
    return %arg0, %arg1, %c0_i32 : i32, i32, i32
  }
}

module attributes {stable_mosaic.version = 11 : i64} {
  func.func @cmsa_proj_kernel(%arg0: i32, %arg1: i32, %arg2: memref<1x8x256xbf16, #tpu.memory_space<vmem>>, %arg3: memref<1x8x256xbf16, #tpu.memory_space<vmem>>, %arg4: memref<1x8x256xbf16, #tpu.memory_space<vmem>>, %arg5: memref<1x16x8xbf16, #tpu.memory_space<vmem>>, %arg6: memref<16x1xf32, #tpu.memory_space<vmem>>, %arg7: memref<1x16x256xf32, #tpu.memory_space<vmem>>, %arg8: memref<2xf32, #tpu.memory_space<smem>>, %arg9: memref<1x16x256xf32, #tpu.memory_space<vmem>>, %arg10: memref<16x256xf32, #tpu.memory_space<vmem>>) attributes {dimension_semantics = [#tpu.dimension_semantics<parallel>, #tpu.dimension_semantics<arbitrary>], iteration_bounds = array<i64: 2, 2>, scalar_prefetch = 0 : i64, scratch_operands = 1 : i64, tpu.core_type = #tpu.core_type<tc>, window_params = [{transform_indices = @transform_0, window_bounds = array<i64: 1, 8, 256>}, {transform_indices = @transform_1, window_bounds = array<i64: 1, 8, 256>}, {transform_indices = @transform_2, window_bounds = array<i64: 1, 8, 256>}, {transform_indices = @transform_3, window_bounds = array<i64: 1, 16, 8>}, {pipeline_mode = #tpu.pipeline_mode<synchronous>, transform_indices = @transform_4, window_bounds = array<i64: 16, 1>}, {transform_indices = @transform_5, window_bounds = array<i64: 1, 16, 256>}, {transform_indices = @transform_6, window_bounds = array<i64: 2>}, {transform_indices = @transform_7, window_bounds = array<i64: 1, 16, 256>}]} {
    %c0_i32 = arith.constant 0 : i32
    %0 = arith.cmpi eq, %arg1, %c0_i32 : i32
    %1 = arith.extui %0 : i1 to i32
    %c0_i32_0 = arith.constant 0 : i32
    %2 = arith.cmpi ne, %1, %c0_i32_0 : i32
    scf.if %2 {
      %cst_25 = arith.constant 0.000000e+00 : f32
      %55 = vector.broadcast %cst_25 : f32 to vector<16x256xf32>
      %c0_26 = arith.constant 0 : index
      %c0_27 = arith.constant 0 : index
      %56 = vector.load %arg10[%c0_26, %c0_27] : memref<16x256xf32, #tpu.memory_space<vmem>>, vector<16x256xf32>
      tpu.vector_store %arg10[%c0_26, %c0_27], %55 {strides = array<i32>} : memref<16x256xf32, #tpu.memory_space<vmem>>, vector<16x256xf32>,
    } else {
    }
    %c0 = arith.constant 0 : index
    %c0_1 = arith.constant 0 : index
    %c0_2 = arith.constant 0 : index
    %3 = vector.load %arg2[%c0, %c0_1, %c0_2] : memref<1x8x256xbf16, #tpu.memory_space<vmem>>, vector<1x8x256xbf16>
    %4 = vector.shape_cast %3 : vector<1x8x256xbf16> to vector<8x256xbf16>
    %c0_3 = arith.constant 0 : index
    %c0_4 = arith.constant 0 : index
    %c0_5 = arith.constant 0 : index
    %5 = vector.load %arg3[%c0_3, %c0_4, %c0_5] : memref<1x8x256xbf16, #tpu.memory_space<vmem>>, vector<1x8x256xbf16>
    %6 = vector.shape_cast %5 : vector<1x8x256xbf16> to vector<8x256xbf16>
    %c0_6 = arith.constant 0 : index
    %c0_7 = arith.constant 0 : index
    %c0_8 = arith.constant 0 : index
    %7 = vector.load %arg4[%c0_6, %c0_7, %c0_8] : memref<1x8x256xbf16, #tpu.memory_space<vmem>>, vector<1x8x256xbf16>
    %8 = vector.shape_cast %7 : vector<1x8x256xbf16> to vector<8x256xbf16>
    %9 = arith.extf %4 : vector<8x256xbf16> to vector<8x256xf32>
    %10 = arith.extf %6 : vector<8x256xbf16> to vector<8x256xf32>
    %11 = arith.mulf %9, %9 : vector<8x256xf32>
    %cst = arith.constant dense<0.000000e+00> : vector<8xf32>
    %12 = vector.multi_reduction <add>, %11, %cst [1] : vector<8x256xf32> to vector<8xf32>
    %13 = vector.shape_cast %12 : vector<8xf32> to vector<8x1xf32>
    %cst_9 = arith.constant 1.000000e-24 : f32
    %14 = vector.broadcast %cst_9 : f32 to vector<8x1xf32>
    %15 = arith.maximumf %13, %14 : vector<8x1xf32>
    %16 = math.rsqrt %15 : vector<8x1xf32>
    %17 = arith.mulf %10, %10 : vector<8x256xf32>
    %cst_10 = arith.constant dense<0.000000e+00> : vector<8xf32>
    %18 = vector.multi_reduction <add>, %17, %cst_10 [1] : vector<8x256xf32> to vector<8xf32>
    %19 = vector.shape_cast %18 : vector<8xf32> to vector<8x1xf32>
    %cst_11 = arith.constant 1.000000e-24 : f32
    %20 = vector.broadcast %cst_11 : f32 to vector<8x1xf32>
    %21 = arith.maximumf %19, %20 : vector<8x1xf32>
    %22 = math.rsqrt %21 : vector<8x1xf32>
    %23 = vector.broadcast %16 : vector<8x1xf32> to vector<8x256xf32>
    %24 = arith.mulf %9, %23 : vector<8x256xf32>
    %25 = arith.truncf %24 : vector<8x256xf32> to vector<8x256xbf16>
    %26 = vector.broadcast %22 : vector<8x1xf32> to vector<8x256xf32>
    %27 = arith.mulf %10, %26 : vector<8x256xf32>
    %28 = arith.truncf %27 : vector<8x256xf32> to vector<8x256xbf16>
    %cst_12 = arith.constant dense<0.000000e+00> : vector<8x8xf32>
    %29 = tpu.matmul %25, %28, %cst_12 {dimension_numbers = #tpu.dot_dimension_numbers<[1], [1], [0], [0], [0, 0, 1, 0], [], []>} : vector<8x256xbf16>, vector<8x256xbf16>, vector<8x8xf32> -> vector<8x8xf32>
    %30 = arith.index_cast %arg1 : i32 to index
    %31 = memref.load %arg8[%30] : memref<2xf32, #tpu.memory_space<smem>>
    %32 = vector.broadcast %31 : f32 to vector<8x8xf32>
    %33 = arith.mulf %29, %32 : vector<8x8xf32>
    %cst_13 = arith.constant dense<0xFF800000> : vector<8xf32>
    %34 = vector.multi_reduction <maximumf>, %33, %cst_13 [1] : vector<8x8xf32> to vector<8xf32>
    %35 = vector.shape_cast %34 : vector<8xf32> to vector<8x1xf32>
    %36 = vector.broadcast %35 : vector<8x1xf32> to vector<8x8xf32>
    %37 = arith.subf %33, %36 : vector<8x8xf32>
    %38 = math.exp %37 : vector<8x8xf32>
    %cst_14 = arith.constant dense<0.000000e+00> : vector<8xf32>
    %39 = vector.multi_reduction <add>, %38, %cst_14 [1] : vector<8x8xf32> to vector<8xf32>
    %40 = vector.shape_cast %39 : vector<8xf32> to vector<8x1xf32>
    %41 = vector.broadcast %40 : vector<8x1xf32> to vector<8x8xf32>
    %42 = arith.divf %38, %41 : vector<8x8xf32>
    %43 = arith.truncf %42 : vector<8x8xf32> to vector<8x8xbf16>
    %cst_15 = arith.constant dense<0.000000e+00> : vector<8x256xf32>
    %44 = tpu.matmul %43, %8, %cst_15 {dimension_numbers = #tpu.dot_dimension_numbers<[1], [0], [0], [1], [0, 0, 1, 1], [], []>} : vector<8x8xbf16>, vector<8x256xbf16>, vector<8x256xf32> -> vector<8x256xf32>
    %c0_16 = arith.constant 0 : index
    %c0_17 = arith.constant 0 : index
    %45 = vector.load %arg10[%c0_16, %c0_17] : memref<16x256xf32, #tpu.memory_space<vmem>>, vector<16x256xf32>
    %c0_18 = arith.constant 0 : index
    %c0_19 = arith.constant 0 : index
    %c0_20 = arith.constant 0 : index
    %46 = vector.load %arg5[%c0_18, %c0_19, %c0_20] : memref<1x16x8xbf16, #tpu.memory_space<vmem>>, vector<1x16x8xbf16>
    %47 = vector.shape_cast %46 : vector<1x16x8xbf16> to vector<16x8xbf16>
    %48 = arith.truncf %44 : vector<8x256xf32> to vector<8x256xbf16>
    %cst_21 = arith.constant dense<0.000000e+00> : vector<16x256xf32>
    %49 = tpu.matmul %47, %48, %cst_21 {dimension_numbers = #tpu.dot_dimension_numbers<[1], [0], [0], [1], [0, 0, 1, 1], [], []>} : vector<16x8xbf16>, vector<8x256xbf16>, vector<16x256xf32> -> vector<16x256xf32>
    %50 = arith.addf %45, %49 : vector<16x256xf32>
    %c0_22 = arith.constant 0 : index
    %c0_23 = arith.constant 0 : index
    %51 = vector.load %arg10[%c0_22, %c0_23] : memref<16x256xf32, #tpu.memory_space<vmem>>, vector<16x256xf32>
    tpu.vector_store %arg10[%c0_22, %c0_23], %50 {strides = array<i32>} : memref<16x256xf32, #tpu.memory_space<vmem>>, vector<16x256xf32>,
    %c1_i32 = arith.constant 1 : i32
    %52 = arith.cmpi eq, %arg1, %c1_i32 : i32
    %53 = arith.extui %52 : i1 to i32
    %c0_i32_24 = arith.constant 0 : i32
    %54 = arith.cmpi ne, %53, %c0_i32_24 : i32
    scf.if %54 {
      %c0_25 = arith.constant 0 : index
      %c0_26 = arith.constant 0 : index
      %55 = vector.load %arg10[%c0_25, %c0_26] : memref<16x256xf32, #tpu.memory_space<vmem>>, vector<16x256xf32>
      %c0_27 = arith.constant 0 : index
      %c0_28 = arith.constant 0 : index
      %56 = vector.load %arg6[%c0_27, %c0_28] : memref<16x1xf32, #tpu.memory_space<vmem>>, vector<16x1xf32>
      %57 = vector.broadcast %56 : vector<16x1xf32> to vector<16x256xf32>
      %58 = arith.addf %55, %57 : vector<16x256xf32>
      %c0_29 = arith.constant 0 : index
      %c0_30 = arith.constant 0 : index
      %c0_31 = arith.constant 0 : index
      %59 = vector.load %arg7[%c0_29, %c0_30, %c0_31] : memref<1x16x256xf32, #tpu.memory_space<vmem>>, vector<1x16x256xf32>
      %60 = vector.shape_cast %59 : vector<1x16x256xf32> to vector<16x256xf32>
      %61 = arith.addf %58, %60 : vector<16x256xf32>
      %c0_32 = arith.constant 0 : index
      %c0_33 = arith.constant 0 : index
      %c0_34 = arith.constant 0 : index
      %62 = vector.load %arg9[%c0_32, %c0_33, %c0_34] : memref<1x16x256xf32, #tpu.memory_space<vmem>>, vector<1x16x256xf32>
      %63 = vector.shape_cast %62 : vector<1x16x256xf32> to vector<16x256xf32>
      %64 = vector.shape_cast %61 : vector<16x256xf32> to vector<1x16x256xf32>
      tpu.vector_store %arg9[%c0_32, %c0_33, %c0_34], %64 {strides = array<i32>} : memref<1x16x256xf32, #tpu.memory_space<vmem>>, vector<1x16x256xf32>,
    } else {
    }
    return
  }
  func.func @transform_0(%arg0: i32, %arg1: i32) -> (i32, i32, i32) {
    %c0_i32 = arith.constant 0 : i32
    %c0_i32_0 = arith.constant 0 : i32
    return %arg0, %arg1, %c0_i32 : i32, i32, i32
  }
  func.func @transform_1(%arg0: i32, %arg1: i32) -> (i32, i32, i32) {
    %c2_i32 = arith.constant 2 : i32
    %0 = arith.addi %c2_i32, %arg1 : i32
    %c0_i32 = arith.constant 0 : i32
    %c0_i32_0 = arith.constant 0 : i32
    return %arg0, %0, %c0_i32 : i32, i32, i32
  }
  func.func @transform_2(%arg0: i32, %arg1: i32) -> (i32, i32, i32) {
    %c4_i32 = arith.constant 4 : i32
    %0 = arith.addi %c4_i32, %arg1 : i32
    %c0_i32 = arith.constant 0 : i32
    %c0_i32_0 = arith.constant 0 : i32
    return %arg0, %0, %c0_i32 : i32, i32, i32
  }
  func.func @transform_3(%arg0: i32, %arg1: i32) -> (i32, i32, i32) {
    %c0_i32 = arith.constant 0 : i32
    %c0_i32_0 = arith.constant 0 : i32
    %c0_i32_1 = arith.constant 0 : i32
    return %arg1, %c0_i32, %c0_i32_0 : i32, i32, i32
  }
  func.func @transform_4(%arg0: i32, %arg1: i32) -> (i32, i32) {
    %c0_i32 = arith.constant 0 : i32
    %c0_i32_0 = arith.constant 0 : i32
    %c0_i32_1 = arith.constant 0 : i32
    return %c0_i32, %c0_i32_0 : i32, i32
  }
  func.func @transform_5(%arg0: i32, %arg1: i32) -> (i32, i32, i32) {
    %c0_i32 = arith.constant 0 : i32
    %c0_i32_0 = arith.constant 0 : i32
    %c0_i32_1 = arith.constant 0 : i32
    return %arg0, %c0_i32, %c0_i32_0 : i32, i32, i32
  }
  func.func @transform_6(%arg0: i32, %arg1: i32) -> i32 {
    %c0_i32 = arith.constant 0 : i32
    %c0_i32_0 = arith.constant 0 : i32
    return %c0_i32 : i32
  }
  func.func @transform_7(%arg0: i32, %arg1: i32) -> (i32, i32, i32) {
    %c0_i32 = arith.constant 0 : i32
    %c0_i32_0 = arith.constant 0 : i32
    %c0_i32_1 = arith.constant 0 : i32
    return %arg0, %c0_i32, %c0_i32_0 : i32, i32, i32
  }
}

module attributes {stable_mosaic.version = 11 : i64} {
  func.func @ln_conv1x1_kernel(%arg0: i32, %arg1: i32, %arg2: memref<1x16x256xf32, #tpu.memory_space<vmem>>, %arg3: memref<64x16xbf16, #tpu.memory_space<vmem>>, %arg4: memref<64x1xf32, #tpu.memory_space<vmem>>, %arg5: memref<1x64x256xbf16, #tpu.memory_space<vmem>>) attributes {dimension_semantics = [#tpu.dimension_semantics<parallel>, #tpu.dimension_semantics<parallel>], iteration_bounds = array<i64: 2, 1>, scalar_prefetch = 0 : i64, scratch_operands = 0 : i64, tpu.core_type = #tpu.core_type<tc>, window_params = [{transform_indices = @transform_0, window_bounds = array<i64: 1, 16, 256>}, {pipeline_mode = #tpu.pipeline_mode<synchronous>, transform_indices = @transform_1, window_bounds = array<i64: 64, 16>}, {pipeline_mode = #tpu.pipeline_mode<synchronous>, transform_indices = @transform_2, window_bounds = array<i64: 64, 1>}, {transform_indices = @transform_3, window_bounds = array<i64: 1, 64, 256>}]} {
    %c0 = arith.constant 0 : index
    %c0_0 = arith.constant 0 : index
    %c0_1 = arith.constant 0 : index
    %0 = vector.load %arg2[%c0, %c0_0, %c0_1] : memref<1x16x256xf32, #tpu.memory_space<vmem>>, vector<1x16x256xf32>
    %1 = vector.shape_cast %0 : vector<1x16x256xf32> to vector<16x256xf32>
    %cst = arith.constant dense<0.000000e+00> : vector<256xf32>
    %2 = vector.multi_reduction <add>, %1, %cst [0] : vector<16x256xf32> to vector<256xf32>
    %3 = vector.shape_cast %2 : vector<256xf32> to vector<1x256xf32>
    %cst_2 = arith.constant 1.600000e+01 : f32
    %4 = vector.broadcast %cst_2 : f32 to vector<1x256xf32>
    %5 = arith.divf %3, %4 : vector<1x256xf32>
    %6 = vector.broadcast %5 : vector<1x256xf32> to vector<16x256xf32>
    %7 = arith.subf %1, %6 : vector<16x256xf32>
    %8 = arith.mulf %7, %7 : vector<16x256xf32>
    %cst_3 = arith.constant dense<0.000000e+00> : vector<256xf32>
    %9 = vector.multi_reduction <add>, %8, %cst_3 [0] : vector<16x256xf32> to vector<256xf32>
    %10 = vector.shape_cast %9 : vector<256xf32> to vector<1x256xf32>
    %cst_4 = arith.constant 1.600000e+01 : f32
    %11 = vector.broadcast %cst_4 : f32 to vector<1x256xf32>
    %12 = arith.divf %10, %11 : vector<1x256xf32>
    %cst_5 = arith.constant 9.99999974E-6 : f32
    %13 = vector.broadcast %cst_5 : f32 to vector<1x256xf32>
    %14 = arith.addf %12, %13 : vector<1x256xf32>
    %15 = math.rsqrt %14 : vector<1x256xf32>
    %16 = vector.broadcast %15 : vector<1x256xf32> to vector<16x256xf32>
    %17 = arith.mulf %7, %16 : vector<16x256xf32>
    %18 = arith.truncf %17 : vector<16x256xf32> to vector<16x256xbf16>
    %c0_6 = arith.constant 0 : index
    %c0_7 = arith.constant 0 : index
    %19 = vector.load %arg3[%c0_6, %c0_7] : memref<64x16xbf16, #tpu.memory_space<vmem>>, vector<64x16xbf16>
    %cst_8 = arith.constant dense<0.000000e+00> : vector<64x256xf32>
    %20 = tpu.matmul %19, %18, %cst_8 {dimension_numbers = #tpu.dot_dimension_numbers<[1], [0], [0], [1], [0, 0, 1, 1], [], []>} : vector<64x16xbf16>, vector<16x256xbf16>, vector<64x256xf32> -> vector<64x256xf32>
    %c0_9 = arith.constant 0 : index
    %c0_10 = arith.constant 0 : index
    %21 = vector.load %arg4[%c0_9, %c0_10] : memref<64x1xf32, #tpu.memory_space<vmem>>, vector<64x1xf32>
    %22 = vector.broadcast %21 : vector<64x1xf32> to vector<64x256xf32>
    %23 = arith.addf %20, %22 : vector<64x256xf32>
    %24 = arith.truncf %23 : vector<64x256xf32> to vector<64x256xbf16>
    %c0_11 = arith.constant 0 : index
    %c0_12 = arith.constant 0 : index
    %c0_13 = arith.constant 0 : index
    %25 = vector.load %arg5[%c0_11, %c0_12, %c0_13] : memref<1x64x256xbf16, #tpu.memory_space<vmem>>, vector<1x64x256xbf16>
    %26 = vector.shape_cast %25 : vector<1x64x256xbf16> to vector<64x256xbf16>
    %27 = vector.shape_cast %24 : vector<64x256xbf16> to vector<1x64x256xbf16>
    tpu.vector_store %arg5[%c0_11, %c0_12, %c0_13], %27 {strides = array<i32>} : memref<1x64x256xbf16, #tpu.memory_space<vmem>>, vector<1x64x256xbf16>,
    return
  }
  func.func @transform_0(%arg0: i32, %arg1: i32) -> (i32, i32, i32) {
    %c0_i32 = arith.constant 0 : i32
    %c0_i32_0 = arith.constant 0 : i32
    return %arg0, %c0_i32, %arg1 : i32, i32, i32
  }
  func.func @transform_1(%arg0: i32, %arg1: i32) -> (i32, i32) {
    %c0_i32 = arith.constant 0 : i32
    %c0_i32_0 = arith.constant 0 : i32
    %c0_i32_1 = arith.constant 0 : i32
    return %c0_i32, %c0_i32_0 : i32, i32
  }
  func.func @transform_2(%arg0: i32, %arg1: i32) -> (i32, i32) {
    %c0_i32 = arith.constant 0 : i32
    %c0_i32_0 = arith.constant 0 : i32
    %c0_i32_1 = arith.constant 0 : i32
    return %c0_i32, %c0_i32_0 : i32, i32
  }
  func.func @transform_3(%arg0: i32, %arg1: i32) -> (i32, i32, i32) {
    %c0_i32 = arith.constant 0 : i32
    %c0_i32_0 = arith.constant 0 : i32
    return %arg0, %c0_i32, %arg1 : i32, i32, i32
  }
}

module attributes {stable_mosaic.version = 11 : i64} {
  func.func @dwconv3x3_kernel(%arg0: i32, %arg1: i32, %arg2: memref<1x32x256xbf16, #tpu.memory_space<vmem>>, %arg3: memref<32x9xf32, #tpu.memory_space<vmem>>, %arg4: memref<32x1xf32, #tpu.memory_space<vmem>>, %arg5: memref<1x32x256xbf16, #tpu.memory_space<vmem>>) attributes {dimension_semantics = [#tpu.dimension_semantics<parallel>, #tpu.dimension_semantics<parallel>], iteration_bounds = array<i64: 2, 2>, scalar_prefetch = 0 : i64, scratch_operands = 0 : i64, tpu.core_type = #tpu.core_type<tc>, window_params = [{transform_indices = @transform_0, window_bounds = array<i64: 1, 32, 256>}, {transform_indices = @transform_1, window_bounds = array<i64: 32, 9>}, {transform_indices = @transform_2, window_bounds = array<i64: 32, 1>}, {transform_indices = @transform_3, window_bounds = array<i64: 1, 32, 256>}]} {
    %c0 = arith.constant 0 : index
    %c0_0 = arith.constant 0 : index
    %c0_1 = arith.constant 0 : index
    %0 = vector.load %arg2[%c0, %c0_0, %c0_1] : memref<1x32x256xbf16, #tpu.memory_space<vmem>>, vector<1x32x256xbf16>
    %1 = vector.shape_cast %0 : vector<1x32x256xbf16> to vector<32x256xbf16>
    %2 = arith.extf %1 : vector<32x256xbf16> to vector<32x256xf32>
    %3 = tpu.iota {dimensions = array<i32: 1>} : vector<1x256xi32>
    %c16_i32 = arith.constant 16 : i32
    %c0_i32 = arith.constant 0 : i32
    %4 = arith.cmpi eq, %c16_i32, %c0_i32 : i32
    %c1_i32 = arith.constant 1 : i32
    %5 = arith.select %4, %c1_i32, %c16_i32 : i32
    %6 = vector.broadcast %5 : i32 to vector<1x256xi32>
    %7 = arith.remsi %3, %6 : vector<1x256xi32>
    %c0_i32_2 = arith.constant 0 : i32
    %8 = vector.broadcast %c0_i32_2 : i32 to vector<1x256xi32>
    %9 = arith.cmpi ne, %7, %8 : vector<1x256xi32>
    %c0_i32_3 = arith.constant 0 : i32
    %10 = vector.broadcast %c0_i32_3 : i32 to vector<1x256xi32>
    %11 = arith.cmpi slt, %7, %10 : vector<1x256xi32>
    %c0_i32_4 = arith.constant 0 : i32
    %12 = arith.cmpi slt, %5, %c0_i32_4 : i32
    %13 = vector.broadcast %12 : i1 to vector<1x256xi1>
    %14 = vector.broadcast %13 : vector<1x256xi1> to vector<1x256xi1>
    %15 = arith.xori %11, %14 : vector<1x256xi1>
    %16 = arith.andi %15, %9 : vector<1x256xi1>
    %17 = vector.broadcast %5 : i32 to vector<1x256xi32>
    %18 = arith.addi %7, %17 : vector<1x256xi32>
    %19 = arith.select %16, %18, %7 : vector<1x256xi1>, vector<1x256xi32>
    %c0_i32_5 = arith.constant 0 : i32
    %20 = vector.broadcast %c0_i32_5 : i32 to vector<1x256xi32>
    %21 = arith.cmpi ne, %19, %20 : vector<1x256xi32>
    %c1_i32_6 = arith.constant 1 : i32
    %22 = tpu.dynamic_rotate %2 by %c1_i32_6 dim 1 : vector<32x256xf32>, i32 -> vector<32x256xf32>
    %cst = arith.constant 0.000000e+00 : f32
    %23 = vector.shape_cast %21 : vector<1x256xi1> to vector<1x256xi1>
    %24 = vector.broadcast %23 : vector<1x256xi1> to vector<32x256xi1>
    %25 = vector.broadcast %cst : f32 to vector<32x256xf32>
    %26 = arith.select %24, %22, %25 : vector<32x256xi1>, vector<32x256xf32>
    %c15_i32 = arith.constant 15 : i32
    %27 = vector.broadcast %c15_i32 : i32 to vector<1x256xi32>
    %28 = arith.cmpi ne, %19, %27 : vector<1x256xi32>
    %c255_i32 = arith.constant 255 : i32
    %29 = tpu.dynamic_rotate %2 by %c255_i32 dim 1 : vector<32x256xf32>, i32 -> vector<32x256xf32>
    %cst_7 = arith.constant 0.000000e+00 : f32
    %30 = vector.shape_cast %28 : vector<1x256xi1> to vector<1x256xi1>
    %31 = vector.broadcast %30 : vector<1x256xi1> to vector<32x256xi1>
    %32 = vector.broadcast %cst_7 : f32 to vector<32x256xf32>
    %33 = arith.select %31, %29, %32 : vector<32x256xi1>, vector<32x256xf32>
    %c0_8 = arith.constant 0 : index
    %c3 = arith.constant 3 : index
    %34 = vector.load %arg3[%c0_8, %c3] : memref<32x9xf32, #tpu.memory_space<vmem>>, vector<32x1xf32>
    %35 = vector.broadcast %34 : vector<32x1xf32> to vector<32x256xf32>
    %36 = arith.mulf %26, %35 : vector<32x256xf32>
    %c0_9 = arith.constant 0 : index
    %c4 = arith.constant 4 : index
    %37 = vector.load %arg3[%c0_9, %c4] : memref<32x9xf32, #tpu.memory_space<vmem>>, vector<32x1xf32>
    %38 = vector.broadcast %37 : vector<32x1xf32> to vector<32x256xf32>
    %39 = arith.mulf %2, %38 : vector<32x256xf32>
    %40 = arith.addf %36, %39 : vector<32x256xf32>
    %c0_10 = arith.constant 0 : index
    %c5 = arith.constant 5 : index
    %41 = vector.load %arg3[%c0_10, %c5] : memref<32x9xf32, #tpu.memory_space<vmem>>, vector<32x1xf32>
    %42 = vector.broadcast %41 : vector<32x1xf32> to vector<32x256xf32>
    %43 = arith.mulf %33, %42 : vector<32x256xf32>
    %44 = arith.addf %40, %43 : vector<32x256xf32>
    %c16_i32_11 = arith.constant 16 : i32
    %45 = vector.broadcast %c16_i32_11 : i32 to vector<1x256xi32>
    %46 = arith.cmpi sge, %3, %45 : vector<1x256xi32>
    %c0_12 = arith.constant 0 : index
    %c0_13 = arith.constant 0 : index
    %47 = vector.load %arg3[%c0_12, %c0_13] : memref<32x9xf32, #tpu.memory_space<vmem>>, vector<32x1xf32>
    %48 = vector.broadcast %47 : vector<32x1xf32> to vector<32x256xf32>
    %49 = arith.mulf %26, %48 : vector<32x256xf32>
    %c0_14 = arith.constant 0 : index
    %c1 = arith.constant 1 : index
    %50 = vector.load %arg3[%c0_14, %c1] : memref<32x9xf32, #tpu.memory_space<vmem>>, vector<32x1xf32>
    %51 = vector.broadcast %50 : vector<32x1xf32> to vector<32x256xf32>
    %52 = arith.mulf %2, %51 : vector<32x256xf32>
    %53 = arith.addf %49, %52 : vector<32x256xf32>
    %c0_15 = arith.constant 0 : index
    %c2 = arith.constant 2 : index
    %54 = vector.load %arg3[%c0_15, %c2] : memref<32x9xf32, #tpu.memory_space<vmem>>, vector<32x1xf32>
    %55 = vector.broadcast %54 : vector<32x1xf32> to vector<32x256xf32>
    %56 = arith.mulf %33, %55 : vector<32x256xf32>
    %57 = arith.addf %53, %56 : vector<32x256xf32>
    %c16_i32_16 = arith.constant 16 : i32
    %58 = tpu.dynamic_rotate %57 by %c16_i32_16 dim 1 : vector<32x256xf32>, i32 -> vector<32x256xf32>
    %cst_17 = arith.constant 0.000000e+00 : f32
    %59 = vector.shape_cast %46 : vector<1x256xi1> to vector<1x256xi1>
    %60 = vector.broadcast %59 : vector<1x256xi1> to vector<32x256xi1>
    %61 = vector.broadcast %cst_17 : f32 to vector<32x256xf32>
    %62 = arith.select %60, %58, %61 : vector<32x256xi1>, vector<32x256xf32>
    %c240_i32 = arith.constant 240 : i32
    %63 = vector.broadcast %c240_i32 : i32 to vector<1x256xi32>
    %64 = arith.cmpi slt, %3, %63 : vector<1x256xi32>
    %c0_18 = arith.constant 0 : index
    %c6 = arith.constant 6 : index
    %65 = vector.load %arg3[%c0_18, %c6] : memref<32x9xf32, #tpu.memory_space<vmem>>, vector<32x1xf32>
    %66 = vector.broadcast %65 : vector<32x1xf32> to vector<32x256xf32>
    %67 = arith.mulf %26, %66 : vector<32x256xf32>
    %c0_19 = arith.constant 0 : index
    %c7 = arith.constant 7 : index
    %68 = vector.load %arg3[%c0_19, %c7] : memref<32x9xf32, #tpu.memory_space<vmem>>, vector<32x1xf32>
    %69 = vector.broadcast %68 : vector<32x1xf32> to vector<32x256xf32>
    %70 = arith.mulf %2, %69 : vector<32x256xf32>
    %71 = arith.addf %67, %70 : vector<32x256xf32>
    %c0_20 = arith.constant 0 : index
    %c8 = arith.constant 8 : index
    %72 = vector.load %arg3[%c0_20, %c8] : memref<32x9xf32, #tpu.memory_space<vmem>>, vector<32x1xf32>
    %73 = vector.broadcast %72 : vector<32x1xf32> to vector<32x256xf32>
    %74 = arith.mulf %33, %73 : vector<32x256xf32>
    %75 = arith.addf %71, %74 : vector<32x256xf32>
    %c240_i32_21 = arith.constant 240 : i32
    %76 = tpu.dynamic_rotate %75 by %c240_i32_21 dim 1 : vector<32x256xf32>, i32 -> vector<32x256xf32>
    %cst_22 = arith.constant 0.000000e+00 : f32
    %77 = vector.shape_cast %64 : vector<1x256xi1> to vector<1x256xi1>
    %78 = vector.broadcast %77 : vector<1x256xi1> to vector<32x256xi1>
    %79 = vector.broadcast %cst_22 : f32 to vector<32x256xf32>
    %80 = arith.select %78, %76, %79 : vector<32x256xi1>, vector<32x256xf32>
    %81 = arith.addf %44, %62 : vector<32x256xf32>
    %82 = arith.addf %81, %80 : vector<32x256xf32>
    %c0_23 = arith.constant 0 : index
    %c0_24 = arith.constant 0 : index
    %83 = vector.load %arg4[%c0_23, %c0_24] : memref<32x1xf32, #tpu.memory_space<vmem>>, vector<32x1xf32>
    %84 = vector.broadcast %83 : vector<32x1xf32> to vector<32x256xf32>
    %85 = arith.addf %82, %84 : vector<32x256xf32>
    %86 = arith.truncf %85 : vector<32x256xf32> to vector<32x256xbf16>
    %c0_25 = arith.constant 0 : index
    %c0_26 = arith.constant 0 : index
    %c0_27 = arith.constant 0 : index
    %87 = vector.load %arg5[%c0_25, %c0_26, %c0_27] : memref<1x32x256xbf16, #tpu.memory_space<vmem>>, vector<1x32x256xbf16>
    %88 = vector.shape_cast %87 : vector<1x32x256xbf16> to vector<32x256xbf16>
    %89 = vector.shape_cast %86 : vector<32x256xbf16> to vector<1x32x256xbf16>
    tpu.vector_store %arg5[%c0_25, %c0_26, %c0_27], %89 {strides = array<i32>} : memref<1x32x256xbf16, #tpu.memory_space<vmem>>, vector<1x32x256xbf16>,
    return
  }
  func.func @transform_0(%arg0: i32, %arg1: i32) -> (i32, i32, i32) {
    %c0_i32 = arith.constant 0 : i32
    %c0_i32_0 = arith.constant 0 : i32
    return %arg0, %arg1, %c0_i32 : i32, i32, i32
  }
  func.func @transform_1(%arg0: i32, %arg1: i32) -> (i32, i32) {
    %c0_i32 = arith.constant 0 : i32
    %c0_i32_0 = arith.constant 0 : i32
    return %arg1, %c0_i32 : i32, i32
  }
  func.func @transform_2(%arg0: i32, %arg1: i32) -> (i32, i32) {
    %c0_i32 = arith.constant 0 : i32
    %c0_i32_0 = arith.constant 0 : i32
    return %arg1, %c0_i32 : i32, i32
  }
  func.func @transform_3(%arg0: i32, %arg1: i32) -> (i32, i32, i32) {
    %c0_i32 = arith.constant 0 : i32
    %c0_i32_0 = arith.constant 0 : i32
    return %arg0, %arg1, %c0_i32 : i32, i32, i32
  }
}

module attributes {stable_mosaic.version = 11 : i64} {
  func.func @gated_ffn_out_kernel(%arg0: i32, %arg1: i32, %arg2: memref<1x64x256xbf16, #tpu.memory_space<vmem>>, %arg3: memref<16x32xbf16, #tpu.memory_space<vmem>>, %arg4: memref<16x1xf32, #tpu.memory_space<vmem>>, %arg5: memref<1x16x256xf32, #tpu.memory_space<vmem>>, %arg6: memref<1x16x256xf32, #tpu.memory_space<vmem>>) attributes {dimension_semantics = [#tpu.dimension_semantics<parallel>, #tpu.dimension_semantics<parallel>], iteration_bounds = array<i64: 2, 1>, scalar_prefetch = 0 : i64, scratch_operands = 0 : i64, tpu.core_type = #tpu.core_type<tc>, window_params = [{transform_indices = @transform_0, window_bounds = array<i64: 1, 64, 256>}, {pipeline_mode = #tpu.pipeline_mode<synchronous>, transform_indices = @transform_1, window_bounds = array<i64: 16, 32>}, {pipeline_mode = #tpu.pipeline_mode<synchronous>, transform_indices = @transform_2, window_bounds = array<i64: 16, 1>}, {transform_indices = @transform_3, window_bounds = array<i64: 1, 16, 256>}, {transform_indices = @transform_4, window_bounds = array<i64: 1, 16, 256>}]} {
    %c0 = arith.constant 0 : index
    %c0_0 = arith.constant 0 : index
    %c0_1 = arith.constant 0 : index
    %0 = vector.load %arg2[%c0, %c0_0, %c0_1] : memref<1x64x256xbf16, #tpu.memory_space<vmem>>, vector<1x64x256xbf16>
    %1 = vector.shape_cast %0 : vector<1x64x256xbf16> to vector<64x256xbf16>
    %2 = arith.extf %1 : vector<64x256xbf16> to vector<64x256xf32>
    %3 = vector.extract_strided_slice %2 {offsets = [0, 0], sizes = [32, 256], strides = [1, 1]} : vector<64x256xf32> to vector<32x256xf32>
    %cst = arith.constant 5.000000e-01 : f32
    %4 = vector.broadcast %cst : f32 to vector<32x256xf32>
    %5 = arith.mulf %4, %3 : vector<32x256xf32>
    %cst_2 = arith.constant 0.707106769 : f32
    %6 = vector.broadcast %cst_2 : f32 to vector<32x256xf32>
    %7 = arith.mulf %3, %6 : vector<32x256xf32>
    %8 = math.erf %7 : vector<32x256xf32>
    %cst_3 = arith.constant 1.000000e+00 : f32
    %9 = vector.broadcast %cst_3 : f32 to vector<32x256xf32>
    %10 = arith.addf %9, %8 : vector<32x256xf32>
    %11 = arith.mulf %5, %10 : vector<32x256xf32>
    %12 = vector.extract_strided_slice %2 {offsets = [32, 0], sizes = [32, 256], strides = [1, 1]} : vector<64x256xf32> to vector<32x256xf32>
    %13 = arith.mulf %11, %12 : vector<32x256xf32>
    %14 = arith.truncf %13 : vector<32x256xf32> to vector<32x256xbf16>
    %c0_4 = arith.constant 0 : index
    %c0_5 = arith.constant 0 : index
    %15 = vector.load %arg3[%c0_4, %c0_5] : memref<16x32xbf16, #tpu.memory_space<vmem>>, vector<16x32xbf16>
    %cst_6 = arith.constant dense<0.000000e+00> : vector<16x256xf32>
    %16 = tpu.matmul %15, %14, %cst_6 {dimension_numbers = #tpu.dot_dimension_numbers<[1], [0], [0], [1], [0, 0, 1, 1], [], []>} : vector<16x32xbf16>, vector<32x256xbf16>, vector<16x256xf32> -> vector<16x256xf32>
    %c0_7 = arith.constant 0 : index
    %c0_8 = arith.constant 0 : index
    %17 = vector.load %arg4[%c0_7, %c0_8] : memref<16x1xf32, #tpu.memory_space<vmem>>, vector<16x1xf32>
    %18 = vector.broadcast %17 : vector<16x1xf32> to vector<16x256xf32>
    %19 = arith.addf %16, %18 : vector<16x256xf32>
    %c0_9 = arith.constant 0 : index
    %c0_10 = arith.constant 0 : index
    %c0_11 = arith.constant 0 : index
    %20 = vector.load %arg5[%c0_9, %c0_10, %c0_11] : memref<1x16x256xf32, #tpu.memory_space<vmem>>, vector<1x16x256xf32>
    %21 = vector.shape_cast %20 : vector<1x16x256xf32> to vector<16x256xf32>
    %22 = arith.addf %19, %21 : vector<16x256xf32>
    %c0_12 = arith.constant 0 : index
    %c0_13 = arith.constant 0 : index
    %c0_14 = arith.constant 0 : index
    %23 = vector.load %arg6[%c0_12, %c0_13, %c0_14] : memref<1x16x256xf32, #tpu.memory_space<vmem>>, vector<1x16x256xf32>
    %24 = vector.shape_cast %23 : vector<1x16x256xf32> to vector<16x256xf32>
    %25 = vector.shape_cast %22 : vector<16x256xf32> to vector<1x16x256xf32>
    tpu.vector_store %arg6[%c0_12, %c0_13, %c0_14], %25 {strides = array<i32>} : memref<1x16x256xf32, #tpu.memory_space<vmem>>, vector<1x16x256xf32>,
    return
  }
  func.func @transform_0(%arg0: i32, %arg1: i32) -> (i32, i32, i32) {
    %c0_i32 = arith.constant 0 : i32
    %c0_i32_0 = arith.constant 0 : i32
    return %arg0, %c0_i32, %arg1 : i32, i32, i32
  }
  func.func @transform_1(%arg0: i32, %arg1: i32) -> (i32, i32) {
    %c0_i32 = arith.constant 0 : i32
    %c0_i32_0 = arith.constant 0 : i32
    %c0_i32_1 = arith.constant 0 : i32
    return %c0_i32, %c0_i32_0 : i32, i32
  }
  func.func @transform_2(%arg0: i32, %arg1: i32) -> (i32, i32) {
    %c0_i32 = arith.constant 0 : i32
    %c0_i32_0 = arith.constant 0 : i32
    %c0_i32_1 = arith.constant 0 : i32
    return %c0_i32, %c0_i32_0 : i32, i32
  }
  func.func @transform_3(%arg0: i32, %arg1: i32) -> (i32, i32, i32) {
    %c0_i32 = arith.constant 0 : i32
    %c0_i32_0 = arith.constant 0 : i32
    return %arg0, %c0_i32, %arg1 : i32, i32, i32
  }
  func.func @transform_4(%arg0: i32, %arg1: i32) -> (i32, i32, i32) {
    %c0_i32 = arith.constant 0 : i32
    %c0_i32_0 = arith.constant 0 : i32
    return %arg0, %c0_i32, %arg1 : i32, i32, i32
  }
}

</mosaic_0001>

<llo_original>
// kernel: _lambda_.6
$region0: #{_lambda_.6}
  #allocation0 [shape = 'u32[]', space=smem, size = 0x4, offset = 0x4, fixed_abs, tag = 'smem constant byte address 0x4 - core index']
  #allocation1 [shape = 'u32[144,128]{1,0:T(1,128)}', space=vmem, size = 0x12000, scoped, tag = 'internal scratch']
  %s0 = inlined_call_operand.vmem [shape: f32[2,16,256], index: 0, kind: input, shape index: {}]
  %s1 = inlined_call_operand.vmem [shape: bf16[48,16], index: 1, kind: input, shape index: {}]
  %s2 = inlined_call_operand.vmem [shape: f32[48,1], index: 2, kind: input, shape index: {}]
  %s3 = inlined_call_operand.vmem [shape: bf16[2,48,256], index: 3, kind: output, shape index: {}]
  %s4 = sld [smem:[#allocation0]]
  $region45: #{_lambda_.6} parent=0
    _
  %s6 = ssub.s32 1, %s4
  %s7 = scalar_select 0, %s6, %s4
  loop: start=0, step=1, limit=4
  $region2: #{_lambda_.6} parent=0 // loop_pre_header
    _
  $region3: #{_lambda_.6} parent=0 // loop_header
    %s9 = sphi 0, %s13
    %p10 = scmp.ge.s32.totalorder %s9, 4
    %s16 = sphi 0, %s28
    %s17 = sphi 0, %s24
    %s18 = sphi 0, %s16
    %s19 = sphi 0, %s17
    %s20 = sphi 0, %s18
    %s21 = sphi 0, %s19
    %s33 = sphi 0, %s35
    %s36 = sphi 0, %s33
    %s37 = sphi 0, %s36
    %s53 = sphi 0, %s37
    %s57 = sphi 0, %s57
    %s59 = sphi 0, %s57
    %s60 = sphi 0, %s59
    %s74 = sphi 0, %s60
    %s78 = sphi 0, %s78
    %s80 = sphi 0, %s78
    %s81 = sphi 0, %s80
    %s95 = sphi 0, %s81
    %s103 = sphi 0, %s105
    %s106 = sphi 0, %s103
    %s107 = sphi 0, %s106
    %s123 = sphi 0, %s107
  $region4: #{_lambda_.6} parent=0 // loop_header_branch
    %12 = sbr.rel (%p10) target = $region8
  $region5: #{_lambda_.6} parent=0 // loop_body
    %s14 = ssub.s32 %s9, 1
    %s15 = ssub.s32 %s9, 2
    %s22 = sadd.s32 1, %s17
    %p23 = scmp.ge.s32.totalorder %s22, 1
    %s24 = scalar_select %p23, 0, %s22
    %s25 = sadd.s32 1, %s16
    %s26 = scalar_select %p23, %s25, %s16
    %p27 = scmp.ge.s32.totalorder %s26, 2
    %s28 = scalar_select %p27, 0, %s26
    %s29 = ssub.s32 %s16, %s28
    %s30 = ssub.s32 %s17, %s24
    %s31 = sor.u32 %s29, %s30
    %p32 = scmp.eq.s32.totalorder %s31, 0
    %s34 = sadd.s32 %s33, 1
    %s35 = scalar_select %p32, %s33, %s34
    %p38 = pneg %p32
    %p39 = scmp.eq.s32.totalorder %s9, 1
    %p40 = por %p38, %p39
    %p41 = scmp.ne.s32.totalorder %s33, %s36
    %p42 = scmp.eq.s32.totalorder %s9, 0
    %p43 = por %p41, %p42
    %p44 = scmp.ne.s32.totalorder %s33, %s36
    %p45 = scmp.eq.s32.totalorder %s14, 1
    %p46 = por %p44, %p45
    %p47 = scmp.ne.s32.totalorder %s36, %s37
    %p48 = scmp.eq.s32.totalorder %s14, 0
    %p49 = por %p47, %p48
    %p50 = scmp.ne.s32.totalorder %s36, %s37
    %p51 = scmp.eq.s32.totalorder %s15, 1
    %p52 = por %p50, %p51
    %p54 = scmp.ne.s32.totalorder %s37, %s53
    %p55 = scmp.eq.s32.totalorder %s15, 0
    %p56 = por %p54, %p55
    %s58 = sadd.s32 %s57, 1
    %p61 = scmp.eq.s32.totalorder %s9, 1
    %p62 = scmp.ne.s32.totalorder %s57, %s59
    %p63 = scmp.eq.s32.totalorder %s9, 0
    %p64 = por %p62, %p63
    %p65 = scmp.ne.s32.totalorder %s57, %s59
    %p66 = scmp.eq.s32.totalorder %s14, 1
    %p67 = por %p65, %p66
    %p68 = scmp.ne.s32.totalorder %s59, %s60
    %p69 = scmp.eq.s32.totalorder %s14, 0
    %p70 = por %p68, %p69
    %p71 = scmp.ne.s32.totalorder %s59, %s60
    %p72 = scmp.eq.s32.totalorder %s15, 1
    %p73 = por %p71, %p72
    %p75 = scmp.ne.s32.totalorder %s60, %s74
    %p76 = scmp.eq.s32.totalorder %s15, 0
    %p77 = por %p75, %p76
    %s79 = sadd.s32 %s78, 1
    %p82 = scmp.eq.s32.totalorder %s9, 1
    %p83 = scmp.ne.s32.totalorder %s78, %s80
    %p84 = scmp.eq.s32.totalorder %s9, 0
    %p85 = por %p83, %p84
    %p86 = scmp.ne.s32.totalorder %s78, %s80
    %p87 = scmp.eq.s32.totalorder %s14, 1
    %p88 = por %p86, %p87
    %p89 = scmp.ne.s32.totalorder %s80, %s81
    %p90 = scmp.eq.s32.totalorder %s14, 0
    %p91 = por %p89, %p90
    %p92 = scmp.ne.s32.totalorder %s80, %s81
    %p93 = scmp.eq.s32.totalorder %s15, 1
    %p94 = por %p92, %p93
    %p96 = scmp.ne.s32.totalorder %s81, %s95
    %p97 = scmp.eq.s32.totalorder %s15, 0
    %p98 = por %p96, %p97
    %s99 = ssub.s32 %s16, %s28
    %s100 = ssub.s32 %s17, %s24
    %s101 = sor.u32 %s99, %s100
    %p102 = scmp.eq.s32.totalorder %s101, 0
    %s104 = sadd.s32 %s103, 1
    %s105 = scalar_select %p102, %s103, %s104
    %p108 = pneg %p102
    %p109 = scmp.eq.s32.totalorder %s9, 1
    %p110 = por %p108, %p109
    %p111 = scmp.ne.s32.totalorder %s103, %s106
    %p112 = scmp.eq.s32.totalorder %s9, 0
    %p113 = por %p111, %p112
    %p114 = scmp.ne.s32.totalorder %s103, %s106
    %p115 = scmp.eq.s32.totalorder %s14, 1
    %p116 = por %p114, %p115
    %p117 = scmp.ne.s32.totalorder %s106, %s107
    %p118 = scmp.eq.s32.totalorder %s14, 0
    %p119 = por %p117, %p118
    %p120 = scmp.ne.s32.totalorder %s106, %s107
    %p121 = scmp.eq.s32.totalorder %s15, 1
    %p122 = por %p120, %p121
    %p124 = scmp.ne.s32.totalorder %s107, %s123
    %p125 = scmp.eq.s32.totalorder %s15, 0
    %p126 = por %p124, %p125
    %p127 = scmp.le.s32.totalorder 1, %s9
    %p128 = scmp.lt.s32.totalorder %s9, 3
    %p129 = pnand %p127, %p128
    %p130 = pneg %p129
    // Predicated region
    $region9: #{_lambda_.6} parent=5 // pred_check
      _
    $region10: #{_lambda_.6} parent=5 // pred_check_branch
      %132 = sbr.rel (%p129) target = $region12
    $region11: #{_lambda_.6} parent=5 // pred_region
      %s133 = ssub.s32 %s9, 1
      // Predicated region
      $region13: #{_lambda_.6} parent=11 // pred_check
        %p134 = pneg %p70
      $region14: #{_lambda_.6} parent=11 // pred_check_branch
        %136 = sbr.rel (%p134) target = $region16
      $region15: #{_lambda_.6} parent=11 // pred_region
        _
      $region16: #{_lambda_.6} parent=11 // pred_fallthru
        _
      // Predicated region
      $region17: #{_lambda_.6} parent=11 // pred_check
        %p137 = pneg %p91
      $region18: #{_lambda_.6} parent=11 // pred_check_branch
        %139 = sbr.rel (%p137) target = $region20
      $region19: #{_lambda_.6} parent=11 // pred_region
        _
      $region20: #{_lambda_.6} parent=11 // pred_fallthru
        _
    $region12: #{_lambda_.6} parent=5 // pred_fallthru
      _
    %p140 = scmp.lt.s32.totalorder %s9, 2
    // Predicated region
    $region21: #{_lambda_.6} parent=5 // pred_check
      %p141 = pneg %p140
    $region22: #{_lambda_.6} parent=5 // pred_check_branch
      %143 = sbr.rel (%p141) target = $region24
    $region23: #{_lambda_.6} parent=5 // pred_region
      // Predicated region
      $region25: #{_lambda_.6} parent=23 // pred_check
        %p144 = pneg %p43
      $region26: #{_lambda_.6} parent=23 // pred_check_branch
        %146 = sbr.rel (%p144) target = $region28
      $region27: #{_lambda_.6} parent=23 // pred_region
        %s147 = smul.u32 2, %s17
        %p148 = scmp.lt.s32.totalorder %s16, 1
        %s149 = scalar_select %p148, %s16, 1
        %p150 = scmp.lt.s32.totalorder %s147, 1
        %s151 = scalar_select %p150, %s147, 1
        %s152 = smul.addr %s149, 4
        %s153 = sadd.s32 %s151, %s152
        %s154 = smul.addr %s153, 8
        %s155 = scalar_lea.vmem %s0, %s154
        %s156 = smul.u32 2, %s17
      $region28: #{_lambda_.6} parent=23 // pred_fallthru
        _
    $region24: #{_lambda_.6} parent=5 // pred_fallthru
      _
    %p157 = scmp.le.s32.totalorder 1, %s9
    %p158 = scmp.lt.s32.totalorder %s9, 3
    %p159 = pnand %p157, %p158
    %p160 = pneg %p159
    // Predicated region
    $region29: #{_lambda_.6} parent=5 // pred_check
      _
    $region30: #{_lambda_.6} parent=5 // pred_check_branch
      %162 = sbr.rel (%p159) target = $region32
    $region31: #{_lambda_.6} parent=5 // pred_region
      %s163 = ssub.s32 %s9, 1
      %s164 = smul.u32 2, %s19
      %p165 = scmp.lt.s32.totalorder %s18, 1
      %s166 = scalar_select %p165, %s18, 1
      %p167 = scmp.lt.s32.totalorder %s164, 1
      %s168 = scalar_select %p167, %s164, 1
      %s169 = smul.addr %s166, 4
      %s170 = sadd.s32 %s168, %s169
      %s171 = smul.addr %s170, 8
      %s172 = scalar_lea.vmem %s0, %s171
      %p173 = pneg %p49
      %p174 = pneg %p46
      %p175 = pneg %p70
      %p176 = pneg %p67
      %p177 = pneg %p91
      %p178 = pneg %p88
      %p179 = pneg %p119
      %p180 = pneg %p116
      %s181 = smul.u32 2, %s19
      %p182 = scmp.lt.s32.totalorder %s18, 1
      %s183 = scalar_select %p182, %s18, 1
      %p184 = scmp.lt.s32.totalorder %s181, 1
      %s185 = scalar_select %p184, %s181, 1
      %s186 = smul.addr %s183, 12
      %s187 = sadd.s32 %s185, %s186
      %s188 = smul.addr %s187, 4
      %s189 = scalar_lea.vmem %s3, %s188
      %s190 = smul.u32 2, %s19
      %p191 = scmp.lt.s32.totalorder %s18, 1
      %s192 = scalar_select %p191, %s18, 1
      %p193 = scmp.lt.s32.totalorder %s190, 1
      %s194 = scalar_select %p193, %s190, 1
      %s195 = smul.addr %s192, 4
      %s196 = sadd.s32 %s194, %s195
      %s197 = smul.addr %s196, 8
      %s198 = scalar_lea.vmem %s0, %s197
      %s199 = smul.u32 2, %s19
      %s200 = smul.u32 2, %s19
      %p201 = scmp.lt.s32.totalorder %s18, 1
      %s202 = scalar_select %p201, %s18, 1
      %p203 = scmp.lt.s32.totalorder %s200, 1
      %s204 = scalar_select %p203, %s200, 1
      %s205 = smul.addr %s202, 12
      %s206 = sadd.s32 %s204, %s205
      %s207 = smul.addr %s206, 4
      %s208 = scalar_lea.vmem %s3, %s207
      %s209 = smul.u32 2, %s19
      %v211 = vld [vmem:[%s198] sm:$0xff]
      %v212 = vld [vmem:[%s198 + $0x8] sm:$0xff]
      %v213 = vld [vmem:[%s198 + $0x10] sm:$0xff]
      %v214 = vld [vmem:[%s198 + $0x18] sm:$0xff]
      %v215 = vadd.f32 %v211, %v213
      %v216 = vrot.slane %v215, 4
      %v217 = vadd.f32 %v215, %v216
      %v218 = vrot.slane %v217, 2
      %v219 = vadd.f32 %v217, %v218
      %v220 = vrot.slane %v219, 1
      %v221 = vadd.f32 %v219, %v220
      %v222 = vadd.f32 %v212, %v214
      %v223 = vrot.slane %v222, 4
      %v224 = vadd.f32 %v222, %v223
      %v225 = vrot.slane %v224, 2
      %v226 = vadd.f32 %v224, %v225
      %v227 = vrot.slane %v226, 1
      %v228 = vadd.f32 %v226, %v227
      %v229 = vrcp.pop 16.0
      %v230 = vmul.f32 %v221, %v229
      %v231 = vmul.f32 %v228, %v229
      %v232 = vsub.f32 %v211, %v230
      %v233 = vsub.f32 %v212, %v231
      %v234 = vsub.f32 %v213, %v230
      %v235 = vsub.f32 %v214, %v231
      %v236 = vmul.f32 %v232, %v232
      %v237 = vmul.f32 %v233, %v233
      %v238 = vmul.f32 %v234, %v234
      %v239 = vmul.f32 %v235, %v235
      %v240 = vadd.f32 %v236, %v238
      %v241 = vrot.slane %v240, 4
      %v242 = vadd.f32 %v240, %v241
      %v243 = vrot.slane %v242, 2
      %v244 = vadd.f32 %v242, %v243
      %v245 = vrot.slane %v244, 1
      %v246 = vadd.f32 %v244, %v245
      %v247 = vadd.f32 %v237, %v239
      %v248 = vrot.slane %v247, 4
      %v249 = vadd.f32 %v247, %v248
      %v250 = vrot.slane %v249, 2
      %v251 = vadd.f32 %v249, %v250
      %v252 = vrot.slane %v251, 1
      %v253 = vadd.f32 %v251, %v252
      %v254 = vmul.f32 %v246, %v229
      %v255 = vmul.f32 %v253, %v229
      %v256 = vadd.f32 %v254, 1e-05
      %v257 = vadd.f32 %v255, 1e-05
      %v258 = vrsqrt.pop %v256
      %v259 = vrsqrt.pop %v257
      %v260 = vmul.f32 %v232, %v258
      %v261 = vmul.f32 %v233, %v259
      %v262 = vmul.f32 %v234, %v258
      %v263 = vmul.f32 %v235, %v259
      %v264 = vpack.c.bf16 %v262, %v260
      %v265 = vpack.c.bf16 %v263, %v261
      %v266 = vld [vmem:[%s1] sm:$0xf]
      %v267 = vld [vmem:[%s1 + $0x4] sm:$0xf]
      %v268 = vld [vmem:[%s1 + $0x8] sm:$0xf]
      %v269 = vld [vmem:[%s1 + $0xc] sm:$0xf]
      %v270 = vld [vmem:[%s1 + $0x10] sm:$0xf]
      %v271 = vld [vmem:[%s1 + $0x14] sm:$0xf]
      %v272 = vld [vmem:[%s2] sm:$0xff]
      %v273 = vld [vmem:[%s2 + $0x8] sm:$0xff]
      %v274 = vld [vmem:[%s2 + $0x10] sm:$0xff]
      %v275 = vld [vmem:[%s2 + $0x18] sm:$0xff]
      %v276 = vld [vmem:[%s2 + $0x20] sm:$0xff]
      %v277 = vld [vmem:[%s2 + $0x28] sm:$0xff]
      %279 = vset.pattern.permute.xlu0 0
      %280 = vperm.xlu0 %279, %v272
      %v281 = vpop.permute.xlu0 %280
      %284 = vset.pattern.permute.xlu0 0
      %285 = vperm.xlu0 %284, %v273
      %v286 = vpop.permute.xlu0 %285
      %289 = vset.pattern.permute.xlu0 0
      %290 = vperm.xlu0 %289, %v274
      %v291 = vpop.permute.xlu0 %290
      %294 = vset.pattern.permute.xlu0 0
      %295 = vperm.xlu0 %294, %v275
      %v296 = vpop.permute.xlu0 %295
      %299 = vset.pattern.permute.xlu0 0
      %300 = vperm.xlu0 %299, %v276
      %v301 = vpop.permute.xlu0 %300
      %304 = vset.pattern.permute.xlu0 0
      %305 = vperm.xlu0 %304, %v277
      %v306 = vpop.permute.xlu0 %305
      %v314 = vunpack.c.l.b16 %v266
      %v315 = vunpack.c.l.b16 %v267
      %v316 = vunpack.c.l.b16 %v268
      %v317 = vunpack.c.l.b16 %v269
      %v318 = vunpack.c.l.b16 %v270
      %v319 = vunpack.c.l.b16 %v271
      %v320 = vpack.c.b16 %v315, %v314
      %v321 = vpack.c.b16 %v317, %v316
      %v322 = vpack.c.b16 %v319, %v318
      %vm323 = vcmask 130048
      %v325 = vsel %vm323, %v320, 0
      %v328 = vsel %vm323, %v321, 0
      %v331 = vsel %vm323, %v322, 0
      %333 = vmatprep.subr.bf16.mxu0 %v265
      %334 = vmatpush1.bf16.msra.mxu0 %v264
      %335 = vmatprep.subr.bf16.mxu0 0
      %336 = vmatpush1.bf16.msra.mxu0 0
      %337 = vmatprep.subr.bf16.mxu0 0
      %338 = vmatpush1.bf16.msra.mxu0 0
      %339 = vmatprep.subr.bf16.mxu0 0
      %340 = vmatpush1.bf16.msra.mxu0 0
      %341 = vmatprep.subr.bf16.mxu0 0
      %342 = vmatpush1.bf16.msra.mxu0 0
      %343 = vmatprep.subr.bf16.mxu0 0
      %344 = vmatpush1.bf16.msra.mxu0 0
      %345 = vmatprep.subr.bf16.mxu0 0
      %346 = vmatpush1.bf16.msra.mxu0 0
      %347 = vmatprep.subr.bf16.mxu0 0
      %348 = vmatpush1.bf16.msra.mxu0 0
      %349 = vmatprep.subr.bf16.mxu0 0
      %350 = vmatpush1.bf16.msra.mxu0 0
      %351 = vmatprep.subr.bf16.mxu0 0
      %352 = vmatpush1.bf16.msra.mxu0 0
      %353 = vmatprep.subr.bf16.mxu0 0
      %354 = vmatpush1.bf16.msra.mxu0 0
      %355 = vmatprep.subr.bf16.mxu0 0
      %356 = vmatpush1.bf16.msra.mxu0 0
      %357 = vmatprep.subr.bf16.mxu0 0
      %358 = vmatpush1.bf16.msra.mxu0 0
      %359 = vmatprep.subr.bf16.mxu0 0
      %360 = vmatpush1.bf16.msra.mxu0 0
      %361 = vmatprep.subr.bf16.mxu0 0
      %362 = vmatpush1.bf16.msra.mxu0 0
      %363 = vmatprep.subr.bf16.mxu0 0
      %364 = vmatpush1.bf16.msra.mxu0 0
      %365 = vmatprep.mubr.bf16.mxu0 0
      %366 = vmatmul.mubr.bf16.gmra.mrb[0].mxu0 %v325
      %v367 = vpop.f32.mrb[0].mxu0
      %v368 = vadd.f32 %v281, %v367
      %v369 = vpop.f32.mrb[0].mxu0
      %v370 = vadd.f32 %v281, %v369
      %v371 = vpop.f32.mrb[0].mxu0
      %v372 = vadd.f32 %v286, %v371
      %v373 = vpop.f32.mrb[0].mxu0
      %v374 = vadd.f32 %v286, %v373
      %375 = vmatprep.mubr.bf16.mxu0 0
      %376 = vmatmul.mubr.bf16.gmra.mrb[0].mxu0 %v328
      %v377 = vpop.f32.mrb[0].mxu0
      %v378 = vadd.f32 %v291, %v377
      %v379 = vpop.f32.mrb[0].mxu0
      %v380 = vadd.f32 %v291, %v379
      %v381 = vpop.f32.mrb[0].mxu0
      %v382 = vadd.f32 %v296, %v381
      %v383 = vpop.f32.mrb[0].mxu0
      %v384 = vadd.f32 %v296, %v383
      %385 = vmatprep.mubr.bf16.mxu0 0
      %386 = vmatmul.mubr.bf16.gmra.mrb[0].mxu0 %v331
      %v387 = vpop.f32.mrb[0].mxu0
      %v388 = vadd.f32 %v301, %v387
      %v389 = vpop.f32.mrb[0].mxu0
      %v390 = vadd.f32 %v301, %v389
      %v391 = vpop.f32.mrb[0].mxu0
      %v392 = vadd.f32 %v306, %v391
      %v393 = vpop.f32.mrb[0].mxu0
      %v394 = vadd.f32 %v306, %v393
      %395 = vdwg.mxu0
      %v396 = vpack.c.bf16 %v372, %v368
      %v397 = vpack.c.bf16 %v374, %v370
      %v398 = vpack.c.bf16 %v382, %v378
      %v399 = vpack.c.bf16 %v384, %v380
      %v400 = vpack.c.bf16 %v392, %v388
      %v401 = vpack.c.bf16 %v394, %v390
      %v408 = vunpack.c.l.b16 %v396
      %v409 = vunpack.c.l.b16 %v397
      %v410 = vunpack.c.h.b16 %v396
      %v411 = vunpack.c.h.b16 %v397
      %v412 = vunpack.c.l.b16 %v398
      %v413 = vunpack.c.l.b16 %v399
      %v414 = vunpack.c.h.b16 %v398
      %v415 = vunpack.c.h.b16 %v399
      %v416 = vunpack.c.l.b16 %v400
      %v417 = vunpack.c.l.b16 %v401
      %v418 = vunpack.c.h.b16 %v400
      %v419 = vunpack.c.h.b16 %v401
      %v420 = vpack.c.b16 %v409, %v408
      %v421 = vpack.c.b16 %v411, %v410
      %v422 = vpack.c.b16 %v413, %v412
      %v423 = vpack.c.b16 %v415, %v414
      %v424 = vpack.c.b16 %v417, %v416
      %v425 = vpack.c.b16 %v419, %v418
      %432 = vst [vmem:[%s208] sm:$0xff] %v420
      %433 = vst [vmem:[%s208 + $0x8] sm:$0xff] %v421
      %434 = vst [vmem:[%s208 + $0x10] sm:$0xff] %v422
      %435 = vst [vmem:[%s208 + $0x18] sm:$0xff] %v423
      %436 = vst [vmem:[%s208 + $0x20] sm:$0xff] %v424
      %437 = vst [vmem:[%s208 + $0x28] sm:$0xff] %v425
      %s438 = smul.u32 2, %s19
      %p439 = scmp.lt.s32.totalorder %s18, 1
      %s440 = scalar_select %p439, %s18, 1
      %p441 = scmp.lt.s32.totalorder %s438, 1
      %s442 = scalar_select %p441, %s438, 1
      %s443 = smul.addr %s440, 12
      %s444 = sadd.s32 %s442, %s443
      %s445 = smul.addr %s444, 4
      %s446 = scalar_lea.vmem %s3, %s445
      // Predicated region
      $region33: #{_lambda_.6} parent=31 // pred_check
        %p447 = pneg %p116
      $region34: #{_lambda_.6} parent=31 // pred_check_branch
        %449 = sbr.rel (%p447) target = $region36
      $region35: #{_lambda_.6} parent=31 // pred_region
        %s450 = smul.u32 2, %s19
      $region36: #{_lambda_.6} parent=31 // pred_fallthru
        _
    $region32: #{_lambda_.6} parent=5 // pred_fallthru
      _
    %p451 = scmp.le.s32.totalorder 2, %s9
    // Predicated region
    $region37: #{_lambda_.6} parent=5 // pred_check
      %p452 = pneg %p451
    $region38: #{_lambda_.6} parent=5 // pred_check_branch
      %454 = sbr.rel (%p452) target = $region40
    $region39: #{_lambda_.6} parent=5 // pred_region
      %s455 = ssub.s32 %s9, 2
      // Predicated region
      $region41: #{_lambda_.6} parent=39 // pred_check
        %p456 = pneg %p122
      $region42: #{_lambda_.6} parent=39 // pred_check_branch
        %458 = sbr.rel (%p456) target = $region44
      $region43: #{_lambda_.6} parent=39 // pred_region
        %s459 = smul.u32 2, %s21
        %p460 = scmp.lt.s32.totalorder %s20, 1
        %s461 = scalar_select %p460, %s20, 1
        %p462 = scmp.lt.s32.totalorder %s459, 1
        %s463 = scalar_select %p462, %s459, 1
        %s464 = smul.addr %s461, 12
        %s465 = sadd.s32 %s463, %s464
        %s466 = smul.addr %s465, 4
        %s467 = scalar_lea.vmem %s3, %s466
      $region44: #{_lambda_.6} parent=39 // pred_fallthru
        _
    $region40: #{_lambda_.6} parent=5 // pred_fallthru
      _
  $region6: #{_lambda_.6} parent=0 // loop_footer
    %s13 = sadd.s32 1, %s9
  $region7: #{_lambda_.6} parent=0 // loop_footer_branch
    %8 = sbr.rel target = $region3
  $region8: #{_lambda_.6} parent=0 // loop_exit
    _

// kernel: _lambda_.7
$region0: #{_lambda_.7}
  #allocation0 [shape = 'u32[]', space=smem, size = 0x4, offset = 0x4, fixed_abs, tag = 'smem constant byte address 0x4 - core index']
  #allocation1 [shape = 'u32[144,128]{1,0:T(1,128)}', space=vmem, size = 0x12000, scoped, tag = 'internal scratch']
  %s0 = inlined_call_operand.vmem [shape: bf16[2,48,256], index: 0, kind: input, shape index: {}]
  %s1 = inlined_call_operand.vmem [shape: f32[48,9], index: 1, kind: input, shape index: {}]
  %s2 = inlined_call_operand.vmem [shape: f32[48,1], index: 2, kind: input, shape index: {}]
  %s3 = inlined_call_operand.vmem [shape: bf16[2,48,256], index: 3, kind: output, shape index: {}]
  %s4 = sld [smem:[#allocation0]]
  $region45: #{_lambda_.7} parent=0
    _
  %s6 = ssub.s32 1, %s4
  %s7 = scalar_select 0, %s6, %s4
  loop: start=0, step=1, limit=6
  $region2: #{_lambda_.7} parent=0 // loop_pre_header
    _
  $region3: #{_lambda_.7} parent=0 // loop_header
    %s9 = sphi 0, %s13
    %p10 = scmp.ge.s32.totalorder %s9, 6
    %s16 = sphi 0, %s28
    %s17 = sphi 0, %s24
    %s18 = sphi 0, %s16
    %s19 = sphi 0, %s17
    %s20 = sphi 0, %s18
    %s21 = sphi 0, %s19
    %s33 = sphi 0, %s35
    %s36 = sphi 0, %s33
    %s37 = sphi 0, %s36
    %s53 = sphi 0, %s37
    %s59 = sphi 0, %s61
    %s62 = sphi 0, %s59
    %s63 = sphi 0, %s62
    %s79 = sphi 0, %s63
    %s85 = sphi 0, %s87
    %s88 = sphi 0, %s85
    %s89 = sphi 0, %s88
    %s105 = sphi 0, %s89
    %s113 = sphi 0, %s115
    %s116 = sphi 0, %s113
    %s117 = sphi 0, %s116
    %s133 = sphi 0, %s117
  $region4: #{_lambda_.7} parent=0 // loop_header_branch
    %12 = sbr.rel (%p10) target = $region8
  $region5: #{_lambda_.7} parent=0 // loop_body
    %s14 = ssub.s32 %s9, 1
    %s15 = ssub.s32 %s9, 2
    %s22 = sadd.s32 1, %s17
    %p23 = scmp.ge.s32.totalorder %s22, 2
    %s24 = scalar_select %p23, 0, %s22
    %s25 = sadd.s32 1, %s16
    %s26 = scalar_select %p23, %s25, %s16
    %p27 = scmp.ge.s32.totalorder %s26, 2
    %s28 = scalar_select %p27, 0, %s26
    %s29 = ssub.s32 %s16, %s28
    %s30 = ssub.s32 %s17, %s24
    %s31 = sor.u32 %s29, %s30
    %p32 = scmp.eq.s32.totalorder %s31, 0
    %s34 = sadd.s32 %s33, 1
    %s35 = scalar_select %p32, %s33, %s34
    %p38 = pneg %p32
    %p39 = scmp.eq.s32.totalorder %s9, 3
    %p40 = por %p38, %p39
    %p41 = scmp.ne.s32.totalorder %s33, %s36
    %p42 = scmp.eq.s32.totalorder %s9, 0
    %p43 = por %p41, %p42
    %p44 = scmp.ne.s32.totalorder %s33, %s36
    %p45 = scmp.eq.s32.totalorder %s14, 3
    %p46 = por %p44, %p45
    %p47 = scmp.ne.s32.totalorder %s36, %s37
    %p48 = scmp.eq.s32.totalorder %s14, 0
    %p49 = por %p47, %p48
    %p50 = scmp.ne.s32.totalorder %s36, %s37
    %p51 = scmp.eq.s32.totalorder %s15, 3
    %p52 = por %p50, %p51
    %p54 = scmp.ne.s32.totalorder %s37, %s53
    %p55 = scmp.eq.s32.totalorder %s15, 0
    %p56 = por %p54, %p55
    %s57 = ssub.s32 %s17, %s24
    %p58 = scmp.eq.s32.totalorder %s57, 0
    %s60 = sadd.s32 %s59, 1
    %s61 = scalar_select %p58, %s59, %s60
    %p64 = pneg %p58
    %p65 = scmp.eq.s32.totalorder %s9, 3
    %p66 = por %p64, %p65
    %p67 = scmp.ne.s32.totalorder %s59, %s62
    %p68 = scmp.eq.s32.totalorder %s9, 0
    %p69 = por %p67, %p68
    %p70 = scmp.ne.s32.totalorder %s59, %s62
    %p71 = scmp.eq.s32.totalorder %s14, 3
    %p72 = por %p70, %p71
    %p73 = scmp.ne.s32.totalorder %s62, %s63
    %p74 = scmp.eq.s32.totalorder %s14, 0
    %p75 = por %p73, %p74
    %p76 = scmp.ne.s32.totalorder %s62, %s63
    %p77 = scmp.eq.s32.totalorder %s15, 3
    %p78 = por %p76, %p77
    %p80 = scmp.ne.s32.totalorder %s63, %s79
    %p81 = scmp.eq.s32.totalorder %s15, 0
    %p82 = por %p80, %p81
    %s83 = ssub.s32 %s17, %s24
    %p84 = scmp.eq.s32.totalorder %s83, 0
    %s86 = sadd.s32 %s85, 1
    %s87 = scalar_select %p84, %s85, %s86
    %p90 = pneg %p84
    %p91 = scmp.eq.s32.totalorder %s9, 3
    %p92 = por %p90, %p91
    %p93 = scmp.ne.s32.totalorder %s85, %s88
    %p94 = scmp.eq.s32.totalorder %s9, 0
    %p95 = por %p93, %p94
    %p96 = scmp.ne.s32.totalorder %s85, %s88
    %p97 = scmp.eq.s32.totalorder %s14, 3
    %p98 = por %p96, %p97
    %p99 = scmp.ne.s32.totalorder %s88, %s89
    %p100 = scmp.eq.s32.totalorder %s14, 0
    %p101 = por %p99, %p100
    %p102 = scmp.ne.s32.totalorder %s88, %s89
    %p103 = scmp.eq.s32.totalorder %s15, 3
    %p104 = por %p102, %p103
    %p106 = scmp.ne.s32.totalorder %s89, %s105
    %p107 = scmp.eq.s32.totalorder %s15, 0
    %p108 = por %p106, %p107
    %s109 = ssub.s32 %s16, %s28
    %s110 = ssub.s32 %s17, %s24
    %s111 = sor.u32 %s109, %s110
    %p112 = scmp.eq.s32.totalorder %s111, 0
    %s114 = sadd.s32 %s113, 1
    %s115 = scalar_select %p112, %s113, %s114
    %p118 = pneg %p112
    %p119 = scmp.eq.s32.totalorder %s9, 3
    %p120 = por %p118, %p119
    %p121 = scmp.ne.s32.totalorder %s113, %s116
    %p122 = scmp.eq.s32.totalorder %s9, 0
    %p123 = por %p121, %p122
    %p124 = scmp.ne.s32.totalorder %s113, %s116
    %p125 = scmp.eq.s32.totalorder %s14, 3
    %p126 = por %p124, %p125
    %p127 = scmp.ne.s32.totalorder %s116, %s117
    %p128 = scmp.eq.s32.totalorder %s14, 0
    %p129 = por %p127, %p128
    %p130 = scmp.ne.s32.totalorder %s116, %s117
    %p131 = scmp.eq.s32.totalorder %s15, 3
    %p132 = por %p130, %p131
    %p134 = scmp.ne.s32.totalorder %s117, %s133
    %p135 = scmp.eq.s32.totalorder %s15, 0
    %p136 = por %p134, %p135
    %p137 = scmp.le.s32.totalorder 1, %s9
    %p138 = scmp.lt.s32.totalorder %s9, 5
    %p139 = pnand %p137, %p138
    %p140 = pneg %p139
    // Predicated region
    $region9: #{_lambda_.7} parent=5 // pred_check
      _
    $region10: #{_lambda_.7} parent=5 // pred_check_branch
      %142 = sbr.rel (%p139) target = $region12
    $region11: #{_lambda_.7} parent=5 // pred_region
      %s143 = ssub.s32 %s9, 1
    $region12: #{_lambda_.7} parent=5 // pred_fallthru
      _
    %p144 = scmp.lt.s32.totalorder %s9, 4
    // Predicated region
    $region13: #{_lambda_.7} parent=5 // pred_check
      %p145 = pneg %p144
    $region14: #{_lambda_.7} parent=5 // pred_check_branch
      %147 = sbr.rel (%p145) target = $region16
    $region15: #{_lambda_.7} parent=5 // pred_region
      // Predicated region
      $region17: #{_lambda_.7} parent=15 // pred_check
        %p148 = pneg %p43
      $region18: #{_lambda_.7} parent=15 // pred_check_branch
        %150 = sbr.rel (%p148) target = $region20
      $region19: #{_lambda_.7} parent=15 // pred_region
        %s151 = smul.u32 3, %s17
        %p152 = scmp.lt.s32.totalorder %s16, 1
        %s153 = scalar_select %p152, %s16, 1
        %p154 = scmp.lt.s32.totalorder %s151, 5
        %s155 = scalar_select %p154, %s151, 5
        %s156 = smul.addr %s155, 2
        %s157 = smul.addr %s153, 12
        %s158 = sadd.s32 %s156, %s157
        %s159 = smul.addr %s158, 4
        %s160 = scalar_lea.vmem %s0, %s159
        %s161 = smul.u32 3, %s17
      $region20: #{_lambda_.7} parent=15 // pred_fallthru
        _
      // Predicated region
      $region21: #{_lambda_.7} parent=15 // pred_check
        %p162 = pneg %p69
      $region22: #{_lambda_.7} parent=15 // pred_check_branch
        %164 = sbr.rel (%p162) target = $region24
      $region23: #{_lambda_.7} parent=15 // pred_region
        %s165 = smul.u32 3, %s17
        %p166 = scmp.lt.s32.totalorder %s165, 5
        %s167 = scalar_select %p166, %s165, 5
        %s168 = smul.addr %s167, 8
        %s169 = scalar_lea.vmem %s1, %s168
        %s170 = smul.u32 3, %s17
      $region24: #{_lambda_.7} parent=15 // pred_fallthru
        _
      // Predicated region
      $region25: #{_lambda_.7} parent=15 // pred_check
        %p171 = pneg %p95
      $region26: #{_lambda_.7} parent=15 // pred_check_branch
        %173 = sbr.rel (%p171) target = $region28
      $region27: #{_lambda_.7} parent=15 // pred_region
        %s174 = smul.u32 3, %s17
        %p175 = scmp.lt.s32.totalorder %s174, 5
        %s176 = scalar_select %p175, %s174, 5
        %s177 = smul.addr %s176, 8
        %s178 = scalar_lea.vmem %s2, %s177
        %s179 = smul.u32 3, %s17
      $region28: #{_lambda_.7} parent=15 // pred_fallthru
        _
    $region16: #{_lambda_.7} parent=5 // pred_fallthru
      _
    %p180 = scmp.le.s32.totalorder 1, %s9
    %p181 = scmp.lt.s32.totalorder %s9, 5
    %p182 = pnand %p180, %p181
    %p183 = pneg %p182
    // Predicated region
    $region29: #{_lambda_.7} parent=5 // pred_check
      _
    $region30: #{_lambda_.7} parent=5 // pred_check_branch
      %185 = sbr.rel (%p182) target = $region32
    $region31: #{_lambda_.7} parent=5 // pred_region
      %s186 = ssub.s32 %s9, 1
      %s187 = smul.u32 3, %s19
      %p188 = scmp.lt.s32.totalorder %s18, 1
      %s189 = scalar_select %p188, %s18, 1
      %p190 = scmp.lt.s32.totalorder %s187, 5
      %s191 = scalar_select %p190, %s187, 5
      %s192 = smul.addr %s191, 2
      %s193 = smul.addr %s189, 12
      %s194 = sadd.s32 %s192, %s193
      %s195 = smul.addr %s194, 4
      %s196 = scalar_lea.vmem %s0, %s195
      %p197 = pneg %p49
      %p198 = pneg %p46
      %s199 = smul.u32 3, %s19
      %p200 = scmp.lt.s32.totalorder %s199, 5
      %s201 = scalar_select %p200, %s199, 5
      %s202 = smul.addr %s201, 8
      %s203 = scalar_lea.vmem %s1, %s202
      %p204 = pneg %p75
      %p205 = pneg %p72
      %s206 = smul.u32 3, %s19
      %p207 = scmp.lt.s32.totalorder %s206, 5
      %s208 = scalar_select %p207, %s206, 5
      %s209 = smul.addr %s208, 8
      %s210 = scalar_lea.vmem %s2, %s209
      %p211 = pneg %p101
      %p212 = pneg %p98
      %p213 = pneg %p129
      %p214 = pneg %p126
      %s215 = smul.u32 3, %s19
      %p216 = scmp.lt.s32.totalorder %s18, 1
      %s217 = scalar_select %p216, %s18, 1
      %p218 = scmp.lt.s32.totalorder %s215, 5
      %s219 = scalar_select %p218, %s215, 5
      %s220 = smul.addr %s219, 2
      %s221 = smul.addr %s217, 12
      %s222 = sadd.s32 %s220, %s221
      %s223 = smul.addr %s222, 4
      %s224 = scalar_lea.vmem %s3, %s223
      %s225 = smul.u32 3, %s19
      %p226 = scmp.lt.s32.totalorder %s18, 1
      %s227 = scalar_select %p226, %s18, 1
      %p228 = scmp.lt.s32.totalorder %s225, 5
      %s229 = scalar_select %p228, %s225, 5
      %s230 = smul.addr %s229, 2
      %s231 = smul.addr %s227, 12
      %s232 = sadd.s32 %s230, %s231
      %s233 = smul.addr %s232, 4
      %s234 = scalar_lea.vmem %s0, %s233
      %s235 = smul.u32 3, %s19
      %s236 = smul.u32 3, %s19
      %p237 = scmp.lt.s32.totalorder %s236, 5
      %s238 = scalar_select %p237, %s236, 5
      %s239 = smul.addr %s238, 8
      %s240 = scalar_lea.vmem %s1, %s239
      %s241 = smul.u32 3, %s19
      %s242 = smul.u32 3, %s19
      %p243 = scmp.lt.s32.totalorder %s242, 5
      %s244 = scalar_select %p243, %s242, 5
      %s245 = smul.addr %s244, 8
      %s246 = scalar_lea.vmem %s2, %s245
      %s247 = smul.u32 3, %s19
      %s248 = smul.u32 3, %s19
      %p249 = scmp.lt.s32.totalorder %s18, 1
      %s250 = scalar_select %p249, %s18, 1
      %p251 = scmp.lt.s32.totalorder %s248, 5
      %s252 = scalar_select %p251, %s248, 5
      %s253 = smul.addr %s252, 2
      %s254 = smul.addr %s250, 12
      %s255 = sadd.s32 %s253, %s254
      %s256 = smul.addr %s255, 4
      %s257 = scalar_lea.vmem %s3, %s256
      %s258 = smul.u32 3, %s19
      %v259 = vld [vmem:[%s234] sm:$0xff]
      %v260 = vld [vmem:[%s234 + $0x8] sm:$0xff]
      %v261 = vld [vmem:[%s234 + $0x10] sm:$0xff]
      %v262 = vunpack.c.l.bf16 %v259
      %v263 = vunpack.c.h.bf16 %v259
      %v264 = vunpack.c.l.bf16 %v260
      %v265 = vunpack.c.h.bf16 %v260
      %v266 = vunpack.c.l.bf16 %v261
      %v267 = vunpack.c.h.bf16 %v261
      %v268 = vlaneseq
      %v269 = vand.u32 %v268, 127
      %v270 = vadd.s32 %v269, 128
      %vm271 = vcmp.lt.s32.totalorder %v269, 0
      %v272 = vsub.s32 0, %v269
      %v273 = vsel %vm271, %v272, %v269
      %v274 = vshrl.u32 %v273, 4
      %v275 = vand.u32 %v273, 15
      %v276 = vsub.s32 0, %v275
      %v277 = vsel %vm271, %v276, %v275
      %vm278 = vcmp.lt.s32.totalorder %v270, 0
      %v279 = vsub.s32 0, %v270
      %v280 = vsel %vm278, %v279, %v270
      %v281 = vshrl.u32 %v280, 4
      %v282 = vand.u32 %v280, 15
      %v283 = vsub.s32 0, %v282
      %v284 = vsel %vm278, %v283, %v282
      %vm285 = vcmp.ne.s32.totalorder %v277, 0
      %vm286 = vcmp.ne.s32.totalorder %v284, 0
      %vm287 = vcmp.lt.s32.totalorder %v277, 0
      %vm288 = vcmp.lt.s32.totalorder %v284, 0
      %vm289 = vmand %vm287, %vm285
      %vm290 = vmand %vm288, %vm286
      %v291 = vadd.s32 %v277, 16
      %v292 = vadd.s32 %v284, 16
      %v293 = vsel %vm289, %v291, %v277
      %v294 = vsel %vm290, %v292, %v284
      %vm295 = vcmp.ne.s32.totalorder %v293, 0
      %vm296 = vcmp.ne.s32.totalorder %v294, 0
      %297 = vrot.lane.b32.xlu0 %v262, 1
      %v298 = vpop.permute.xlu0 %297
      %299 = vrot.lane.b32.xlu0 %v264, 1
      %v300 = vpop.permute.xlu0 %299
      %301 = vrot.lane.b32.xlu0 %v266, 1
      %v302 = vpop.permute.xlu0 %301
      %303 = vrot.lane.b32.xlu0 %v263, 1
      %v304 = vpop.permute.xlu0 %303
      %305 = vrot.lane.b32.xlu0 %v265, 1
      %v306 = vpop.permute.xlu0 %305
      %307 = vrot.lane.b32.xlu0 %v267, 1
      %v308 = vpop.permute.xlu0 %307
      %vm309 = vcmp.lt.s32.totalorder %v269, 1
      %v310 = vsel %vm309, %v298, %v304
      %v311 = vsel %vm309, %v300, %v306
      %v312 = vsel %vm309, %v302, %v308
      %v313 = vsel %vm309, %v304, %v298
      %v314 = vsel %vm309, %v306, %v300
      %v315 = vsel %vm309, %v308, %v302
      %v316 = vsel %vm295, 1, 0
      %v317 = vsel %vm296, 1, 0
      %vm318 = vcmp.eq.s32.totalorder %v316, 1
      %vm319 = vcmp.eq.s32.totalorder %v317, 1
      %v320 = vsel %vm318, %v313, 0.0
      %v321 = vsel %vm319, %v310, 0.0
      %v322 = vsel %vm318, %v314, 0.0
      %v323 = vsel %vm319, %v311, 0.0
      %v324 = vsel %vm318, %v315, 0.0
      %v325 = vsel %vm319, %v312, 0.0
      %vm326 = vcmp.ne.s32.totalorder %v293, 15
      %vm327 = vcmp.ne.s32.totalorder %v294, 15
      %328 = vrot.lane.b32.xlu0 %v262, 127
      %v329 = vpop.permute.xlu0 %328
      %330 = vrot.lane.b32.xlu0 %v264, 127
      %v331 = vpop.permute.xlu0 %330
      %332 = vrot.lane.b32.xlu0 %v266, 127
      %v333 = vpop.permute.xlu0 %332
      %334 = vrot.lane.b32.xlu0 %v263, 127
      %v335 = vpop.permute.xlu0 %334
      %336 = vrot.lane.b32.xlu0 %v265, 127
      %v337 = vpop.permute.xlu0 %336
      %338 = vrot.lane.b32.xlu0 %v267, 127
      %v339 = vpop.permute.xlu0 %338
      %vm340 = vcmp.lt.s32.totalorder %v269, 127
      %v341 = vsel %vm340, %v329, %v335
      %v342 = vsel %vm340, %v331, %v337
      %v343 = vsel %vm340, %v333, %v339
      %v344 = vsel %vm340, %v335, %v329
      %v345 = vsel %vm340, %v337, %v331
      %v346 = vsel %vm340, %v339, %v333
      %v347 = vsel %vm326, 1, 0
      %v348 = vsel %vm327, 1, 0
      %vm349 = vcmp.eq.s32.totalorder %v347, 1
      %vm350 = vcmp.eq.s32.totalorder %v348, 1
      %v351 = vsel %vm349, %v341, 0.0
      %v352 = vsel %vm350, %v344, 0.0
      %v353 = vsel %vm349, %v342, 0.0
      %v354 = vsel %vm350, %v345, 0.0
      %v355 = vsel %vm349, %v343, 0.0
      %v356 = vsel %vm350, %v346, 0.0
      %v357 = vld [vmem:[%s240] sm:$0xff]
      %v358 = vld [vmem:[%s240 + $0x8] sm:$0xff]
      %v359 = vld [vmem:[%s240 + $0x10] sm:$0xff]
      %361 = vset.pattern.permute.xlu0 3
      %362 = vperm.xlu0 %361, %v357
      %v363 = vpop.permute.xlu0 %362
      %366 = vset.pattern.permute.xlu0 3
      %367 = vperm.xlu0 %366, %v358
      %v368 = vpop.permute.xlu0 %367
      %371 = vset.pattern.permute.xlu0 3
      %372 = vperm.xlu0 %371, %v359
      %v373 = vpop.permute.xlu0 %372
      %v375 = vmul.f32 %v320, %v363
      %v376 = vmul.f32 %v321, %v363
      %v377 = vmul.f32 %v322, %v368
      %v378 = vmul.f32 %v323, %v368
      %v379 = vmul.f32 %v324, %v373
      %v380 = vmul.f32 %v325, %v373
      %381 = vset.pattern.permute.xlu0 4
      %382 = vperm.xlu0 %381, %v357
      %v383 = vpop.permute.xlu0 %382
      %385 = vset.pattern.permute.xlu0 4
      %386 = vperm.xlu0 %385, %v358
      %v387 = vpop.permute.xlu0 %386
      %389 = vset.pattern.permute.xlu0 4
      %390 = vperm.xlu0 %389, %v359
      %v391 = vpop.permute.xlu0 %390
      %v393 = vmul.f32 %v262, %v383
      %v394 = vmul.f32 %v263, %v383
      %v395 = vmul.f32 %v264, %v387
      %v396 = vmul.f32 %v265, %v387
      %v397 = vmul.f32 %v266, %v391
      %v398 = vmul.f32 %v267, %v391
      %v399 = vadd.f32 %v375, %v393
      %v400 = vadd.f32 %v376, %v394
      %v401 = vadd.f32 %v377, %v395
      %v402 = vadd.f32 %v378, %v396
      %v403 = vadd.f32 %v379, %v397
      %v404 = vadd.f32 %v380, %v398
      %405 = vset.pattern.permute.xlu0 5
      %406 = vperm.xlu0 %405, %v357
      %v407 = vpop.permute.xlu0 %406
      %409 = vset.pattern.permute.xlu0 5
      %410 = vperm.xlu0 %409, %v358
      %v411 = vpop.permute.xlu0 %410
      %413 = vset.pattern.permute.xlu0 5
      %414 = vperm.xlu0 %413, %v359
      %v415 = vpop.permute.xlu0 %414
      %v417 = vmul.f32 %v351, %v407
      %v418 = vmul.f32 %v352, %v407
      %v419 = vmul.f32 %v353, %v411
      %v420 = vmul.f32 %v354, %v411
      %v421 = vmul.f32 %v355, %v415
      %v422 = vmul.f32 %v356, %v415
      %v423 = vadd.f32 %v399, %v417
      %v424 = vadd.f32 %v400, %v418
      %v425 = vadd.f32 %v401, %v419
      %v426 = vadd.f32 %v402, %v420
      %v427 = vadd.f32 %v403, %v421
      %v428 = vadd.f32 %v404, %v422
      %vm429 = vcmp.ge.s32.totalorder %v269, 16
      %vm430 = vcmp.ge.s32.totalorder %v270, 16
      %431 = vset.pattern.permute.xlu0 0
      %432 = vperm.xlu0 %431, %v357
      %v433 = vpop.permute.xlu0 %432
      %435 = vset.pattern.permute.xlu0 0
      %436 = vperm.xlu0 %435, %v358
      %v437 = vpop.permute.xlu0 %436
      %439 = vset.pattern.permute.xlu0 0
      %440 = vperm.xlu0 %439, %v359
      %v441 = vpop.permute.xlu0 %440
      %v443 = vmul.f32 %v320, %v433
      %v444 = vmul.f32 %v321, %v433
      %v445 = vmul.f32 %v322, %v437
      %v446 = vmul.f32 %v323, %v437
      %v447 = vmul.f32 %v324, %v441
      %v448 = vmul.f32 %v325, %v441
      %449 = vset.pattern.permute.xlu0 1
      %450 = vperm.xlu0 %449, %v357
      %v451 = vpop.permute.xlu0 %450
      %453 = vset.pattern.permute.xlu0 1
      %454 = vperm.xlu0 %453, %v358
      %v455 = vpop.permute.xlu0 %454
      %457 = vset.pattern.permute.xlu0 1
      %458 = vperm.xlu0 %457, %v359
      %v459 = vpop.permute.xlu0 %458
      %v461 = vmul.f32 %v262, %v451
      %v462 = vmul.f32 %v263, %v451
      %v463 = vmul.f32 %v264, %v455
      %v464 = vmul.f32 %v265, %v455
      %v465 = vmul.f32 %v266, %v459
      %v466 = vmul.f32 %v267, %v459
      %v467 = vadd.f32 %v443, %v461
      %v468 = vadd.f32 %v444, %v462
      %v469 = vadd.f32 %v445, %v463
      %v470 = vadd.f32 %v446, %v464
      %v471 = vadd.f32 %v447, %v465
      %v472 = vadd.f32 %v448, %v466
      %473 = vset.pattern.permute.xlu0 2
      %474 = vperm.xlu0 %473, %v357
      %v475 = vpop.permute.xlu0 %474
      %477 = vset.pattern.permute.xlu0 2
      %478 = vperm.xlu0 %477, %v358
      %v479 = vpop.permute.xlu0 %478
      %481 = vset.pattern.permute.xlu0 2
      %482 = vperm.xlu0 %481, %v359
      %v483 = vpop.permute.xlu0 %482
      %v485 = vmul.f32 %v351, %v475
      %v486 = vmul.f32 %v352, %v475
      %v487 = vmul.f32 %v353, %v479
      %v488 = vmul.f32 %v354, %v479
      %v489 = vmul.f32 %v355, %v483
      %v490 = vmul.f32 %v356, %v483
      %v491 = vadd.f32 %v467, %v485
      %v492 = vadd.f32 %v468, %v486
      %v493 = vadd.f32 %v469, %v487
      %v494 = vadd.f32 %v470, %v488
      %v495 = vadd.f32 %v471, %v489
      %v496 = vadd.f32 %v472, %v490
      %497 = vrot.lane.b32.xlu0 %v491, 16
      %v498 = vpop.permute.xlu0 %497
      %499 = vrot.lane.b32.xlu0 %v493, 16
      %v500 = vpop.permute.xlu0 %499
      %501 = vrot.lane.b32.xlu0 %v495, 16
      %v502 = vpop.permute.xlu0 %501
      %503 = vrot.lane.b32.xlu0 %v492, 16
      %v504 = vpop.permute.xlu0 %503
      %505 = vrot.lane.b32.xlu0 %v494, 16
      %v506 = vpop.permute.xlu0 %505
      %507 = vrot.lane.b32.xlu0 %v496, 16
      %v508 = vpop.permute.xlu0 %507
      %vm509 = vcmp.lt.s32.totalorder %v269, 16
      %v510 = vsel %vm509, %v498, %v504
      %v511 = vsel %vm509, %v500, %v506
      %v512 = vsel %vm509, %v502, %v508
      %v513 = vsel %vm509, %v504, %v498
      %v514 = vsel %vm509, %v506, %v500
      %v515 = vsel %vm509, %v508, %v502
      %v516 = vsel %vm429, 1, 0
      %v517 = vsel %vm430, 1, 0
      %vm518 = vcmp.eq.s32.totalorder %v516, 1
      %vm519 = vcmp.eq.s32.totalorder %v517, 1
      %v520 = vsel %vm518, %v513, 0.0
      %v521 = vsel %vm519, %v510, 0.0
      %v522 = vsel %vm518, %v514, 0.0
      %v523 = vsel %vm519, %v511, 0.0
      %v524 = vsel %vm518, %v515, 0.0
      %v525 = vsel %vm519, %v512, 0.0
      %vm526 = vcmp.lt.s32.totalorder %v269, 240
      %vm527 = vcmp.lt.s32.totalorder %v270, 240
      %528 = vset.pattern.permute.xlu0 6
      %529 = vperm.xlu0 %528, %v357
      %v530 = vpop.permute.xlu0 %529
      %532 = vset.pattern.permute.xlu0 6
      %533 = vperm.xlu0 %532, %v358
      %v534 = vpop.permute.xlu0 %533
      %536 = vset.pattern.permute.xlu0 6
      %537 = vperm.xlu0 %536, %v359
      %v538 = vpop.permute.xlu0 %537
      %v540 = vmul.f32 %v320, %v530
      %v541 = vmul.f32 %v321, %v530
      %v542 = vmul.f32 %v322, %v534
      %v543 = vmul.f32 %v323, %v534
      %v544 = vmul.f32 %v324, %v538
      %v545 = vmul.f32 %v325, %v538
      %546 = vset.pattern.permute.xlu0 7
      %547 = vperm.xlu0 %546, %v357
      %v548 = vpop.permute.xlu0 %547
      %550 = vset.pattern.permute.xlu0 7
      %551 = vperm.xlu0 %550, %v358
      %v552 = vpop.permute.xlu0 %551
      %554 = vset.pattern.permute.xlu0 7
      %555 = vperm.xlu0 %554, %v359
      %v556 = vpop.permute.xlu0 %555
      %v558 = vmul.f32 %v262, %v548
      %v559 = vmul.f32 %v263, %v548
      %v560 = vmul.f32 %v264, %v552
      %v561 = vmul.f32 %v265, %v552
      %v562 = vmul.f32 %v266, %v556
      %v563 = vmul.f32 %v267, %v556
      %v564 = vadd.f32 %v540, %v558
      %v565 = vadd.f32 %v541, %v559
      %v566 = vadd.f32 %v542, %v560
      %v567 = vadd.f32 %v543, %v561
      %v568 = vadd.f32 %v544, %v562
      %v569 = vadd.f32 %v545, %v563
      %570 = vset.pattern.permute.xlu0 8
      %571 = vperm.xlu0 %570, %v357
      %v572 = vpop.permute.xlu0 %571
      %574 = vset.pattern.permute.xlu0 8
      %575 = vperm.xlu0 %574, %v358
      %v576 = vpop.permute.xlu0 %575
      %578 = vset.pattern.permute.xlu0 8
      %579 = vperm.xlu0 %578, %v359
      %v580 = vpop.permute.xlu0 %579
      %v582 = vmul.f32 %v351, %v572
      %v583 = vmul.f32 %v352, %v572
      %v584 = vmul.f32 %v353, %v576
      %v585 = vmul.f32 %v354, %v576
      %v586 = vmul.f32 %v355, %v580
      %v587 = vmul.f32 %v356, %v580
      %v588 = vadd.f32 %v564, %v582
      %v589 = vadd.f32 %v565, %v583
      %v590 = vadd.f32 %v566, %v584
      %v591 = vadd.f32 %v567, %v585
      %v592 = vadd.f32 %v568, %v586
      %v593 = vadd.f32 %v569, %v587
      %594 = vrot.lane.b32.xlu0 %v588, 112
      %v595 = vpop.permute.xlu0 %594
      %596 = vrot.lane.b32.xlu0 %v590, 112
      %v597 = vpop.permute.xlu0 %596
      %598 = vrot.lane.b32.xlu0 %v592, 112
      %v599 = vpop.permute.xlu0 %598
      %600 = vrot.lane.b32.xlu0 %v589, 112
      %v601 = vpop.permute.xlu0 %600
      %602 = vrot.lane.b32.xlu0 %v591, 112
      %v603 = vpop.permute.xlu0 %602
      %604 = vrot.lane.b32.xlu0 %v593, 112
      %v605 = vpop.permute.xlu0 %604
      %vm606 = vcmp.lt.s32.totalorder %v269, 112
      %v607 = vsel %vm606, %v595, %v601
      %v608 = vsel %vm606, %v597, %v603
      %v609 = vsel %vm606, %v599, %v605
      %v610 = vsel %vm606, %v601, %v595
      %v611 = vsel %vm606, %v603, %v597
      %v612 = vsel %vm606, %v605, %v599
      %v613 = vsel %vm526, 1, 0
      %v614 = vsel %vm527, 1, 0
      %vm615 = vcmp.eq.s32.totalorder %v613, 1
      %vm616 = vcmp.eq.s32.totalorder %v614, 1
      %v617 = vsel %vm615, %v607, 0.0
      %v618 = vsel %vm616, %v610, 0.0
      %v619 = vsel %vm615, %v608, 0.0
      %v620 = vsel %vm616, %v611, 0.0
      %v621 = vsel %vm615, %v609, 0.0
      %v622 = vsel %vm616, %v612, 0.0
      %v623 = vadd.f32 %v423, %v520
      %v624 = vadd.f32 %v424, %v521
      %v625 = vadd.f32 %v425, %v522
      %v626 = vadd.f32 %v426, %v523
      %v627 = vadd.f32 %v427, %v524
      %v628 = vadd.f32 %v428, %v525
      %v629 = vadd.f32 %v623, %v617
      %v630 = vadd.f32 %v624, %v618
      %v631 = vadd.f32 %v625, %v619
      %v632 = vadd.f32 %v626, %v620
      %v633 = vadd.f32 %v627, %v621
      %v634 = vadd.f32 %v628, %v622
      %v635 = vld [vmem:[%s246] sm:$0xff]
      %v636 = vld [vmem:[%s246 + $0x8] sm:$0xff]
      %v637 = vld [vmem:[%s246 + $0x10] sm:$0xff]
      %639 = vset.pattern.permute.xlu0 0
      %640 = vperm.xlu0 %639, %v635
      %v641 = vpop.permute.xlu0 %640
      %644 = vset.pattern.permute.xlu0 0
      %645 = vperm.xlu0 %644, %v636
      %v646 = vpop.permute.xlu0 %645
      %649 = vset.pattern.permute.xlu0 0
      %650 = vperm.xlu0 %649, %v637
      %v651 = vpop.permute.xlu0 %650
      %v653 = vadd.f32 %v629, %v641
      %v654 = vadd.f32 %v630, %v641
      %v655 = vadd.f32 %v631, %v646
      %v656 = vadd.f32 %v632, %v646
      %v657 = vadd.f32 %v633, %v651
      %v658 = vadd.f32 %v634, %v651
      %v659 = vpack.c.bf16 %v655, %v653
      %v660 = vpack.c.bf16 %v656, %v654
      %v661 = vpack.c.bf16 %v657, %v657
      %v662 = vpack.c.bf16 %v658, %v658
      %v667 = vunpack.c.l.b16 %v659
      %v668 = vunpack.c.l.b16 %v660
      %v669 = vunpack.c.h.b16 %v659
      %v670 = vunpack.c.h.b16 %v660
      %v671 = vunpack.c.l.b16 %v661
      %v672 = vunpack.c.l.b16 %v662
      %v673 = vpack.c.b16 %v668, %v667
      %v674 = vpack.c.b16 %v670, %v669
      %v675 = vpack.c.b16 %v672, %v671
      %679 = vst [vmem:[%s257] sm:$0xff] %v673
      %680 = vst [vmem:[%s257 + $0x8] sm:$0xff] %v674
      %681 = vst [vmem:[%s257 + $0x10] sm:$0xff] %v675
      %s682 = smul.u32 3, %s19
      %p683 = scmp.lt.s32.totalorder %s18, 1
      %s684 = scalar_select %p683, %s18, 1
      %p685 = scmp.lt.s32.totalorder %s682, 5
      %s686 = scalar_select %p685, %s682, 5
      %s687 = smul.addr %s686, 2
      %s688 = smul.addr %s684, 12
      %s689 = sadd.s32 %s687, %s688
      %s690 = smul.addr %s689, 4
      %s691 = scalar_lea.vmem %s3, %s690
      // Predicated region
      $region33: #{_lambda_.7} parent=31 // pred_check
        %p692 = pneg %p126
      $region34: #{_lambda_.7} parent=31 // pred_check_branch
        %694 = sbr.rel (%p692) target = $region36
      $region35: #{_lambda_.7} parent=31 // pred_region
        %s695 = smul.u32 3, %s19
      $region36: #{_lambda_.7} parent=31 // pred_fallthru
        _
    $region32: #{_lambda_.7} parent=5 // pred_fallthru
      _
    %p696 = scmp.le.s32.totalorder 2, %s9
    // Predicated region
    $region37: #{_lambda_.7} parent=5 // pred_check
      %p697 = pneg %p696
    $region38: #{_lambda_.7} parent=5 // pred_check_branch
      %699 = sbr.rel (%p697) target = $region40
    $region39: #{_lambda_.7} parent=5 // pred_region
      %s700 = ssub.s32 %s9, 2
      // Predicated region
      $region41: #{_lambda_.7} parent=39 // pred_check
        %p701 = pneg %p132
      $region42: #{_lambda_.7} parent=39 // pred_check_branch
        %703 = sbr.rel (%p701) target = $region44
      $region43: #{_lambda_.7} parent=39 // pred_region
        %s704 = smul.u32 3, %s21
        %p705 = scmp.lt.s32.totalorder %s20, 1
        %s706 = scalar_select %p705, %s20, 1
        %p707 = scmp.lt.s32.totalorder %s704, 5
        %s708 = scalar_select %p707, %s704, 5
        %s709 = smul.addr %s708, 2
        %s710 = smul.addr %s706, 12
        %s711 = sadd.s32 %s709, %s710
        %s712 = smul.addr %s711, 4
        %s713 = scalar_lea.vmem %s3, %s712
      $region44: #{_lambda_.7} parent=39 // pred_fallthru
        _
    $region40: #{_lambda_.7} parent=5 // pred_fallthru
      _
  $region6: #{_lambda_.7} parent=0 // loop_footer
    %s13 = sadd.s32 1, %s9
  $region7: #{_lambda_.7} parent=0 // loop_footer_branch
    %8 = sbr.rel target = $region3
  $region8: #{_lambda_.7} parent=0 // loop_exit
    _

// kernel: _lambda_.8
$region0: #{_lambda_.8}
  #allocation0 [shape = 'u32[]', space=smem, size = 0x4, offset = 0x4, fixed_abs, tag = 'smem constant byte address 0x4 - core index']
  #allocation1 [shape = 'u32[144,128]{1,0:T(1,128)}', space=vmem, size = 0x12000, scoped, tag = 'internal scratch']
  #allocation2 [shape = 'f32[16,256]{1,0:T(8,128)}', space=vmem, size = 0x4000, scoped, tag = 'scratch operand']
  %s0 = inlined_call_operand.vmem [shape: bf16[2,48,256], index: 0, kind: input, shape index: {}, may-alias: {0,1,2}]
  %s1 = inlined_call_operand.vmem [shape: bf16[2,48,256], index: 1, kind: input, shape index: {}, may-alias: {0,1,2}]
  %s2 = inlined_call_operand.vmem [shape: bf16[2,48,256], index: 2, kind: input, shape index: {}, may-alias: {0,1,2}]
  %s3 = inlined_call_operand.vmem [shape: bf16[2,16,8], index: 3, kind: input, shape index: {}]
  %s4 = inlined_call_operand.vmem [shape: f32[16,1], index: 4, kind: input, shape index: {}]
  %s5 = inlined_call_operand.vmem [shape: f32[2,16,256], index: 5, kind: input, shape index: {}]
  %s6 = inlined_call_operand.vmem [shape: f32[2], index: 6, kind: input, shape index: {}]
  %s7 = inlined_call_operand.vmem [shape: f32[2,16,256], index: 7, kind: output, shape index: {}]
  %s8 = sld [smem:[#allocation0]]
  $region73: #{_lambda_.8} parent=0
    _
  %s10 = ssub.s32 1, %s8
  %s11 = scalar_select 0, %s10, %s8
  $region1: #{_lambda_.8} parent=0
    #allocation3 [shape = 'u8[512]{0}', space=smem, size = 0x200, scoped, tag = 'input window, operand 6, single buffered']
    #allocation4 [shape = 's32[2]{0}', space=sflag, size = 0x8, scoped, tag = 'scoped memory for _lambda_.8']
    %12 = vsyncpa [#allocation4], 0
    loop: start=0, step=1, limit=6
    $region2: #{_lambda_.8} parent=1 // loop_pre_header
      _
    $region3: #{_lambda_.8} parent=1 // loop_header
      %s14 = sphi 0, %s18
      %p15 = scmp.ge.s32.totalorder %s14, 6
      %s21 = sphi 0, %s33
      %s22 = sphi 0, %s29
      %s23 = sphi 0, %s21
      %s24 = sphi 0, %s22
      %s25 = sphi 0, %s23
      %s26 = sphi 0, %s24
      %s38 = sphi 0, %s40
      %s41 = sphi 0, %s38
      %s42 = sphi 0, %s41
      %s58 = sphi 0, %s42
      %s68 = sphi 0, %s70
      %s71 = sphi 0, %s68
      %s72 = sphi 0, %s71
      %s88 = sphi 0, %s72
      %s98 = sphi 0, %s100
      %s101 = sphi 0, %s98
      %s102 = sphi 0, %s101
      %s118 = sphi 0, %s102
      %s124 = sphi 0, %s126
      %s127 = sphi 0, %s124
      %s128 = sphi 0, %s127
      %s144 = sphi 0, %s128
      %s148 = sphi 0, %s148
      %s150 = sphi 0, %s148
      %s151 = sphi 0, %s150
      %s165 = sphi 0, %s151
      %s171 = sphi 0, %s173
      %s174 = sphi 0, %s171
      %s175 = sphi 0, %s174
      %s191 = sphi 0, %s175
      %s195 = sphi 0, %s195
      %s197 = sphi 0, %s195
      %s198 = sphi 0, %s197
      %s212 = sphi 0, %s198
      %s218 = sphi 0, %s220
      %s221 = sphi 0, %s218
      %s222 = sphi 0, %s221
      %s238 = sphi 0, %s222
    $region4: #{_lambda_.8} parent=1 // loop_header_branch
      %17 = sbr.rel (%p15) target = $region8
    $region5: #{_lambda_.8} parent=1 // loop_body
      %s19 = ssub.s32 %s14, 1
      %s20 = ssub.s32 %s14, 2
      %s27 = sadd.s32 1, %s22
      %p28 = scmp.ge.s32.totalorder %s27, 2
      %s29 = scalar_select %p28, 0, %s27
      %s30 = sadd.s32 1, %s21
      %s31 = scalar_select %p28, %s30, %s21
      %p32 = scmp.ge.s32.totalorder %s31, 2
      %s33 = scalar_select %p32, 0, %s31
      %s34 = ssub.s32 %s21, %s33
      %s35 = ssub.s32 %s22, %s29
      %s36 = sor.u32 %s34, %s35
      %p37 = scmp.eq.s32.totalorder %s36, 0
      %s39 = sadd.s32 %s38, 1
      %s40 = scalar_select %p37, %s38, %s39
      %p43 = pneg %p37
      %p44 = scmp.eq.s32.totalorder %s14, 3
      %p45 = por %p43, %p44
      %p46 = scmp.ne.s32.totalorder %s38, %s41
      %p47 = scmp.eq.s32.totalorder %s14, 0
      %p48 = por %p46, %p47
      %p49 = scmp.ne.s32.totalorder %s38, %s41
      %p50 = scmp.eq.s32.totalorder %s19, 3
      %p51 = por %p49, %p50
      %p52 = scmp.ne.s32.totalorder %s41, %s42
      %p53 = scmp.eq.s32.totalorder %s19, 0
      %p54 = por %p52, %p53
      %p55 = scmp.ne.s32.totalorder %s41, %s42
      %p56 = scmp.eq.s32.totalorder %s20, 3
      %p57 = por %p55, %p56
      %p59 = scmp.ne.s32.totalorder %s42, %s58
      %p60 = scmp.eq.s32.totalorder %s20, 0
      %p61 = por %p59, %p60
      %s62 = sadd.s32 %s22, 2
      %s63 = sadd.s32 %s29, 2
      %s64 = ssub.s32 %s21, %s33
      %s65 = ssub.s32 %s62, %s63
      %s66 = sor.u32 %s64, %s65
      %p67 = scmp.eq.s32.totalorder %s66, 0
      %s69 = sadd.s32 %s68, 1
      %s70 = scalar_select %p67, %s68, %s69
      %p73 = pneg %p67
      %p74 = scmp.eq.s32.totalorder %s14, 3
      %p75 = por %p73, %p74
      %p76 = scmp.ne.s32.totalorder %s68, %s71
      %p77 = scmp.eq.s32.totalorder %s14, 0
      %p78 = por %p76, %p77
      %p79 = scmp.ne.s32.totalorder %s68, %s71
      %p80 = scmp.eq.s32.totalorder %s19, 3
      %p81 = por %p79, %p80
      %p82 = scmp.ne.s32.totalorder %s71, %s72
      %p83 = scmp.eq.s32.totalorder %s19, 0
      %p84 = por %p82, %p83
      %p85 = scmp.ne.s32.totalorder %s71, %s72
      %p86 = scmp.eq.s32.totalorder %s20, 3
      %p87 = por %p85, %p86
      %p89 = scmp.ne.s32.totalorder %s72, %s88
      %p90 = scmp.eq.s32.totalorder %s20, 0
      %p91 = por %p89, %p90
      %s92 = sadd.s32 %s22, 4
      %s93 = sadd.s32 %s29, 4
      %s94 = ssub.s32 %s21, %s33
      %s95 = ssub.s32 %s92, %s93
      %s96 = sor.u32 %s94, %s95
      %p97 = scmp.eq.s32.totalorder %s96, 0
      %s99 = sadd.s32 %s98, 1
      %s100 = scalar_select %p97, %s98, %s99
      %p103 = pneg %p97
      %p104 = scmp.eq.s32.totalorder %s14, 3
      %p105 = por %p103, %p104
      %p106 = scmp.ne.s32.totalorder %s98, %s101
      %p107 = scmp.eq.s32.totalorder %s14, 0
      %p108 = por %p106, %p107
      %p109 = scmp.ne.s32.totalorder %s98, %s101
      %p110 = scmp.eq.s32.totalorder %s19, 3
      %p111 = por %p109, %p110
      %p112 = scmp.ne.s32.totalorder %s101, %s102
      %p113 = scmp.eq.s32.totalorder %s19, 0
      %p114 = por %p112, %p113
      %p115 = scmp.ne.s32.totalorder %s101, %s102
      %p116 = scmp.eq.s32.totalorder %s20, 3
      %p117 = por %p115, %p116
      %p119 = scmp.ne.s32.totalorder %s102, %s118
      %p120 = scmp.eq.s32.totalorder %s20, 0
      %p121 = por %p119, %p120
      %s122 = ssub.s32 %s22, %s29
      %p123 = scmp.eq.s32.totalorder %s122, 0
      %s125 = sadd.s32 %s124, 1
      %s126 = scalar_select %p123, %s124, %s125
      %p129 = pneg %p123
      %p130 = scmp.eq.s32.totalorder %s14, 3
      %p131 = por %p129, %p130
      %p132 = scmp.ne.s32.totalorder %s124, %s127
      %p133 = scmp.eq.s32.totalorder %s14, 0
      %p134 = por %p132, %p133
      %p135 = scmp.ne.s32.totalorder %s124, %s127
      %p136 = scmp.eq.s32.totalorder %s19, 3
      %p137 = por %p135, %p136
      %p138 = scmp.ne.s32.totalorder %s127, %s128
      %p139 = scmp.eq.s32.totalorder %s19, 0
      %p140 = por %p138, %p139
      %p141 = scmp.ne.s32.totalorder %s127, %s128
      %p142 = scmp.eq.s32.totalorder %s20, 3
      %p143 = por %p141, %p142
      %p145 = scmp.ne.s32.totalorder %s128, %s144
      %p146 = scmp.eq.s32.totalorder %s20, 0
      %p147 = por %p145, %p146
      %s149 = sadd.s32 %s148, 1
      %p152 = scmp.eq.s32.totalorder %s14, 3
      %p153 = scmp.ne.s32.totalorder %s148, %s150
      %p154 = scmp.eq.s32.totalorder %s14, 0
      %p155 = por %p153, %p154
      %p156 = scmp.ne.s32.totalorder %s148, %s150
      %p157 = scmp.eq.s32.totalorder %s19, 3
      %p158 = por %p156, %p157
      %p159 = scmp.ne.s32.totalorder %s150, %s151
      %p160 = scmp.eq.s32.totalorder %s19, 0
      %p161 = por %p159, %p160
      %p162 = scmp.ne.s32.totalorder %s150, %s151
      %p163 = scmp.eq.s32.totalorder %s20, 3
      %p164 = por %p162, %p163
      %p166 = scmp.ne.s32.totalorder %s151, %s165
      %p167 = scmp.eq.s32.totalorder %s20, 0
      %p168 = por %p166, %p167
      %s169 = ssub.s32 %s21, %s33
      %p170 = scmp.eq.s32.totalorder %s169, 0
      %s172 = sadd.s32 %s171, 1
      %s173 = scalar_select %p170, %s171, %s172
      %p176 = pneg %p170
      %p177 = scmp.eq.s32.totalorder %s14, 3
      %p178 = por %p176, %p177
      %p179 = scmp.ne.s32.totalorder %s171, %s174
      %p180 = scmp.eq.s32.totalorder %s14, 0
      %p181 = por %p179, %p180
      %p182 = scmp.ne.s32.totalorder %s171, %s174
      %p183 = scmp.eq.s32.totalorder %s19, 3
      %p184 = por %p182, %p183
      %p185 = scmp.ne.s32.totalorder %s174, %s175
      %p186 = scmp.eq.s32.totalorder %s19, 0
      %p187 = por %p185, %p186
      %p188 = scmp.ne.s32.totalorder %s174, %s175
      %p189 = scmp.eq.s32.totalorder %s20, 3
      %p190 = por %p188, %p189
      %p192 = scmp.ne.s32.totalorder %s175, %s191
      %p193 = scmp.eq.s32.totalorder %s20, 0
      %p194 = por %p192, %p193
      %s196 = sadd.s32 %s195, 1
      %p199 = scmp.eq.s32.totalorder %s14, 3
      %p200 = scmp.ne.s32.totalorder %s195, %s197
      %p201 = scmp.eq.s32.totalorder %s14, 0
      %p202 = por %p200, %p201
      %p203 = scmp.ne.s32.totalorder %s195, %s197
      %p204 = scmp.eq.s32.totalorder %s19, 3
      %p205 = por %p203, %p204
      %p206 = scmp.ne.s32.totalorder %s197, %s198
      %p207 = scmp.eq.s32.totalorder %s19, 0
      %p208 = por %p206, %p207
      %p209 = scmp.ne.s32.totalorder %s197, %s198
      %p210 = scmp.eq.s32.totalorder %s20, 3
      %p211 = por %p209, %p210
      %p213 = scmp.ne.s32.totalorder %s198, %s212
      %p214 = scmp.eq.s32.totalorder %s20, 0
      %p215 = por %p213, %p214
      %s216 = ssub.s32 %s21, %s33
      %p217 = scmp.eq.s32.totalorder %s216, 0
      %s219 = sadd.s32 %s218, 1
      %s220 = scalar_select %p217, %s218, %s219
      %p223 = pneg %p217
      %p224 = scmp.eq.s32.totalorder %s14, 3
      %p225 = por %p223, %p224
      %p226 = scmp.ne.s32.totalorder %s218, %s221
      %p227 = scmp.eq.s32.totalorder %s14, 0
      %p228 = por %p226, %p227
      %p229 = scmp.ne.s32.totalorder %s218, %s221
      %p230 = scmp.eq.s32.totalorder %s19, 3
      %p231 = por %p229, %p230
      %p232 = scmp.ne.s32.totalorder %s221, %s222
      %p233 = scmp.eq.s32.totalorder %s19, 0
      %p234 = por %p232, %p233
      %p235 = scmp.ne.s32.totalorder %s221, %s222
      %p236 = scmp.eq.s32.totalorder %s20, 3
      %p237 = por %p235, %p236
      %p239 = scmp.ne.s32.totalorder %s222, %s238
      %p240 = scmp.eq.s32.totalorder %s20, 0
      %p241 = por %p239, %p240
      %p242 = scmp.le.s32.totalorder 1, %s14
      %p243 = scmp.lt.s32.totalorder %s14, 5
      %p244 = pnand %p242, %p243
      %p245 = pneg %p244
      // Predicated region
      $region9: #{_lambda_.8} parent=5 // pred_check
        _
      $region10: #{_lambda_.8} parent=5 // pred_check_branch
        %247 = sbr.rel (%p244) target = $region12
      $region11: #{_lambda_.8} parent=5 // pred_region
        %s248 = ssub.s32 %s14, 1
        // Predicated region
        $region13: #{_lambda_.8} parent=11 // pred_check
          %p249 = pneg %p161
        $region14: #{_lambda_.8} parent=11 // pred_check_branch
          %251 = sbr.rel (%p249) target = $region16
        $region15: #{_lambda_.8} parent=11 // pred_region
          _
        $region16: #{_lambda_.8} parent=11 // pred_fallthru
          _
        // Predicated region
        $region17: #{_lambda_.8} parent=11 // pred_check
          %p252 = pneg %p208
        $region18: #{_lambda_.8} parent=11 // pred_check_branch
          %254 = sbr.rel (%p252) target = $region20
        $region19: #{_lambda_.8} parent=11 // pred_region
          %s256 = ssub.s32 16, 16
          %257 = vsyncadd [#allocation4], %s256
          %s259 = sshll.u32 %s6, 4
          %s260 = int_to_ptr.vmem [resolvable:$true] %s259
          %262 = dma.vmem_to_smem %s260, 16, [#allocation3], [#allocation4]
        $region20: #{_lambda_.8} parent=11 // pred_fallthru
          _
      $region12: #{_lambda_.8} parent=5 // pred_fallthru
        _
      %p263 = scmp.lt.s32.totalorder %s14, 4
      // Predicated region
      $region21: #{_lambda_.8} parent=5 // pred_check
        %p264 = pneg %p263
      $region22: #{_lambda_.8} parent=5 // pred_check_branch
        %266 = sbr.rel (%p264) target = $region24
      $region23: #{_lambda_.8} parent=5 // pred_region
        // Predicated region
        $region25: #{_lambda_.8} parent=23 // pred_check
          %p267 = pneg %p48
        $region26: #{_lambda_.8} parent=23 // pred_check_branch
          %269 = sbr.rel (%p267) target = $region28
        $region27: #{_lambda_.8} parent=23 // pred_region
          %p270 = scmp.lt.s32.totalorder %s21, 1
          %s271 = scalar_select %p270, %s21, 1
          %p272 = scmp.lt.s32.totalorder %s22, 5
          %s273 = scalar_select %p272, %s22, 5
          %s274 = smul.addr %s273, 2
          %s275 = smul.addr %s271, 12
          %s276 = sadd.s32 %s274, %s275
          %s277 = smul.addr %s276, 4
          %s278 = scalar_lea.vmem %s0, %s277
        $region28: #{_lambda_.8} parent=23 // pred_fallthru
          _
        // Predicated region
        $region29: #{_lambda_.8} parent=23 // pred_check
          %p279 = pneg %p78
        $region30: #{_lambda_.8} parent=23 // pred_check_branch
          %281 = sbr.rel (%p279) target = $region32
        $region31: #{_lambda_.8} parent=23 // pred_region
          %s282 = sadd.s32 %s22, 2
          %p283 = scmp.lt.s32.totalorder %s21, 1
          %s284 = scalar_select %p283, %s21, 1
          %p285 = scmp.lt.s32.totalorder %s282, 5
          %s286 = scalar_select %p285, %s282, 5
          %s287 = smul.addr %s286, 2
          %s288 = smul.addr %s284, 12
          %s289 = sadd.s32 %s287, %s288
          %s290 = smul.addr %s289, 4
          %s291 = scalar_lea.vmem %s1, %s290
          %s292 = sadd.s32 %s22, 2
        $region32: #{_lambda_.8} parent=23 // pred_fallthru
          _
        // Predicated region
        $region33: #{_lambda_.8} parent=23 // pred_check
          %p293 = pneg %p108
        $region34: #{_lambda_.8} parent=23 // pred_check_branch
          %295 = sbr.rel (%p293) target = $region36
        $region35: #{_lambda_.8} parent=23 // pred_region
          %s296 = sadd.s32 %s22, 4
          %p297 = scmp.lt.s32.totalorder %s21, 1
          %s298 = scalar_select %p297, %s21, 1
          %p299 = scmp.lt.s32.totalorder %s296, 5
          %s300 = scalar_select %p299, %s296, 5
          %s301 = smul.addr %s300, 2
          %s302 = smul.addr %s298, 12
          %s303 = sadd.s32 %s301, %s302
          %s304 = smul.addr %s303, 4
          %s305 = scalar_lea.vmem %s2, %s304
          %s306 = sadd.s32 %s22, 4
        $region36: #{_lambda_.8} parent=23 // pred_fallthru
          _
        // Predicated region
        $region37: #{_lambda_.8} parent=23 // pred_check
          %p307 = pneg %p134
        $region38: #{_lambda_.8} parent=23 // pred_check_branch
          %309 = sbr.rel (%p307) target = $region40
        $region39: #{_lambda_.8} parent=23 // pred_region
          %p310 = scmp.lt.s32.totalorder %s22, 1
          %s311 = scalar_select %p310, %s22, 1
          %s312 = smul.addr %s311, 2
          %s313 = smul.addr %s312, 4
          %s314 = scalar_lea.vmem %s3, %s313
        $region40: #{_lambda_.8} parent=23 // pred_fallthru
          _
        // Predicated region
        $region41: #{_lambda_.8} parent=23 // pred_check
          %p315 = pneg %p181
        $region42: #{_lambda_.8} parent=23 // pred_check_branch
          %317 = sbr.rel (%p315) target = $region44
        $region43: #{_lambda_.8} parent=23 // pred_region
          %p318 = scmp.lt.s32.totalorder %s21, 1
          %s319 = scalar_select %p318, %s21, 1
          %s320 = smul.addr %s319, 4
          %s321 = smul.addr %s320, 8
          %s322 = scalar_lea.vmem %s5, %s321
        $region44: #{_lambda_.8} parent=23 // pred_fallthru
          _
      $region24: #{_lambda_.8} parent=5 // pred_fallthru
        _
      %p323 = scmp.le.s32.totalorder 1, %s14
      %p324 = scmp.lt.s32.totalorder %s14, 5
      %p325 = pnand %p323, %p324
      %p326 = pneg %p325
      // Predicated region
      $region45: #{_lambda_.8} parent=5 // pred_check
        _
      $region46: #{_lambda_.8} parent=5 // pred_check_branch
        %328 = sbr.rel (%p325) target = $region48
      $region47: #{_lambda_.8} parent=5 // pred_region
        %s329 = ssub.s32 %s14, 1
        // Predicated region
        $region49: #{_lambda_.8} parent=47 // pred_check
          %p330 = pneg %p208
        $region50: #{_lambda_.8} parent=47 // pred_check_branch
          %332 = sbr.rel (%p330) target = $region52
        $region51: #{_lambda_.8} parent=47 // pred_region
          %333 = dma.done [#allocation4], 16
        $region52: #{_lambda_.8} parent=47 // pred_fallthru
          _
        %334 = sfence
        %p335 = scmp.lt.s32.totalorder %s23, 1
        %s336 = scalar_select %p335, %s23, 1
        %p337 = scmp.lt.s32.totalorder %s24, 5
        %s338 = scalar_select %p337, %s24, 5
        %s339 = smul.addr %s338, 2
        %s340 = smul.addr %s336, 12
        %s341 = sadd.s32 %s339, %s340
        %s342 = smul.addr %s341, 4
        %s343 = scalar_lea.vmem %s0, %s342
        %p344 = pneg %p54
        %p345 = pneg %p51
        %s346 = sadd.s32 %s24, 2
        %p347 = scmp.lt.s32.totalorder %s23, 1
        %s348 = scalar_select %p347, %s23, 1
        %p349 = scmp.lt.s32.totalorder %s346, 5
        %s350 = scalar_select %p349, %s346, 5
        %s351 = smul.addr %s350, 2
        %s352 = smul.addr %s348, 12
        %s353 = sadd.s32 %s351, %s352
        %s354 = smul.addr %s353, 4
        %s355 = scalar_lea.vmem %s1, %s354
        %p356 = pneg %p84
        %p357 = pneg %p81
        %s358 = sadd.s32 %s24, 4
        %p359 = scmp.lt.s32.totalorder %s23, 1
        %s360 = scalar_select %p359, %s23, 1
        %p361 = scmp.lt.s32.totalorder %s358, 5
        %s362 = scalar_select %p361, %s358, 5
        %s363 = smul.addr %s362, 2
        %s364 = smul.addr %s360, 12
        %s365 = sadd.s32 %s363, %s364
        %s366 = smul.addr %s365, 4
        %s367 = scalar_lea.vmem %s2, %s366
        %p368 = pneg %p114
        %p369 = pneg %p111
        %p370 = scmp.lt.s32.totalorder %s24, 1
        %s371 = scalar_select %p370, %s24, 1
        %s372 = smul.addr %s371, 2
        %s373 = smul.addr %s372, 4
        %s374 = scalar_lea.vmem %s3, %s373
        %p375 = pneg %p140
        %p376 = pneg %p137
        %p377 = pneg %p161
        %p378 = pneg %p158
        %p379 = scmp.lt.s32.totalorder %s23, 1
        %s380 = scalar_select %p379, %s23, 1
        %s381 = smul.addr %s380, 4
        %s382 = smul.addr %s381, 8
        %s383 = scalar_lea.vmem %s5, %s382
        %p384 = pneg %p187
        %p385 = pneg %p184
        %p386 = pneg %p208
        %p387 = pneg %p205
        %p388 = pneg %p234
        %p389 = pneg %p231
        %p390 = scmp.lt.s32.totalorder %s23, 1
        %s391 = scalar_select %p390, %s23, 1
        %s392 = smul.addr %s391, 4
        %s393 = smul.addr %s392, 8
        %s394 = scalar_lea.vmem %s7, %s393
        %p395 = scmp.lt.s32.totalorder %s23, 1
        %s396 = scalar_select %p395, %s23, 1
        %p397 = scmp.lt.s32.totalorder %s24, 5
        %s398 = scalar_select %p397, %s24, 5
        %s399 = smul.addr %s398, 2
        %s400 = smul.addr %s396, 12
        %s401 = sadd.s32 %s399, %s400
        %s402 = smul.addr %s401, 4
        %s403 = scalar_lea.vmem %s0, %s402
        %s404 = sadd.s32 %s24, 2
        %p405 = scmp.lt.s32.totalorder %s23, 1
        %s406 = scalar_select %p405, %s23, 1
        %p407 = scmp.lt.s32.totalorder %s404, 5
        %s408 = scalar_select %p407, %s404, 5
        %s409 = smul.addr %s408, 2
        %s410 = smul.addr %s406, 12
        %s411 = sadd.s32 %s409, %s410
        %s412 = smul.addr %s411, 4
        %s413 = scalar_lea.vmem %s1, %s412
        %s414 = sadd.s32 %s24, 2
        %s415 = sadd.s32 %s24, 4
        %p416 = scmp.lt.s32.totalorder %s23, 1
        %s417 = scalar_select %p416, %s23, 1
        %p418 = scmp.lt.s32.totalorder %s415, 5
        %s419 = scalar_select %p418, %s415, 5
        %s420 = smul.addr %s419, 2
        %s421 = smul.addr %s417, 12
        %s422 = sadd.s32 %s420, %s421
        %s423 = smul.addr %s422, 4
        %s424 = scalar_lea.vmem %s2, %s423
        %s425 = sadd.s32 %s24, 4
        %p426 = scmp.lt.s32.totalorder %s24, 1
        %s427 = scalar_select %p426, %s24, 1
        %s428 = smul.addr %s427, 2
        %s429 = smul.addr %s428, 4
        %s430 = scalar_lea.vmem %s3, %s429
        %p431 = scmp.lt.s32.totalorder %s23, 1
        %s432 = scalar_select %p431, %s23, 1
        %s433 = smul.addr %s432, 4
        %s434 = smul.addr %s433, 8
        %s435 = scalar_lea.vmem %s5, %s434
        %p436 = scmp.lt.s32.totalorder %s23, 1
        %s437 = scalar_select %p436, %s23, 1
        %s438 = smul.addr %s437, 4
        %s439 = smul.addr %s438, 8
        %s440 = scalar_lea.vmem %s7, %s439
        %p442 = scmp.eq.s32.totalorder %s24, 0
        // Predicated region
        $region53: #{_lambda_.8} parent=47 // pred_check
          %p443 = pneg %p442
        $region54: #{_lambda_.8} parent=47 // pred_check_branch
          %445 = sbr.rel (%p443) target = $region56
        $region55: #{_lambda_.8} parent=47 // pred_region
          %446 = vst [vmem:[#allocation2] sm:$0xff] 0.0
          %447 = vst [vmem:[#allocation2 + $0x8] sm:$0xff] 0.0
          %448 = vst [vmem:[#allocation2 + $0x10] sm:$0xff] 0.0
          %449 = vst [vmem:[#allocation2 + $0x18] sm:$0xff] 0.0
        $region56: #{_lambda_.8} parent=47 // pred_fallthru
          _
        %v450 = vld [vmem:[%s403] sm:$0xff]
        %v451 = vld [vmem:[%s413] sm:$0xff]
        %v452 = vld [vmem:[%s424] sm:$0xff]
        %v453 = vunpack.c.l.bf16 %v450
        %v454 = vunpack.c.h.bf16 %v450
        %v455 = vunpack.c.l.bf16 %v451
        %v456 = vunpack.c.h.bf16 %v451
        %v457 = vmul.f32 %v453, %v453
        %v458 = vmul.f32 %v454, %v454
        %v459 = vadd.f32 %v457, %v458
        %460 = vadd.xlane.f32.xlu0 %v459
        %v461 = vpop.xlane.xlu0 %460
        %v462 = vmax.f32 %v461, 1e-24
        %v463 = vrsqrt.pop %v462
        %v464 = vmul.f32 %v455, %v455
        %v465 = vmul.f32 %v456, %v456
        %v466 = vadd.f32 %v464, %v465
        %467 = vadd.xlane.f32.xlu0 %v466
        %v468 = vpop.xlane.xlu0 %467
        %v469 = vmax.f32 %v468, 1e-24
        %v470 = vrsqrt.pop %v469
        %v471 = vmul.f32 %v453, %v463
        %v472 = vmul.f32 %v454, %v463
        %v473 = vpack.c.bf16 %v471, %v471
        %v474 = vpack.c.bf16 %v472, %v472
        %v475 = vmul.f32 %v455, %v470
        %v476 = vmul.f32 %v456, %v470
        %v477 = vpack.c.bf16 %v475, %v475
        %v478 = vpack.c.bf16 %v476, %v476
        %479 = vmatprep.subr.bf16.mxu0 %v478
        %480 = vmatpush1.bf16.xpose.msra.mxu0 %v477
        %481 = vmatprep.subr.bf16.mxu0 0
        %482 = vmatpush1.bf16.xpose.msra.mxu0 0
        %483 = vmatprep.subr.bf16.mxu0 0
        %484 = vmatpush1.bf16.xpose.msra.mxu0 0
        %485 = vmatprep.subr.bf16.mxu0 0
        %486 = vmatpush1.bf16.xpose.msra.mxu0 0
        %487 = vmatprep.subr.bf16.mxu0 0
        %488 = vmatpush1.bf16.xpose.msra.mxu0 0
        %489 = vmatprep.subr.bf16.mxu0 0
        %490 = vmatpush1.bf16.xpose.msra.mxu0 0
        %491 = vmatprep.subr.bf16.mxu0 0
        %492 = vmatpush1.bf16.xpose.msra.mxu0 0
        %493 = vmatprep.subr.bf16.mxu0 0
        %494 = vmatpush1.bf16.xpose.msra.mxu0 0
        %495 = vmatprep.subr.bf16.mxu0 0
        %496 = vmatpush1.bf16.xpose.msra.mxu0 0
        %497 = vmatprep.subr.bf16.mxu0 0
        %498 = vmatpush1.bf16.xpose.msra.mxu0 0
        %499 = vmatprep.subr.bf16.mxu0 0
        %500 = vmatpush1.bf16.xpose.msra.mxu0 0
        %501 = vmatprep.subr.bf16.mxu0 0
        %502 = vmatpush1.bf16.xpose.msra.mxu0 0
        %503 = vmatprep.subr.bf16.mxu0 0
        %504 = vmatpush1.bf16.xpose.msra.mxu0 0
        %505 = vmatprep.subr.bf16.mxu0 0
        %506 = vmatpush1.bf16.xpose.msra.mxu0 0
        %507 = vmatprep.subr.bf16.mxu0 0
        %508 = vmatpush1.bf16.xpose.msra.mxu0 0
        %509 = vmatprep.subr.bf16.mxu0 0
        %510 = vmatpush1.bf16.xpose.msra.mxu0 0
        %511 = vmatprep.mubr.bf16.mxu0 %v474
        %512 = vmatmul.mubr.bf16.gmra.mrb[0].mxu0 %v473
        %v513 = vpop.f32.mrb[0].mxu0
        %v514 = vadd.f32 0.0, %v513
        %v515 = vpop.f32.mrb[0].mxu0
        %v516 = vpop.f32.mrb[0].mxu0
        %v517 = vpop.f32.mrb[0].mxu0
        %518 = vdwg.mxu0
        %s519 = sld [smem:[#allocation3 + %s24]]
        %v520 = vstv %s519
        %v521 = vmul.f32 %v514, %v520
        %vm522 = vcmask 64512
        %v523 = vsel %vm522, %v521, -inf
        %524 = vmax.xlane.f32.xlu0 %v523
        %v525 = vpop.xlane.xlu0 %524
        %v526 = vsub.f32 %v521, %v525
        %v527 = vmul.f32 %v526, 1.442695
        %v528 = vpow.pop %v527
        %v529 = vsel %vm522, %v528, 0.0
        %530 = vadd.xlane.f32.xlu0 %v529
        %v531 = vpop.xlane.xlu0 %530
        %v532 = vrcp.pop %v531
        %v533 = vmul.f32 %v528, %v532
        %v534 = vpack.c.bf16 %v533, %v533
        %v536 = vunpack.c.l.b16 %v452
        %v537 = vunpack.c.h.b16 %v452
        %v538 = vpack.c.b16 %v536, %v536
        %v539 = vpack.c.b16 %v537, %v537
        %v541 = vsel %vm522, %v534, 0
        %vm543 = vcmask 1043456
        %v545 = vsel %vm543, %v538, 0
        %v548 = vsel %vm543, %v539, 0
        %550 = vmatprep.subr.bf16.mxu0 %v548
        %551 = vmatpush1.bf16.msra.mxu0 %v545
        %552 = vmatprep.subr.bf16.mxu0 0
        %553 = vmatpush1.bf16.msra.mxu0 0
        %554 = vmatprep.subr.bf16.mxu0 0
        %555 = vmatpush1.bf16.msra.mxu0 0
        %556 = vmatprep.subr.bf16.mxu0 0
        %557 = vmatpush1.bf16.msra.mxu0 0
        %558 = vmatprep.subr.bf16.mxu0 0
        %559 = vmatpush1.bf16.msra.mxu0 0
        %560 = vmatprep.subr.bf16.mxu0 0
        %561 = vmatpush1.bf16.msra.mxu0 0
        %562 = vmatprep.subr.bf16.mxu0 0
        %563 = vmatpush1.bf16.msra.mxu0 0
        %564 = vmatprep.subr.bf16.mxu0 0
        %565 = vmatpush1.bf16.msra.mxu0 0
        %566 = vmatprep.subr.bf16.mxu0 0
        %567 = vmatpush1.bf16.msra.mxu0 0
        %568 = vmatprep.subr.bf16.mxu0 0
        %569 = vmatpush1.bf16.msra.mxu0 0
        %570 = vmatprep.subr.bf16.mxu0 0
        %571 = vmatpush1.bf16.msra.mxu0 0
        %572 = vmatprep.subr.bf16.mxu0 0
        %573 = vmatpush1.bf16.msra.mxu0 0
        %574 = vmatprep.subr.bf16.mxu0 0
        %575 = vmatpush1.bf16.msra.mxu0 0
        %576 = vmatprep.subr.bf16.mxu0 0
        %577 = vmatpush1.bf16.msra.mxu0 0
        %578 = vmatprep.subr.bf16.mxu0 0
        %579 = vmatpush1.bf16.msra.mxu0 0
        %580 = vmatprep.subr.bf16.mxu0 0
        %581 = vmatpush1.bf16.msra.mxu0 0
        %582 = vmatprep.mubr.bf16.mxu0 0
        %583 = vmatmul.mubr.bf16.gmra.mrb[0].mxu0 %v541
        %v584 = vpop.f32.mrb[0].mxu0
        %v585 = vadd.f32 0.0, %v584
        %v586 = vpop.f32.mrb[0].mxu0
        %v587 = vadd.f32 0.0, %v586
        %v588 = vpop.f32.mrb[0].mxu0
        %v589 = vpop.f32.mrb[0].mxu0
        %590 = vdwg.mxu0
        %v591 = vld [vmem:[#allocation2] sm:$0xff]
        %v592 = vld [vmem:[#allocation2 + $0x8] sm:$0xff]
        %v593 = vld [vmem:[#allocation2 + $0x10] sm:$0xff]
        %v594 = vld [vmem:[#allocation2 + $0x18] sm:$0xff]
        %v595 = vld [vmem:[%s430] sm:$0xf]
        %v596 = vld [vmem:[%s430 + $0x4] sm:$0xf]
        %v597 = vpack.c.bf16 %v585, %v585
        %v598 = vpack.c.bf16 %v587, %v587
        %v601 = vunpack.c.l.b16 %v595
        %v602 = vunpack.c.l.b16 %v596
        %v603 = vpack.c.b16 %v602, %v601
        %v605 = vsel %vm522, %v603, 0
        %v608 = vsel %vm543, %v597, 0
        %v611 = vsel %vm543, %v598, 0
        %613 = vmatprep.subr.bf16.mxu0 %v611
        %614 = vmatpush1.bf16.msra.mxu0 %v608
        %615 = vmatprep.subr.bf16.mxu0 0
        %616 = vmatpush1.bf16.msra.mxu0 0
        %617 = vmatprep.subr.bf16.mxu0 0
        %618 = vmatpush1.bf16.msra.mxu0 0
        %619 = vmatprep.subr.bf16.mxu0 0
        %620 = vmatpush1.bf16.msra.mxu0 0
        %621 = vmatprep.subr.bf16.mxu0 0
        %622 = vmatpush1.bf16.msra.mxu0 0
        %623 = vmatprep.subr.bf16.mxu0 0
        %624 = vmatpush1.bf16.msra.mxu0 0
        %625 = vmatprep.subr.bf16.mxu0 0
        %626 = vmatpush1.bf16.msra.mxu0 0
        %627 = vmatprep.subr.bf16.mxu0 0
        %628 = vmatpush1.bf16.msra.mxu0 0
        %629 = vmatprep.subr.bf16.mxu0 0
        %630 = vmatpush1.bf16.msra.mxu0 0
        %631 = vmatprep.subr.bf16.mxu0 0
        %632 = vmatpush1.bf16.msra.mxu0 0
        %633 = vmatprep.subr.bf16.mxu0 0
        %634 = vmatpush1.bf16.msra.mxu0 0
        %635 = vmatprep.subr.bf16.mxu0 0
        %636 = vmatpush1.bf16.msra.mxu0 0
        %637 = vmatprep.subr.bf16.mxu0 0
        %638 = vmatpush1.bf16.msra.mxu0 0
        %639 = vmatprep.subr.bf16.mxu0 0
        %640 = vmatpush1.bf16.msra.mxu0 0
        %641 = vmatprep.subr.bf16.mxu0 0
        %642 = vmatpush1.bf16.msra.mxu0 0
        %643 = vmatprep.subr.bf16.mxu0 0
        %644 = vmatpush1.bf16.msra.mxu0 0
        %645 = vmatprep.mubr.bf16.mxu0 0
        %646 = vmatmul.mubr.bf16.gmra.mrb[0].mxu0 %v605
        %v647 = vpop.f32.mrb[0].mxu0
        %v648 = vadd.f32 0.0, %v647
        %v649 = vpop.f32.mrb[0].mxu0
        %v650 = vadd.f32 0.0, %v649
        %v651 = vpop.f32.mrb[0].mxu0
        %v652 = vadd.f32 0.0, %v651
        %v653 = vpop.f32.mrb[0].mxu0
        %v654 = vadd.f32 0.0, %v653
        %655 = vdwg.mxu0
        %v656 = vadd.f32 %v591, %v648
        %v657 = vadd.f32 %v592, %v650
        %v658 = vadd.f32 %v593, %v652
        %v659 = vadd.f32 %v594, %v654
        %660 = vst [vmem:[#allocation2] sm:$0xff] %v656
        %661 = vst [vmem:[#allocation2 + $0x8] sm:$0xff] %v657
        %662 = vst [vmem:[#allocation2 + $0x10] sm:$0xff] %v658
        %663 = vst [vmem:[#allocation2 + $0x18] sm:$0xff] %v659
        %p664 = scmp.eq.s32.totalorder %s24, 1
        // Predicated region
        $region57: #{_lambda_.8} parent=47 // pred_check
          %p665 = pneg %p664
        $region58: #{_lambda_.8} parent=47 // pred_check_branch
          %667 = sbr.rel (%p665) target = $region60
        $region59: #{_lambda_.8} parent=47 // pred_region
          %v668 = vld [vmem:[#allocation2] sm:$0xff]
          %v669 = vld [vmem:[#allocation2 + $0x8] sm:$0xff]
          %v670 = vld [vmem:[#allocation2 + $0x10] sm:$0xff]
          %v671 = vld [vmem:[#allocation2 + $0x18] sm:$0xff]
          %v672 = vld [vmem:[%s4] sm:$0xff]
          %v673 = vld [vmem:[%s4 + $0x8] sm:$0xff]
          %675 = vset.pattern.permute.xlu0 0
          %676 = vperm.xlu0 %675, %v672
          %v677 = vpop.permute.xlu0 %676
          %680 = vset.pattern.permute.xlu0 0
          %681 = vperm.xlu0 %680, %v673
          %v682 = vpop.permute.xlu0 %681
          %v684 = vadd.f32 %v668, %v677
          %v685 = vadd.f32 %v669, %v677
          %v686 = vadd.f32 %v670, %v682
          %v687 = vadd.f32 %v671, %v682
          %v688 = vld [vmem:[%s435] sm:$0xff]
          %v689 = vld [vmem:[%s435 + $0x8] sm:$0xff]
          %v690 = vld [vmem:[%s435 + $0x10] sm:$0xff]
          %v691 = vld [vmem:[%s435 + $0x18] sm:$0xff]
          %v692 = vadd.f32 %v684, %v688
          %v693 = vadd.f32 %v685, %v689
          %v694 = vadd.f32 %v686, %v690
          %v695 = vadd.f32 %v687, %v691
          %696 = vst [vmem:[%s440] sm:$0xff] %v692
          %697 = vst [vmem:[%s440 + $0x8] sm:$0xff] %v693
          %698 = vst [vmem:[%s440 + $0x10] sm:$0xff] %v694
          %699 = vst [vmem:[%s440 + $0x18] sm:$0xff] %v695
        $region60: #{_lambda_.8} parent=47 // pred_fallthru
          _
        %p700 = scmp.lt.s32.totalorder %s23, 1
        %s701 = scalar_select %p700, %s23, 1
        %s702 = smul.addr %s701, 4
        %s703 = smul.addr %s702, 8
        %s704 = scalar_lea.vmem %s7, %s703
        // Predicated region
        $region61: #{_lambda_.8} parent=47 // pred_check
          %p705 = pneg %p231
        $region62: #{_lambda_.8} parent=47 // pred_check_branch
          %707 = sbr.rel (%p705) target = $region64
        $region63: #{_lambda_.8} parent=47 // pred_region
          _
        $region64: #{_lambda_.8} parent=47 // pred_fallthru
          _
      $region48: #{_lambda_.8} parent=5 // pred_fallthru
        _
      %p708 = scmp.le.s32.totalorder 2, %s14
      // Predicated region
      $region65: #{_lambda_.8} parent=5 // pred_check
        %p709 = pneg %p708
      $region66: #{_lambda_.8} parent=5 // pred_check_branch
        %711 = sbr.rel (%p709) target = $region68
      $region67: #{_lambda_.8} parent=5 // pred_region
        %s712 = ssub.s32 %s14, 2
        // Predicated region
        $region69: #{_lambda_.8} parent=67 // pred_check
          %p713 = pneg %p237
        $region70: #{_lambda_.8} parent=67 // pred_check_branch
          %715 = sbr.rel (%p713) target = $region72
        $region71: #{_lambda_.8} parent=67 // pred_region
          %p716 = scmp.lt.s32.totalorder %s25, 1
          %s717 = scalar_select %p716, %s25, 1
          %s718 = smul.addr %s717, 4
          %s719 = smul.addr %s718, 8
          %s720 = scalar_lea.vmem %s7, %s719
        $region72: #{_lambda_.8} parent=67 // pred_fallthru
          _
      $region68: #{_lambda_.8} parent=5 // pred_fallthru
        _
    $region6: #{_lambda_.8} parent=1 // loop_footer
      %s18 = sadd.s32 1, %s14
    $region7: #{_lambda_.8} parent=1 // loop_footer_branch
      %13 = sbr.rel target = $region3
    $region8: #{_lambda_.8} parent=1 // loop_exit
      _
    %721 = vsyncpa [#allocation4], 1
    %s722 = scalar_lea.sflag [#allocation4], 1
    %723 = vsyncpa %s722, 1

// kernel: _lambda_.9
$region0: #{_lambda_.9}
  #allocation0 [shape = 'u32[]', space=smem, size = 0x4, offset = 0x4, fixed_abs, tag = 'smem constant byte address 0x4 - core index']
  #allocation1 [shape = 'u32[144,128]{1,0:T(1,128)}', space=vmem, size = 0x12000, scoped, tag = 'internal scratch']
  %s0 = inlined_call_operand.vmem [shape: f32[2,16,256], index: 0, kind: input, shape index: {}]
  %s1 = inlined_call_operand.vmem [shape: bf16[64,16], index: 1, kind: input, shape index: {}]
  %s2 = inlined_call_operand.vmem [shape: f32[64,1], index: 2, kind: input, shape index: {}]
  %s3 = inlined_call_operand.vmem [shape: bf16[2,64,256], index: 3, kind: output, shape index: {}]
  %s4 = sld [smem:[#allocation0]]
  $region45: #{_lambda_.9} parent=0
    _
  %s6 = ssub.s32 1, %s4
  %s7 = scalar_select 0, %s6, %s4
  loop: start=0, step=1, limit=4
  $region2: #{_lambda_.9} parent=0 // loop_pre_header
    _
  $region3: #{_lambda_.9} parent=0 // loop_header
    %s9 = sphi 0, %s13
    %p10 = scmp.ge.s32.totalorder %s9, 4
    %s16 = sphi 0, %s28
    %s17 = sphi 0, %s24
    %s18 = sphi 0, %s16
    %s19 = sphi 0, %s17
    %s20 = sphi 0, %s18
    %s21 = sphi 0, %s19
    %s33 = sphi 0, %s35
    %s36 = sphi 0, %s33
    %s37 = sphi 0, %s36
    %s53 = sphi 0, %s37
    %s57 = sphi 0, %s57
    %s59 = sphi 0, %s57
    %s60 = sphi 0, %s59
    %s74 = sphi 0, %s60
    %s78 = sphi 0, %s78
    %s80 = sphi 0, %s78
    %s81 = sphi 0, %s80
    %s95 = sphi 0, %s81
    %s103 = sphi 0, %s105
    %s106 = sphi 0, %s103
    %s107 = sphi 0, %s106
    %s123 = sphi 0, %s107
  $region4: #{_lambda_.9} parent=0 // loop_header_branch
    %12 = sbr.rel (%p10) target = $region8
  $region5: #{_lambda_.9} parent=0 // loop_body
    %s14 = ssub.s32 %s9, 1
    %s15 = ssub.s32 %s9, 2
    %s22 = sadd.s32 1, %s17
    %p23 = scmp.ge.s32.totalorder %s22, 1
    %s24 = scalar_select %p23, 0, %s22
    %s25 = sadd.s32 1, %s16
    %s26 = scalar_select %p23, %s25, %s16
    %p27 = scmp.ge.s32.totalorder %s26, 2
    %s28 = scalar_select %p27, 0, %s26
    %s29 = ssub.s32 %s16, %s28
    %s30 = ssub.s32 %s17, %s24
    %s31 = sor.u32 %s29, %s30
    %p32 = scmp.eq.s32.totalorder %s31, 0
    %s34 = sadd.s32 %s33, 1
    %s35 = scalar_select %p32, %s33, %s34
    %p38 = pneg %p32
    %p39 = scmp.eq.s32.totalorder %s9, 1
    %p40 = por %p38, %p39
    %p41 = scmp.ne.s32.totalorder %s33, %s36
    %p42 = scmp.eq.s32.totalorder %s9, 0
    %p43 = por %p41, %p42
    %p44 = scmp.ne.s32.totalorder %s33, %s36
    %p45 = scmp.eq.s32.totalorder %s14, 1
    %p46 = por %p44, %p45
    %p47 = scmp.ne.s32.totalorder %s36, %s37
    %p48 = scmp.eq.s32.totalorder %s14, 0
    %p49 = por %p47, %p48
    %p50 = scmp.ne.s32.totalorder %s36, %s37
    %p51 = scmp.eq.s32.totalorder %s15, 1
    %p52 = por %p50, %p51
    %p54 = scmp.ne.s32.totalorder %s37, %s53
    %p55 = scmp.eq.s32.totalorder %s15, 0
    %p56 = por %p54, %p55
    %s58 = sadd.s32 %s57, 1
    %p61 = scmp.eq.s32.totalorder %s9, 1
    %p62 = scmp.ne.s32.totalorder %s57, %s59
    %p63 = scmp.eq.s32.totalorder %s9, 0
    %p64 = por %p62, %p63
    %p65 = scmp.ne.s32.totalorder %s57, %s59
    %p66 = scmp.eq.s32.totalorder %s14, 1
    %p67 = por %p65, %p66
    %p68 = scmp.ne.s32.totalorder %s59, %s60
    %p69 = scmp.eq.s32.totalorder %s14, 0
    %p70 = por %p68, %p69
    %p71 = scmp.ne.s32.totalorder %s59, %s60
    %p72 = scmp.eq.s32.totalorder %s15, 1
    %p73 = por %p71, %p72
    %p75 = scmp.ne.s32.totalorder %s60, %s74
    %p76 = scmp.eq.s32.totalorder %s15, 0
    %p77 = por %p75, %p76
    %s79 = sadd.s32 %s78, 1
    %p82 = scmp.eq.s32.totalorder %s9, 1
    %p83 = scmp.ne.s32.totalorder %s78, %s80
    %p84 = scmp.eq.s32.totalorder %s9, 0
    %p85 = por %p83, %p84
    %p86 = scmp.ne.s32.totalorder %s78, %s80
    %p87 = scmp.eq.s32.totalorder %s14, 1
    %p88 = por %p86, %p87
    %p89 = scmp.ne.s32.totalorder %s80, %s81
    %p90 = scmp.eq.s32.totalorder %s14, 0
    %p91 = por %p89, %p90
    %p92 = scmp.ne.s32.totalorder %s80, %s81
    %p93 = scmp.eq.s32.totalorder %s15, 1
    %p94 = por %p92, %p93
    %p96 = scmp.ne.s32.totalorder %s81, %s95
    %p97 = scmp.eq.s32.totalorder %s15, 0
    %p98 = por %p96, %p97
    %s99 = ssub.s32 %s16, %s28
    %s100 = ssub.s32 %s17, %s24
    %s101 = sor.u32 %s99, %s100
    %p102 = scmp.eq.s32.totalorder %s101, 0
    %s104 = sadd.s32 %s103, 1
    %s105 = scalar_select %p102, %s103, %s104
    %p108 = pneg %p102
    %p109 = scmp.eq.s32.totalorder %s9, 1
    %p110 = por %p108, %p109
    %p111 = scmp.ne.s32.totalorder %s103, %s106
    %p112 = scmp.eq.s32.totalorder %s9, 0
    %p113 = por %p111, %p112
    %p114 = scmp.ne.s32.totalorder %s103, %s106
    %p115 = scmp.eq.s32.totalorder %s14, 1
    %p116 = por %p114, %p115
    %p117 = scmp.ne.s32.totalorder %s106, %s107
    %p118 = scmp.eq.s32.totalorder %s14, 0
    %p119 = por %p117, %p118
    %p120 = scmp.ne.s32.totalorder %s106, %s107
    %p121 = scmp.eq.s32.totalorder %s15, 1
    %p122 = por %p120, %p121
    %p124 = scmp.ne.s32.totalorder %s107, %s123
    %p125 = scmp.eq.s32.totalorder %s15, 0
    %p126 = por %p124, %p125
    %p127 = scmp.le.s32.totalorder 1, %s9
    %p128 = scmp.lt.s32.totalorder %s9, 3
    %p129 = pnand %p127, %p128
    %p130 = pneg %p129
    // Predicated region
    $region9: #{_lambda_.9} parent=5 // pred_check
      _
    $region10: #{_lambda_.9} parent=5 // pred_check_branch
      %132 = sbr.rel (%p129) target = $region12
    $region11: #{_lambda_.9} parent=5 // pred_region
      %s133 = ssub.s32 %s9, 1
      // Predicated region
      $region13: #{_lambda_.9} parent=11 // pred_check
        %p134 = pneg %p70
      $region14: #{_lambda_.9} parent=11 // pred_check_branch
        %136 = sbr.rel (%p134) target = $region16
      $region15: #{_lambda_.9} parent=11 // pred_region
        _
      $region16: #{_lambda_.9} parent=11 // pred_fallthru
        _
      // Predicated region
      $region17: #{_lambda_.9} parent=11 // pred_check
        %p137 = pneg %p91
      $region18: #{_lambda_.9} parent=11 // pred_check_branch
        %139 = sbr.rel (%p137) target = $region20
      $region19: #{_lambda_.9} parent=11 // pred_region
        _
      $region20: #{_lambda_.9} parent=11 // pred_fallthru
        _
    $region12: #{_lambda_.9} parent=5 // pred_fallthru
      _
    %p140 = scmp.lt.s32.totalorder %s9, 2
    // Predicated region
    $region21: #{_lambda_.9} parent=5 // pred_check
      %p141 = pneg %p140
    $region22: #{_lambda_.9} parent=5 // pred_check_branch
      %143 = sbr.rel (%p141) target = $region24
    $region23: #{_lambda_.9} parent=5 // pred_region
      // Predicated region
      $region25: #{_lambda_.9} parent=23 // pred_check
        %p144 = pneg %p43
      $region26: #{_lambda_.9} parent=23 // pred_check_branch
        %146 = sbr.rel (%p144) target = $region28
      $region27: #{_lambda_.9} parent=23 // pred_region
        %s147 = smul.u32 2, %s17
        %p148 = scmp.lt.s32.totalorder %s16, 1
        %s149 = scalar_select %p148, %s16, 1
        %p150 = scmp.lt.s32.totalorder %s147, 1
        %s151 = scalar_select %p150, %s147, 1
        %s152 = smul.addr %s149, 4
        %s153 = sadd.s32 %s151, %s152
        %s154 = smul.addr %s153, 8
        %s155 = scalar_lea.vmem %s0, %s154
        %s156 = smul.u32 2, %s17
      $region28: #{_lambda_.9} parent=23 // pred_fallthru
        _
    $region24: #{_lambda_.9} parent=5 // pred_fallthru
      _
    %p157 = scmp.le.s32.totalorder 1, %s9
    %p158 = scmp.lt.s32.totalorder %s9, 3
    %p159 = pnand %p157, %p158
    %p160 = pneg %p159
    // Predicated region
    $region29: #{_lambda_.9} parent=5 // pred_check
      _
    $region30: #{_lambda_.9} parent=5 // pred_check_branch
      %162 = sbr.rel (%p159) target = $region32
    $region31: #{_lambda_.9} parent=5 // pred_region
      %s163 = ssub.s32 %s9, 1
      %s164 = smul.u32 2, %s19
      %p165 = scmp.lt.s32.totalorder %s18, 1
      %s166 = scalar_select %p165, %s18, 1
      %p167 = scmp.lt.s32.totalorder %s164, 1
      %s168 = scalar_select %p167, %s164, 1
      %s169 = smul.addr %s166, 4
      %s170 = sadd.s32 %s168, %s169
      %s171 = smul.addr %s170, 8
      %s172 = scalar_lea.vmem %s0, %s171
      %p173 = pneg %p49
      %p174 = pneg %p46
      %p175 = pneg %p70
      %p176 = pneg %p67
      %p177 = pneg %p91
      %p178 = pneg %p88
      %p179 = pneg %p119
      %p180 = pneg %p116
      %s181 = smul.u32 2, %s19
      %p182 = scmp.lt.s32.totalorder %s18, 1
      %s183 = scalar_select %p182, %s18, 1
      %p184 = scmp.lt.s32.totalorder %s181, 1
      %s185 = scalar_select %p184, %s181, 1
      %s186 = smul.addr %s183, 16
      %s187 = sadd.s32 %s185, %s186
      %s188 = smul.addr %s187, 4
      %s189 = scalar_lea.vmem %s3, %s188
      %s190 = smul.u32 2, %s19
      %p191 = scmp.lt.s32.totalorder %s18, 1
      %s192 = scalar_select %p191, %s18, 1
      %p193 = scmp.lt.s32.totalorder %s190, 1
      %s194 = scalar_select %p193, %s190, 1
      %s195 = smul.addr %s192, 4
      %s196 = sadd.s32 %s194, %s195
      %s197 = smul.addr %s196, 8
      %s198 = scalar_lea.vmem %s0, %s197
      %s199 = smul.u32 2, %s19
      %s200 = smul.u32 2, %s19
      %p201 = scmp.lt.s32.totalorder %s18, 1
      %s202 = scalar_select %p201, %s18, 1
      %p203 = scmp.lt.s32.totalorder %s200, 1
      %s204 = scalar_select %p203, %s200, 1
      %s205 = smul.addr %s202, 16
      %s206 = sadd.s32 %s204, %s205
      %s207 = smul.addr %s206, 4
      %s208 = scalar_lea.vmem %s3, %s207
      %s209 = smul.u32 2, %s19
      %v211 = vld [vmem:[%s198] sm:$0xff]
      %v212 = vld [vmem:[%s198 + $0x8] sm:$0xff]
      %v213 = vld [vmem:[%s198 + $0x10] sm:$0xff]
      %v214 = vld [vmem:[%s198 + $0x18] sm:$0xff]
      %v215 = vadd.f32 %v211, %v213
      %v216 = vrot.slane %v215, 4
      %v217 = vadd.f32 %v215, %v216
      %v218 = vrot.slane %v217, 2
      %v219 = vadd.f32 %v217, %v218
      %v220 = vrot.slane %v219, 1
      %v221 = vadd.f32 %v219, %v220
      %v222 = vadd.f32 %v212, %v214
      %v223 = vrot.slane %v222, 4
      %v224 = vadd.f32 %v222, %v223
      %v225 = vrot.slane %v224, 2
      %v226 = vadd.f32 %v224, %v225
      %v227 = vrot.slane %v226, 1
      %v228 = vadd.f32 %v226, %v227
      %v229 = vrcp.pop 16.0
      %v230 = vmul.f32 %v221, %v229
      %v231 = vmul.f32 %v228, %v229
      %v232 = vsub.f32 %v211, %v230
      %v233 = vsub.f32 %v212, %v231
      %v234 = vsub.f32 %v213, %v230
      %v235 = vsub.f32 %v214, %v231
      %v236 = vmul.f32 %v232, %v232
      %v237 = vmul.f32 %v233, %v233
      %v238 = vmul.f32 %v234, %v234
      %v239 = vmul.f32 %v235, %v235
      %v240 = vadd.f32 %v236, %v238
      %v241 = vrot.slane %v240, 4
      %v242 = vadd.f32 %v240, %v241
      %v243 = vrot.slane %v242, 2
      %v244 = vadd.f32 %v242, %v243
      %v245 = vrot.slane %v244, 1
      %v246 = vadd.f32 %v244, %v245
      %v247 = vadd.f32 %v237, %v239
      %v248 = vrot.slane %v247, 4
      %v249 = vadd.f32 %v247, %v248
      %v250 = vrot.slane %v249, 2
      %v251 = vadd.f32 %v249, %v250
      %v252 = vrot.slane %v251, 1
      %v253 = vadd.f32 %v251, %v252
      %v254 = vmul.f32 %v246, %v229
      %v255 = vmul.f32 %v253, %v229
      %v256 = vadd.f32 %v254, 1e-05
      %v257 = vadd.f32 %v255, 1e-05
      %v258 = vrsqrt.pop %v256
      %v259 = vrsqrt.pop %v257
      %v260 = vmul.f32 %v232, %v258
      %v261 = vmul.f32 %v233, %v259
      %v262 = vmul.f32 %v234, %v258
      %v263 = vmul.f32 %v235, %v259
      %v264 = vpack.c.bf16 %v262, %v260
      %v265 = vpack.c.bf16 %v263, %v261
      %v266 = vld [vmem:[%s1] sm:$0xf]
      %v267 = vld [vmem:[%s1 + $0x4] sm:$0xf]
      %v268 = vld [vmem:[%s1 + $0x8] sm:$0xf]
      %v269 = vld [vmem:[%s1 + $0xc] sm:$0xf]
      %v270 = vld [vmem:[%s1 + $0x10] sm:$0xf]
      %v271 = vld [vmem:[%s1 + $0x14] sm:$0xf]
      %v272 = vld [vmem:[%s1 + $0x18] sm:$0xf]
      %v273 = vld [vmem:[%s1 + $0x1c] sm:$0xf]
      %v274 = vld [vmem:[%s2] sm:$0xff]
      %v275 = vld [vmem:[%s2 + $0x8] sm:$0xff]
      %v276 = vld [vmem:[%s2 + $0x10] sm:$0xff]
      %v277 = vld [vmem:[%s2 + $0x18] sm:$0xff]
      %v278 = vld [vmem:[%s2 + $0x20] sm:$0xff]
      %v279 = vld [vmem:[%s2 + $0x28] sm:$0xff]
      %v280 = vld [vmem:[%s2 + $0x30] sm:$0xff]
      %v281 = vld [vmem:[%s2 + $0x38] sm:$0xff]
      %283 = vset.pattern.permute.xlu0 0
      %284 = vperm.xlu0 %283, %v274
      %v285 = vpop.permute.xlu0 %284
      %288 = vset.pattern.permute.xlu0 0
      %289 = vperm.xlu0 %288, %v275
      %v290 = vpop.permute.xlu0 %289
      %293 = vset.pattern.permute.xlu0 0
      %294 = vperm.xlu0 %293, %v276
      %v295 = vpop.permute.xlu0 %294
      %298 = vset.pattern.permute.xlu0 0
      %299 = vperm.xlu0 %298, %v277
      %v300 = vpop.permute.xlu0 %299
      %303 = vset.pattern.permute.xlu0 0
      %304 = vperm.xlu0 %303, %v278
      %v305 = vpop.permute.xlu0 %304
      %308 = vset.pattern.permute.xlu0 0
      %309 = vperm.xlu0 %308, %v279
      %v310 = vpop.permute.xlu0 %309
      %313 = vset.pattern.permute.xlu0 0
      %314 = vperm.xlu0 %313, %v280
      %v315 = vpop.permute.xlu0 %314
      %318 = vset.pattern.permute.xlu0 0
      %319 = vperm.xlu0 %318, %v281
      %v320 = vpop.permute.xlu0 %319
      %v330 = vunpack.c.l.b16 %v266
      %v331 = vunpack.c.l.b16 %v267
      %v332 = vunpack.c.l.b16 %v268
      %v333 = vunpack.c.l.b16 %v269
      %v334 = vunpack.c.l.b16 %v270
      %v335 = vunpack.c.l.b16 %v271
      %v336 = vunpack.c.l.b16 %v272
      %v337 = vunpack.c.l.b16 %v273
      %v338 = vpack.c.b16 %v331, %v330
      %v339 = vpack.c.b16 %v333, %v332
      %v340 = vpack.c.b16 %v335, %v334
      %v341 = vpack.c.b16 %v337, %v336
      %vm342 = vcmask 130048
      %v344 = vsel %vm342, %v338, 0
      %v347 = vsel %vm342, %v339, 0
      %v350 = vsel %vm342, %v340, 0
      %v353 = vsel %vm342, %v341, 0
      %355 = vmatprep.subr.bf16.mxu0 %v265
      %356 = vmatpush1.bf16.msra.mxu0 %v264
      %357 = vmatprep.subr.bf16.mxu0 0
      %358 = vmatpush1.bf16.msra.mxu0 0
      %359 = vmatprep.subr.bf16.mxu0 0
      %360 = vmatpush1.bf16.msra.mxu0 0
      %361 = vmatprep.subr.bf16.mxu0 0
      %362 = vmatpush1.bf16.msra.mxu0 0
      %363 = vmatprep.subr.bf16.mxu0 0
      %364 = vmatpush1.bf16.msra.mxu0 0
      %365 = vmatprep.subr.bf16.mxu0 0
      %366 = vmatpush1.bf16.msra.mxu0 0
      %367 = vmatprep.subr.bf16.mxu0 0
      %368 = vmatpush1.bf16.msra.mxu0 0
      %369 = vmatprep.subr.bf16.mxu0 0
      %370 = vmatpush1.bf16.msra.mxu0 0
      %371 = vmatprep.subr.bf16.mxu0 0
      %372 = vmatpush1.bf16.msra.mxu0 0
      %373 = vmatprep.subr.bf16.mxu0 0
      %374 = vmatpush1.bf16.msra.mxu0 0
      %375 = vmatprep.subr.bf16.mxu0 0
      %376 = vmatpush1.bf16.msra.mxu0 0
      %377 = vmatprep.subr.bf16.mxu0 0
      %378 = vmatpush1.bf16.msra.mxu0 0
      %379 = vmatprep.subr.bf16.mxu0 0
      %380 = vmatpush1.bf16.msra.mxu0 0
      %381 = vmatprep.subr.bf16.mxu0 0
      %382 = vmatpush1.bf16.msra.mxu0 0
      %383 = vmatprep.subr.bf16.mxu0 0
      %384 = vmatpush1.bf16.msra.mxu0 0
      %385 = vmatprep.subr.bf16.mxu0 0
      %386 = vmatpush1.bf16.msra.mxu0 0
      %387 = vmatprep.mubr.bf16.mxu0 0
      %388 = vmatmul.mubr.bf16.gmra.mrb[0].mxu0 %v344
      %v389 = vpop.f32.mrb[0].mxu0
      %v390 = vadd.f32 %v285, %v389
      %v391 = vpop.f32.mrb[0].mxu0
      %v392 = vadd.f32 %v285, %v391
      %v393 = vpop.f32.mrb[0].mxu0
      %v394 = vadd.f32 %v290, %v393
      %v395 = vpop.f32.mrb[0].mxu0
      %v396 = vadd.f32 %v290, %v395
      %397 = vmatprep.mubr.bf16.mxu0 0
      %398 = vmatmul.mubr.bf16.gmra.mrb[0].mxu0 %v347
      %v399 = vpop.f32.mrb[0].mxu0
      %v400 = vadd.f32 %v295, %v399
      %v401 = vpop.f32.mrb[0].mxu0
      %v402 = vadd.f32 %v295, %v401
      %v403 = vpop.f32.mrb[0].mxu0
      %v404 = vadd.f32 %v300, %v403
      %v405 = vpop.f32.mrb[0].mxu0
      %v406 = vadd.f32 %v300, %v405
      %407 = vmatprep.mubr.bf16.mxu0 0
      %408 = vmatmul.mubr.bf16.gmra.mrb[0].mxu0 %v350
      %v409 = vpop.f32.mrb[0].mxu0
      %v410 = vadd.f32 %v305, %v409
      %v411 = vpop.f32.mrb[0].mxu0
      %v412 = vadd.f32 %v305, %v411
      %v413 = vpop.f32.mrb[0].mxu0
      %v414 = vadd.f32 %v310, %v413
      %v415 = vpop.f32.mrb[0].mxu0
      %v416 = vadd.f32 %v310, %v415
      %417 = vmatprep.mubr.bf16.mxu0 0
      %418 = vmatmul.mubr.bf16.gmra.mrb[0].mxu0 %v353
      %v419 = vpop.f32.mrb[0].mxu0
      %v420 = vadd.f32 %v315, %v419
      %v421 = vpop.f32.mrb[0].mxu0
      %v422 = vadd.f32 %v315, %v421
      %v423 = vpop.f32.mrb[0].mxu0
      %v424 = vadd.f32 %v320, %v423
      %v425 = vpop.f32.mrb[0].mxu0
      %v426 = vadd.f32 %v320, %v425
      %427 = vdwg.mxu0
      %v428 = vpack.c.bf16 %v394, %v390
      %v429 = vpack.c.bf16 %v396, %v392
      %v430 = vpack.c.bf16 %v404, %v400
      %v431 = vpack.c.bf16 %v406, %v402
      %v432 = vpack.c.bf16 %v414, %v410
      %v433 = vpack.c.bf16 %v416, %v412
      %v434 = vpack.c.bf16 %v424, %v420
      %v435 = vpack.c.bf16 %v426, %v422
      %v444 = vunpack.c.l.b16 %v428
      %v445 = vunpack.c.l.b16 %v429
      %v446 = vunpack.c.h.b16 %v428
      %v447 = vunpack.c.h.b16 %v429
      %v448 = vunpack.c.l.b16 %v430
      %v449 = vunpack.c.l.b16 %v431
      %v450 = vunpack.c.h.b16 %v430
      %v451 = vunpack.c.h.b16 %v431
      %v452 = vunpack.c.l.b16 %v432
      %v453 = vunpack.c.l.b16 %v433
      %v454 = vunpack.c.h.b16 %v432
      %v455 = vunpack.c.h.b16 %v433
      %v456 = vunpack.c.l.b16 %v434
      %v457 = vunpack.c.l.b16 %v435
      %v458 = vunpack.c.h.b16 %v434
      %v459 = vunpack.c.h.b16 %v435
      %v460 = vpack.c.b16 %v445, %v444
      %v461 = vpack.c.b16 %v447, %v446
      %v462 = vpack.c.b16 %v449, %v448
      %v463 = vpack.c.b16 %v451, %v450
      %v464 = vpack.c.b16 %v453, %v452
      %v465 = vpack.c.b16 %v455, %v454
      %v466 = vpack.c.b16 %v457, %v456
      %v467 = vpack.c.b16 %v459, %v458
      %476 = vst [vmem:[%s208] sm:$0xff] %v460
      %477 = vst [vmem:[%s208 + $0x8] sm:$0xff] %v461
      %478 = vst [vmem:[%s208 + $0x10] sm:$0xff] %v462
      %479 = vst [vmem:[%s208 + $0x18] sm:$0xff] %v463
      %480 = vst [vmem:[%s208 + $0x20] sm:$0xff] %v464
      %481 = vst [vmem:[%s208 + $0x28] sm:$0xff] %v465
      %482 = vst [vmem:[%s208 + $0x30] sm:$0xff] %v466
      %483 = vst [vmem:[%s208 + $0x38] sm:$0xff] %v467
      %s484 = smul.u32 2, %s19
      %p485 = scmp.lt.s32.totalorder %s18, 1
      %s486 = scalar_select %p485, %s18, 1
      %p487 = scmp.lt.s32.totalorder %s484, 1
      %s488 = scalar_select %p487, %s484, 1
      %s489 = smul.addr %s486, 16
      %s490 = sadd.s32 %s488, %s489
      %s491 = smul.addr %s490, 4
      %s492 = scalar_lea.vmem %s3, %s491
      // Predicated region
      $region33: #{_lambda_.9} parent=31 // pred_check
        %p493 = pneg %p116
      $region34: #{_lambda_.9} parent=31 // pred_check_branch
        %495 = sbr.rel (%p493) target = $region36
      $region35: #{_lambda_.9} parent=31 // pred_region
        %s496 = smul.u32 2, %s19
      $region36: #{_lambda_.9} parent=31 // pred_fallthru
        _
    $region32: #{_lambda_.9} parent=5 // pred_fallthru
      _
    %p497 = scmp.le.s32.totalorder 2, %s9
    // Predicated region
    $region37: #{_lambda_.9} parent=5 // pred_check
      %p498 = pneg %p497
    $region38: #{_lambda_.9} parent=5 // pred_check_branch
      %500 = sbr.rel (%p498) target = $region40
    $region39: #{_lambda_.9} parent=5 // pred_region
      %s501 = ssub.s32 %s9, 2
      // Predicated region
      $region41: #{_lambda_.9} parent=39 // pred_check
        %p502 = pneg %p122
      $region42: #{_lambda_.9} parent=39 // pred_check_branch
        %504 = sbr.rel (%p502) target = $region44
      $region43: #{_lambda_.9} parent=39 // pred_region
        %s505 = smul.u32 2, %s21
        %p506 = scmp.lt.s32.totalorder %s20, 1
        %s507 = scalar_select %p506, %s20, 1
        %p508 = scmp.lt.s32.totalorder %s505, 1
        %s509 = scalar_select %p508, %s505, 1
        %s510 = smul.addr %s507, 16
        %s511 = sadd.s32 %s509, %s510
        %s512 = smul.addr %s511, 4
        %s513 = scalar_lea.vmem %s3, %s512
      $region44: #{_lambda_.9} parent=39 // pred_fallthru
        _
    $region40: #{_lambda_.9} parent=5 // pred_fallthru
      _
  $region6: #{_lambda_.9} parent=0 // loop_footer
    %s13 = sadd.s32 1, %s9
  $region7: #{_lambda_.9} parent=0 // loop_footer_branch
    %8 = sbr.rel target = $region3
  $region8: #{_lambda_.9} parent=0 // loop_exit
    _

// kernel: _lambda_.10
$region0: #{_lambda_.10}
  #allocation0 [shape = 'u32[]', space=smem, size = 0x4, offset = 0x4, fixed_abs, tag = 'smem constant byte address 0x4 - core index']
  #allocation1 [shape = 'u32[144,128]{1,0:T(1,128)}', space=vmem, size = 0x12000, scoped, tag = 'internal scratch']
  %s0 = inlined_call_operand.vmem [shape: bf16[2,64,256], index: 0, kind: input, shape index: {}]
  %s1 = inlined_call_operand.vmem [shape: f32[64,9], index: 1, kind: input, shape index: {}]
  %s2 = inlined_call_operand.vmem [shape: f32[64,1], index: 2, kind: input, shape index: {}]
  %s3 = inlined_call_operand.vmem [shape: bf16[2,64,256], index: 3, kind: output, shape index: {}]
  %s4 = sld [smem:[#allocation0]]
  $region45: #{_lambda_.10} parent=0
    _
  %s6 = ssub.s32 1, %s4
  %s7 = scalar_select 0, %s6, %s4
  loop: start=0, step=1, limit=6
  $region2: #{_lambda_.10} parent=0 // loop_pre_header
    _
  $region3: #{_lambda_.10} parent=0 // loop_header
    %s9 = sphi 0, %s13
    %p10 = scmp.ge.s32.totalorder %s9, 6
    %s16 = sphi 0, %s28
    %s17 = sphi 0, %s24
    %s18 = sphi 0, %s16
    %s19 = sphi 0, %s17
    %s20 = sphi 0, %s18
    %s21 = sphi 0, %s19
    %s33 = sphi 0, %s35
    %s36 = sphi 0, %s33
    %s37 = sphi 0, %s36
    %s53 = sphi 0, %s37
    %s59 = sphi 0, %s61
    %s62 = sphi 0, %s59
    %s63 = sphi 0, %s62
    %s79 = sphi 0, %s63
    %s85 = sphi 0, %s87
    %s88 = sphi 0, %s85
    %s89 = sphi 0, %s88
    %s105 = sphi 0, %s89
    %s113 = sphi 0, %s115
    %s116 = sphi 0, %s113
    %s117 = sphi 0, %s116
    %s133 = sphi 0, %s117
  $region4: #{_lambda_.10} parent=0 // loop_header_branch
    %12 = sbr.rel (%p10) target = $region8
  $region5: #{_lambda_.10} parent=0 // loop_body
    %s14 = ssub.s32 %s9, 1
    %s15 = ssub.s32 %s9, 2
    %s22 = sadd.s32 1, %s17
    %p23 = scmp.ge.s32.totalorder %s22, 2
    %s24 = scalar_select %p23, 0, %s22
    %s25 = sadd.s32 1, %s16
    %s26 = scalar_select %p23, %s25, %s16
    %p27 = scmp.ge.s32.totalorder %s26, 2
    %s28 = scalar_select %p27, 0, %s26
    %s29 = ssub.s32 %s16, %s28
    %s30 = ssub.s32 %s17, %s24
    %s31 = sor.u32 %s29, %s30
    %p32 = scmp.eq.s32.totalorder %s31, 0
    %s34 = sadd.s32 %s33, 1
    %s35 = scalar_select %p32, %s33, %s34
    %p38 = pneg %p32
    %p39 = scmp.eq.s32.totalorder %s9, 3
    %p40 = por %p38, %p39
    %p41 = scmp.ne.s32.totalorder %s33, %s36
    %p42 = scmp.eq.s32.totalorder %s9, 0
    %p43 = por %p41, %p42
    %p44 = scmp.ne.s32.totalorder %s33, %s36
    %p45 = scmp.eq.s32.totalorder %s14, 3
    %p46 = por %p44, %p45
    %p47 = scmp.ne.s32.totalorder %s36, %s37
    %p48 = scmp.eq.s32.totalorder %s14, 0
    %p49 = por %p47, %p48
    %p50 = scmp.ne.s32.totalorder %s36, %s37
    %p51 = scmp.eq.s32.totalorder %s15, 3
    %p52 = por %p50, %p51
    %p54 = scmp.ne.s32.totalorder %s37, %s53
    %p55 = scmp.eq.s32.totalorder %s15, 0
    %p56 = por %p54, %p55
    %s57 = ssub.s32 %s17, %s24
    %p58 = scmp.eq.s32.totalorder %s57, 0
    %s60 = sadd.s32 %s59, 1
    %s61 = scalar_select %p58, %s59, %s60
    %p64 = pneg %p58
    %p65 = scmp.eq.s32.totalorder %s9, 3
    %p66 = por %p64, %p65
    %p67 = scmp.ne.s32.totalorder %s59, %s62
    %p68 = scmp.eq.s32.totalorder %s9, 0
    %p69 = por %p67, %p68
    %p70 = scmp.ne.s32.totalorder %s59, %s62
    %p71 = scmp.eq.s32.totalorder %s14, 3
    %p72 = por %p70, %p71
    %p73 = scmp.ne.s32.totalorder %s62, %s63
    %p74 = scmp.eq.s32.totalorder %s14, 0
    %p75 = por %p73, %p74
    %p76 = scmp.ne.s32.totalorder %s62, %s63
    %p77 = scmp.eq.s32.totalorder %s15, 3
    %p78 = por %p76, %p77
    %p80 = scmp.ne.s32.totalorder %s63, %s79
    %p81 = scmp.eq.s32.totalorder %s15, 0
    %p82 = por %p80, %p81
    %s83 = ssub.s32 %s17, %s24
    %p84 = scmp.eq.s32.totalorder %s83, 0
    %s86 = sadd.s32 %s85, 1
    %s87 = scalar_select %p84, %s85, %s86
    %p90 = pneg %p84
    %p91 = scmp.eq.s32.totalorder %s9, 3
    %p92 = por %p90, %p91
    %p93 = scmp.ne.s32.totalorder %s85, %s88
    %p94 = scmp.eq.s32.totalorder %s9, 0
    %p95 = por %p93, %p94
    %p96 = scmp.ne.s32.totalorder %s85, %s88
    %p97 = scmp.eq.s32.totalorder %s14, 3
    %p98 = por %p96, %p97
    %p99 = scmp.ne.s32.totalorder %s88, %s89
    %p100 = scmp.eq.s32.totalorder %s14, 0
    %p101 = por %p99, %p100
    %p102 = scmp.ne.s32.totalorder %s88, %s89
    %p103 = scmp.eq.s32.totalorder %s15, 3
    %p104 = por %p102, %p103
    %p106 = scmp.ne.s32.totalorder %s89, %s105
    %p107 = scmp.eq.s32.totalorder %s15, 0
    %p108 = por %p106, %p107
    %s109 = ssub.s32 %s16, %s28
    %s110 = ssub.s32 %s17, %s24
    %s111 = sor.u32 %s109, %s110
    %p112 = scmp.eq.s32.totalorder %s111, 0
    %s114 = sadd.s32 %s113, 1
    %s115 = scalar_select %p112, %s113, %s114
    %p118 = pneg %p112
    %p119 = scmp.eq.s32.totalorder %s9, 3
    %p120 = por %p118, %p119
    %p121 = scmp.ne.s32.totalorder %s113, %s116
    %p122 = scmp.eq.s32.totalorder %s9, 0
    %p123 = por %p121, %p122
    %p124 = scmp.ne.s32.totalorder %s113, %s116
    %p125 = scmp.eq.s32.totalorder %s14, 3
    %p126 = por %p124, %p125
    %p127 = scmp.ne.s32.totalorder %s116, %s117
    %p128 = scmp.eq.s32.totalorder %s14, 0
    %p129 = por %p127, %p128
    %p130 = scmp.ne.s32.totalorder %s116, %s117
    %p131 = scmp.eq.s32.totalorder %s15, 3
    %p132 = por %p130, %p131
    %p134 = scmp.ne.s32.totalorder %s117, %s133
    %p135 = scmp.eq.s32.totalorder %s15, 0
    %p136 = por %p134, %p135
    %p137 = scmp.le.s32.totalorder 1, %s9
    %p138 = scmp.lt.s32.totalorder %s9, 5
    %p139 = pnand %p137, %p138
    %p140 = pneg %p139
    // Predicated region
    $region9: #{_lambda_.10} parent=5 // pred_check
      _
    $region10: #{_lambda_.10} parent=5 // pred_check_branch
      %142 = sbr.rel (%p139) target = $region12
    $region11: #{_lambda_.10} parent=5 // pred_region
      %s143 = ssub.s32 %s9, 1
    $region12: #{_lambda_.10} parent=5 // pred_fallthru
      _
    %p144 = scmp.lt.s32.totalorder %s9, 4
    // Predicated region
    $region13: #{_lambda_.10} parent=5 // pred_check
      %p145 = pneg %p144
    $region14: #{_lambda_.10} parent=5 // pred_check_branch
      %147 = sbr.rel (%p145) target = $region16
    $region15: #{_lambda_.10} parent=5 // pred_region
      // Predicated region
      $region17: #{_lambda_.10} parent=15 // pred_check
        %p148 = pneg %p43
      $region18: #{_lambda_.10} parent=15 // pred_check_branch
        %150 = sbr.rel (%p148) target = $region20
      $region19: #{_lambda_.10} parent=15 // pred_region
        %s151 = smul.u32 4, %s17
        %p152 = scmp.lt.s32.totalorder %s16, 1
        %s153 = scalar_select %p152, %s16, 1
        %p154 = scmp.lt.s32.totalorder %s151, 7
        %s155 = scalar_select %p154, %s151, 7
        %s156 = smul.addr %s155, 2
        %s157 = smul.addr %s153, 16
        %s158 = sadd.s32 %s156, %s157
        %s159 = smul.addr %s158, 4
        %s160 = scalar_lea.vmem %s0, %s159
        %s161 = smul.u32 4, %s17
      $region20: #{_lambda_.10} parent=15 // pred_fallthru
        _
      // Predicated region
      $region21: #{_lambda_.10} parent=15 // pred_check
        %p162 = pneg %p69
      $region22: #{_lambda_.10} parent=15 // pred_check_branch
        %164 = sbr.rel (%p162) target = $region24
      $region23: #{_lambda_.10} parent=15 // pred_region
        %s165 = smul.u32 4, %s17
        %p166 = scmp.lt.s32.totalorder %s165, 7
        %s167 = scalar_select %p166, %s165, 7
        %s168 = smul.addr %s167, 8
        %s169 = scalar_lea.vmem %s1, %s168
        %s170 = smul.u32 4, %s17
      $region24: #{_lambda_.10} parent=15 // pred_fallthru
        _
      // Predicated region
      $region25: #{_lambda_.10} parent=15 // pred_check
        %p171 = pneg %p95
      $region26: #{_lambda_.10} parent=15 // pred_check_branch
        %173 = sbr.rel (%p171) target = $region28
      $region27: #{_lambda_.10} parent=15 // pred_region
        %s174 = smul.u32 4, %s17
        %p175 = scmp.lt.s32.totalorder %s174, 7
        %s176 = scalar_select %p175, %s174, 7
        %s177 = smul.addr %s176, 8
        %s178 = scalar_lea.vmem %s2, %s177
        %s179 = smul.u32 4, %s17
      $region28: #{_lambda_.10} parent=15 // pred_fallthru
        _
    $region16: #{_lambda_.10} parent=5 // pred_fallthru
      _
    %p180 = scmp.le.s32.totalorder 1, %s9
    %p181 = scmp.lt.s32.totalorder %s9, 5
    %p182 = pnand %p180, %p181
    %p183 = pneg %p182
    // Predicated region
    $region29: #{_lambda_.10} parent=5 // pred_check
      _
    $region30: #{_lambda_.10} parent=5 // pred_check_branch
      %185 = sbr.rel (%p182) target = $region32
    $region31: #{_lambda_.10} parent=5 // pred_region
      %s186 = ssub.s32 %s9, 1
      %s187 = smul.u32 4, %s19
      %p188 = scmp.lt.s32.totalorder %s18, 1
      %s189 = scalar_select %p188, %s18, 1
      %p190 = scmp.lt.s32.totalorder %s187, 7
      %s191 = scalar_select %p190, %s187, 7
      %s192 = smul.addr %s191, 2
      %s193 = smul.addr %s189, 16
      %s194 = sadd.s32 %s192, %s193
      %s195 = smul.addr %s194, 4
      %s196 = scalar_lea.vmem %s0, %s195
      %p197 = pneg %p49
      %p198 = pneg %p46
      %s199 = smul.u32 4, %s19
      %p200 = scmp.lt.s32.totalorder %s199, 7
      %s201 = scalar_select %p200, %s199, 7
      %s202 = smul.addr %s201, 8
      %s203 = scalar_lea.vmem %s1, %s202
      %p204 = pneg %p75
      %p205 = pneg %p72
      %s206 = smul.u32 4, %s19
      %p207 = scmp.lt.s32.totalorder %s206, 7
      %s208 = scalar_select %p207, %s206, 7
      %s209 = smul.addr %s208, 8
      %s210 = scalar_lea.vmem %s2, %s209
      %p211 = pneg %p101
      %p212 = pneg %p98
      %p213 = pneg %p129
      %p214 = pneg %p126
      %s215 = smul.u32 4, %s19
      %p216 = scmp.lt.s32.totalorder %s18, 1
      %s217 = scalar_select %p216, %s18, 1
      %p218 = scmp.lt.s32.totalorder %s215, 7
      %s219 = scalar_select %p218, %s215, 7
      %s220 = smul.addr %s219, 2
      %s221 = smul.addr %s217, 16
      %s222 = sadd.s32 %s220, %s221
      %s223 = smul.addr %s222, 4
      %s224 = scalar_lea.vmem %s3, %s223
      %s225 = smul.u32 4, %s19
      %p226 = scmp.lt.s32.totalorder %s18, 1
      %s227 = scalar_select %p226, %s18, 1
      %p228 = scmp.lt.s32.totalorder %s225, 7
      %s229 = scalar_select %p228, %s225, 7
      %s230 = smul.addr %s229, 2
      %s231 = smul.addr %s227, 16
      %s232 = sadd.s32 %s230, %s231
      %s233 = smul.addr %s232, 4
      %s234 = scalar_lea.vmem %s0, %s233
      %s235 = smul.u32 4, %s19
      %s236 = smul.u32 4, %s19
      %p237 = scmp.lt.s32.totalorder %s236, 7
      %s238 = scalar_select %p237, %s236, 7
      %s239 = smul.addr %s238, 8
      %s240 = scalar_lea.vmem %s1, %s239
      %s241 = smul.u32 4, %s19
      %s242 = smul.u32 4, %s19
      %p243 = scmp.lt.s32.totalorder %s242, 7
      %s244 = scalar_select %p243, %s242, 7
      %s245 = smul.addr %s244, 8
      %s246 = scalar_lea.vmem %s2, %s245
      %s247 = smul.u32 4, %s19
      %s248 = smul.u32 4, %s19
      %p249 = scmp.lt.s32.totalorder %s18, 1
      %s250 = scalar_select %p249, %s18, 1
      %p251 = scmp.lt.s32.totalorder %s248, 7
      %s252 = scalar_select %p251, %s248, 7
      %s253 = smul.addr %s252, 2
      %s254 = smul.addr %s250, 16
      %s255 = sadd.s32 %s253, %s254
      %s256 = smul.addr %s255, 4
      %s257 = scalar_lea.vmem %s3, %s256
      %s258 = smul.u32 4, %s19
      %v259 = vld [vmem:[%s234] sm:$0xff]
      %v260 = vld [vmem:[%s234 + $0x8] sm:$0xff]
      %v261 = vld [vmem:[%s234 + $0x10] sm:$0xff]
      %v262 = vld [vmem:[%s234 + $0x18] sm:$0xff]
      %v263 = vunpack.c.l.bf16 %v259
      %v264 = vunpack.c.h.bf16 %v259
      %v265 = vunpack.c.l.bf16 %v260
      %v266 = vunpack.c.h.bf16 %v260
      %v267 = vunpack.c.l.bf16 %v261
      %v268 = vunpack.c.h.bf16 %v261
      %v269 = vunpack.c.l.bf16 %v262
      %v270 = vunpack.c.h.bf16 %v262
      %v271 = vlaneseq
      %v272 = vand.u32 %v271, 127
      %v273 = vadd.s32 %v272, 128
      %vm274 = vcmp.lt.s32.totalorder %v272, 0
      %v275 = vsub.s32 0, %v272
      %v276 = vsel %vm274, %v275, %v272
      %v277 = vshrl.u32 %v276, 4
      %v278 = vand.u32 %v276, 15
      %v279 = vsub.s32 0, %v278
      %v280 = vsel %vm274, %v279, %v278
      %vm281 = vcmp.lt.s32.totalorder %v273, 0
      %v282 = vsub.s32 0, %v273
      %v283 = vsel %vm281, %v282, %v273
      %v284 = vshrl.u32 %v283, 4
      %v285 = vand.u32 %v283, 15
      %v286 = vsub.s32 0, %v285
      %v287 = vsel %vm281, %v286, %v285
      %vm288 = vcmp.ne.s32.totalorder %v280, 0
      %vm289 = vcmp.ne.s32.totalorder %v287, 0
      %vm290 = vcmp.lt.s32.totalorder %v280, 0
      %vm291 = vcmp.lt.s32.totalorder %v287, 0
      %vm292 = vmand %vm290, %vm288
      %vm293 = vmand %vm291, %vm289
      %v294 = vadd.s32 %v280, 16
      %v295 = vadd.s32 %v287, 16
      %v296 = vsel %vm292, %v294, %v280
      %v297 = vsel %vm293, %v295, %v287
      %vm298 = vcmp.ne.s32.totalorder %v296, 0
      %vm299 = vcmp.ne.s32.totalorder %v297, 0
      %300 = vrot.lane.b32.xlu0 %v263, 1
      %v301 = vpop.permute.xlu0 %300
      %302 = vrot.lane.b32.xlu0 %v265, 1
      %v303 = vpop.permute.xlu0 %302
      %304 = vrot.lane.b32.xlu0 %v267, 1
      %v305 = vpop.permute.xlu0 %304
      %306 = vrot.lane.b32.xlu0 %v269, 1
      %v307 = vpop.permute.xlu0 %306
      %308 = vrot.lane.b32.xlu0 %v264, 1
      %v309 = vpop.permute.xlu0 %308
      %310 = vrot.lane.b32.xlu0 %v266, 1
      %v311 = vpop.permute.xlu0 %310
      %312 = vrot.lane.b32.xlu0 %v268, 1
      %v313 = vpop.permute.xlu0 %312
      %314 = vrot.lane.b32.xlu0 %v270, 1
      %v315 = vpop.permute.xlu0 %314
      %vm316 = vcmp.lt.s32.totalorder %v272, 1
      %v317 = vsel %vm316, %v301, %v309
      %v318 = vsel %vm316, %v303, %v311
      %v319 = vsel %vm316, %v305, %v313
      %v320 = vsel %vm316, %v307, %v315
      %v321 = vsel %vm316, %v309, %v301
      %v322 = vsel %vm316, %v311, %v303
      %v323 = vsel %vm316, %v313, %v305
      %v324 = vsel %vm316, %v315, %v307
      %v325 = vsel %vm298, 1, 0
      %v326 = vsel %vm299, 1, 0
      %vm327 = vcmp.eq.s32.totalorder %v325, 1
      %vm328 = vcmp.eq.s32.totalorder %v326, 1
      %v329 = vsel %vm327, %v321, 0.0
      %v330 = vsel %vm328, %v317, 0.0
      %v331 = vsel %vm327, %v322, 0.0
      %v332 = vsel %vm328, %v318, 0.0
      %v333 = vsel %vm327, %v323, 0.0
      %v334 = vsel %vm328, %v319, 0.0
      %v335 = vsel %vm327, %v324, 0.0
      %v336 = vsel %vm328, %v320, 0.0
      %vm337 = vcmp.ne.s32.totalorder %v296, 15
      %vm338 = vcmp.ne.s32.totalorder %v297, 15
      %339 = vrot.lane.b32.xlu0 %v263, 127
      %v340 = vpop.permute.xlu0 %339
      %341 = vrot.lane.b32.xlu0 %v265, 127
      %v342 = vpop.permute.xlu0 %341
      %343 = vrot.lane.b32.xlu0 %v267, 127
      %v344 = vpop.permute.xlu0 %343
      %345 = vrot.lane.b32.xlu0 %v269, 127
      %v346 = vpop.permute.xlu0 %345
      %347 = vrot.lane.b32.xlu0 %v264, 127
      %v348 = vpop.permute.xlu0 %347
      %349 = vrot.lane.b32.xlu0 %v266, 127
      %v350 = vpop.permute.xlu0 %349
      %351 = vrot.lane.b32.xlu0 %v268, 127
      %v352 = vpop.permute.xlu0 %351
      %353 = vrot.lane.b32.xlu0 %v270, 127
      %v354 = vpop.permute.xlu0 %353
      %vm355 = vcmp.lt.s32.totalorder %v272, 127
      %v356 = vsel %vm355, %v340, %v348
      %v357 = vsel %vm355, %v342, %v350
      %v358 = vsel %vm355, %v344, %v352
      %v359 = vsel %vm355, %v346, %v354
      %v360 = vsel %vm355, %v348, %v340
      %v361 = vsel %vm355, %v350, %v342
      %v362 = vsel %vm355, %v352, %v344
      %v363 = vsel %vm355, %v354, %v346
      %v364 = vsel %vm337, 1, 0
      %v365 = vsel %vm338, 1, 0
      %vm366 = vcmp.eq.s32.totalorder %v364, 1
      %vm367 = vcmp.eq.s32.totalorder %v365, 1
      %v368 = vsel %vm366, %v356, 0.0
      %v369 = vsel %vm367, %v360, 0.0
      %v370 = vsel %vm366, %v357, 0.0
      %v371 = vsel %vm367, %v361, 0.0
      %v372 = vsel %vm366, %v358, 0.0
      %v373 = vsel %vm367, %v362, 0.0
      %v374 = vsel %vm366, %v359, 0.0
      %v375 = vsel %vm367, %v363, 0.0
      %v376 = vld [vmem:[%s240] sm:$0xff]
      %v377 = vld [vmem:[%s240 + $0x8] sm:$0xff]
      %v378 = vld [vmem:[%s240 + $0x10] sm:$0xff]
      %v379 = vld [vmem:[%s240 + $0x18] sm:$0xff]
      %381 = vset.pattern.permute.xlu0 3
      %382 = vperm.xlu0 %381, %v376
      %v383 = vpop.permute.xlu0 %382
      %386 = vset.pattern.permute.xlu0 3
      %387 = vperm.xlu0 %386, %v377
      %v388 = vpop.permute.xlu0 %387
      %391 = vset.pattern.permute.xlu0 3
      %392 = vperm.xlu0 %391, %v378
      %v393 = vpop.permute.xlu0 %392
      %396 = vset.pattern.permute.xlu0 3
      %397 = vperm.xlu0 %396, %v379
      %v398 = vpop.permute.xlu0 %397
      %v400 = vmul.f32 %v329, %v383
      %v401 = vmul.f32 %v330, %v383
      %v402 = vmul.f32 %v331, %v388
      %v403 = vmul.f32 %v332, %v388
      %v404 = vmul.f32 %v333, %v393
      %v405 = vmul.f32 %v334, %v393
      %v406 = vmul.f32 %v335, %v398
      %v407 = vmul.f32 %v336, %v398
      %408 = vset.pattern.permute.xlu0 4
      %409 = vperm.xlu0 %408, %v376
      %v410 = vpop.permute.xlu0 %409
      %412 = vset.pattern.permute.xlu0 4
      %413 = vperm.xlu0 %412, %v377
      %v414 = vpop.permute.xlu0 %413
      %416 = vset.pattern.permute.xlu0 4
      %417 = vperm.xlu0 %416, %v378
      %v418 = vpop.permute.xlu0 %417
      %420 = vset.pattern.permute.xlu0 4
      %421 = vperm.xlu0 %420, %v379
      %v422 = vpop.permute.xlu0 %421
      %v424 = vmul.f32 %v263, %v410
      %v425 = vmul.f32 %v264, %v410
      %v426 = vmul.f32 %v265, %v414
      %v427 = vmul.f32 %v266, %v414
      %v428 = vmul.f32 %v267, %v418
      %v429 = vmul.f32 %v268, %v418
      %v430 = vmul.f32 %v269, %v422
      %v431 = vmul.f32 %v270, %v422
      %v432 = vadd.f32 %v400, %v424
      %v433 = vadd.f32 %v401, %v425
      %v434 = vadd.f32 %v402, %v426
      %v435 = vadd.f32 %v403, %v427
      %v436 = vadd.f32 %v404, %v428
      %v437 = vadd.f32 %v405, %v429
      %v438 = vadd.f32 %v406, %v430
      %v439 = vadd.f32 %v407, %v431
      %440 = vset.pattern.permute.xlu0 5
      %441 = vperm.xlu0 %440, %v376
      %v442 = vpop.permute.xlu0 %441
      %444 = vset.pattern.permute.xlu0 5
      %445 = vperm.xlu0 %444, %v377
      %v446 = vpop.permute.xlu0 %445
      %448 = vset.pattern.permute.xlu0 5
      %449 = vperm.xlu0 %448, %v378
      %v450 = vpop.permute.xlu0 %449
      %452 = vset.pattern.permute.xlu0 5
      %453 = vperm.xlu0 %452, %v379
      %v454 = vpop.permute.xlu0 %453
      %v456 = vmul.f32 %v368, %v442
      %v457 = vmul.f32 %v369, %v442
      %v458 = vmul.f32 %v370, %v446
      %v459 = vmul.f32 %v371, %v446
      %v460 = vmul.f32 %v372, %v450
      %v461 = vmul.f32 %v373, %v450
      %v462 = vmul.f32 %v374, %v454
      %v463 = vmul.f32 %v375, %v454
      %v464 = vadd.f32 %v432, %v456
      %v465 = vadd.f32 %v433, %v457
      %v466 = vadd.f32 %v434, %v458
      %v467 = vadd.f32 %v435, %v459
      %v468 = vadd.f32 %v436, %v460
      %v469 = vadd.f32 %v437, %v461
      %v470 = vadd.f32 %v438, %v462
      %v471 = vadd.f32 %v439, %v463
      %vm472 = vcmp.ge.s32.totalorder %v272, 16
      %vm473 = vcmp.ge.s32.totalorder %v273, 16
      %474 = vset.pattern.permute.xlu0 0
      %475 = vperm.xlu0 %474, %v376
      %v476 = vpop.permute.xlu0 %475
      %478 = vset.pattern.permute.xlu0 0
      %479 = vperm.xlu0 %478, %v377
      %v480 = vpop.permute.xlu0 %479
      %482 = vset.pattern.permute.xlu0 0
      %483 = vperm.xlu0 %482, %v378
      %v484 = vpop.permute.xlu0 %483
      %486 = vset.pattern.permute.xlu0 0
      %487 = vperm.xlu0 %486, %v379
      %v488 = vpop.permute.xlu0 %487
      %v490 = vmul.f32 %v329, %v476
      %v491 = vmul.f32 %v330, %v476
      %v492 = vmul.f32 %v331, %v480
      %v493 = vmul.f32 %v332, %v480
      %v494 = vmul.f32 %v333, %v484
      %v495 = vmul.f32 %v334, %v484
      %v496 = vmul.f32 %v335, %v488
      %v497 = vmul.f32 %v336, %v488
      %498 = vset.pattern.permute.xlu0 1
      %499 = vperm.xlu0 %498, %v376
      %v500 = vpop.permute.xlu0 %499
      %502 = vset.pattern.permute.xlu0 1
      %503 = vperm.xlu0 %502, %v377
      %v504 = vpop.permute.xlu0 %503
      %506 = vset.pattern.permute.xlu0 1
      %507 = vperm.xlu0 %506, %v378
      %v508 = vpop.permute.xlu0 %507
      %510 = vset.pattern.permute.xlu0 1
      %511 = vperm.xlu0 %510, %v379
      %v512 = vpop.permute.xlu0 %511
      %v514 = vmul.f32 %v263, %v500
      %v515 = vmul.f32 %v264, %v500
      %v516 = vmul.f32 %v265, %v504
      %v517 = vmul.f32 %v266, %v504
      %v518 = vmul.f32 %v267, %v508
      %v519 = vmul.f32 %v268, %v508
      %v520 = vmul.f32 %v269, %v512
      %v521 = vmul.f32 %v270, %v512
      %v522 = vadd.f32 %v490, %v514
      %v523 = vadd.f32 %v491, %v515
      %v524 = vadd.f32 %v492, %v516
      %v525 = vadd.f32 %v493, %v517
      %v526 = vadd.f32 %v494, %v518
      %v527 = vadd.f32 %v495, %v519
      %v528 = vadd.f32 %v496, %v520
      %v529 = vadd.f32 %v497, %v521
      %530 = vset.pattern.permute.xlu0 2
      %531 = vperm.xlu0 %530, %v376
      %v532 = vpop.permute.xlu0 %531
      %534 = vset.pattern.permute.xlu0 2
      %535 = vperm.xlu0 %534, %v377
      %v536 = vpop.permute.xlu0 %535
      %538 = vset.pattern.permute.xlu0 2
      %539 = vperm.xlu0 %538, %v378
      %v540 = vpop.permute.xlu0 %539
      %542 = vset.pattern.permute.xlu0 2
      %543 = vperm.xlu0 %542, %v379
      %v544 = vpop.permute.xlu0 %543
      %v546 = vmul.f32 %v368, %v532
      %v547 = vmul.f32 %v369, %v532
      %v548 = vmul.f32 %v370, %v536
      %v549 = vmul.f32 %v371, %v536
      %v550 = vmul.f32 %v372, %v540
      %v551 = vmul.f32 %v373, %v540
      %v552 = vmul.f32 %v374, %v544
      %v553 = vmul.f32 %v375, %v544
      %v554 = vadd.f32 %v522, %v546
      %v555 = vadd.f32 %v523, %v547
      %v556 = vadd.f32 %v524, %v548
      %v557 = vadd.f32 %v525, %v549
      %v558 = vadd.f32 %v526, %v550
      %v559 = vadd.f32 %v527, %v551
      %v560 = vadd.f32 %v528, %v552
      %v561 = vadd.f32 %v529, %v553
      %562 = vrot.lane.b32.xlu0 %v554, 16
      %v563 = vpop.permute.xlu0 %562
      %564 = vrot.lane.b32.xlu0 %v556, 16
      %v565 = vpop.permute.xlu0 %564
      %566 = vrot.lane.b32.xlu0 %v558, 16
      %v567 = vpop.permute.xlu0 %566
      %568 = vrot.lane.b32.xlu0 %v560, 16
      %v569 = vpop.permute.xlu0 %568
      %570 = vrot.lane.b32.xlu0 %v555, 16
      %v571 = vpop.permute.xlu0 %570
      %572 = vrot.lane.b32.xlu0 %v557, 16
      %v573 = vpop.permute.xlu0 %572
      %574 = vrot.lane.b32.xlu0 %v559, 16
      %v575 = vpop.permute.xlu0 %574
      %576 = vrot.lane.b32.xlu0 %v561, 16
      %v577 = vpop.permute.xlu0 %576
      %vm578 = vcmp.lt.s32.totalorder %v272, 16
      %v579 = vsel %vm578, %v563, %v571
      %v580 = vsel %vm578, %v565, %v573
      %v581 = vsel %vm578, %v567, %v575
      %v582 = vsel %vm578, %v569, %v577
      %v583 = vsel %vm578, %v571, %v563
      %v584 = vsel %vm578, %v573, %v565
      %v585 = vsel %vm578, %v575, %v567
      %v586 = vsel %vm578, %v577, %v569
      %v587 = vsel %vm472, 1, 0
      %v588 = vsel %vm473, 1, 0
      %vm589 = vcmp.eq.s32.totalorder %v587, 1
      %vm590 = vcmp.eq.s32.totalorder %v588, 1
      %v591 = vsel %vm589, %v583, 0.0
      %v592 = vsel %vm590, %v579, 0.0
      %v593 = vsel %vm589, %v584, 0.0
      %v594 = vsel %vm590, %v580, 0.0
      %v595 = vsel %vm589, %v585, 0.0
      %v596 = vsel %vm590, %v581, 0.0
      %v597 = vsel %vm589, %v586, 0.0
      %v598 = vsel %vm590, %v582, 0.0
      %vm599 = vcmp.lt.s32.totalorder %v272, 240
      %vm600 = vcmp.lt.s32.totalorder %v273, 240
      %601 = vset.pattern.permute.xlu0 6
      %602 = vperm.xlu0 %601, %v376
      %v603 = vpop.permute.xlu0 %602
      %605 = vset.pattern.permute.xlu0 6
      %606 = vperm.xlu0 %605, %v377
      %v607 = vpop.permute.xlu0 %606
      %609 = vset.pattern.permute.xlu0 6
      %610 = vperm.xlu0 %609, %v378
      %v611 = vpop.permute.xlu0 %610
      %613 = vset.pattern.permute.xlu0 6
      %614 = vperm.xlu0 %613, %v379
      %v615 = vpop.permute.xlu0 %614
      %v617 = vmul.f32 %v329, %v603
      %v618 = vmul.f32 %v330, %v603
      %v619 = vmul.f32 %v331, %v607
      %v620 = vmul.f32 %v332, %v607
      %v621 = vmul.f32 %v333, %v611
      %v622 = vmul.f32 %v334, %v611
      %v623 = vmul.f32 %v335, %v615
      %v624 = vmul.f32 %v336, %v615
      %625 = vset.pattern.permute.xlu0 7
      %626 = vperm.xlu0 %625, %v376
      %v627 = vpop.permute.xlu0 %626
      %629 = vset.pattern.permute.xlu0 7
      %630 = vperm.xlu0 %629, %v377
      %v631 = vpop.permute.xlu0 %630
      %633 = vset.pattern.permute.xlu0 7
      %634 = vperm.xlu0 %633, %v378
      %v635 = vpop.permute.xlu0 %634
      %637 = vset.pattern.permute.xlu0 7
      %638 = vperm.xlu0 %637, %v379
      %v639 = vpop.permute.xlu0 %638
      %v641 = vmul.f32 %v263, %v627
      %v642 = vmul.f32 %v264, %v627
      %v643 = vmul.f32 %v265, %v631
      %v644 = vmul.f32 %v266, %v631
      %v645 = vmul.f32 %v267, %v635
      %v646 = vmul.f32 %v268, %v635
      %v647 = vmul.f32 %v269, %v639
      %v648 = vmul.f32 %v270, %v639
      %v649 = vadd.f32 %v617, %v641
      %v650 = vadd.f32 %v618, %v642
      %v651 = vadd.f32 %v619, %v643
      %v652 = vadd.f32 %v620, %v644
      %v653 = vadd.f32 %v621, %v645
      %v654 = vadd.f32 %v622, %v646
      %v655 = vadd.f32 %v623, %v647
      %v656 = vadd.f32 %v624, %v648
      %657 = vset.pattern.permute.xlu0 8
      %658 = vperm.xlu0 %657, %v376
      %v659 = vpop.permute.xlu0 %658
      %661 = vset.pattern.permute.xlu0 8
      %662 = vperm.xlu0 %661, %v377
      %v663 = vpop.permute.xlu0 %662
      %665 = vset.pattern.permute.xlu0 8
      %666 = vperm.xlu0 %665, %v378
      %v667 = vpop.permute.xlu0 %666
      %669 = vset.pattern.permute.xlu0 8
      %670 = vperm.xlu0 %669, %v379
      %v671 = vpop.permute.xlu0 %670
      %v673 = vmul.f32 %v368, %v659
      %v674 = vmul.f32 %v369, %v659
      %v675 = vmul.f32 %v370, %v663
      %v676 = vmul.f32 %v371, %v663
      %v677 = vmul.f32 %v372, %v667
      %v678 = vmul.f32 %v373, %v667
      %v679 = vmul.f32 %v374, %v671
      %v680 = vmul.f32 %v375, %v671
      %v681 = vadd.f32 %v649, %v673
      %v682 = vadd.f32 %v650, %v674
      %v683 = vadd.f32 %v651, %v675
      %v684 = vadd.f32 %v652, %v676
      %v685 = vadd.f32 %v653, %v677
      %v686 = vadd.f32 %v654, %v678
      %v687 = vadd.f32 %v655, %v679
      %v688 = vadd.f32 %v656, %v680
      %689 = vrot.lane.b32.xlu0 %v681, 112
      %v690 = vpop.permute.xlu0 %689
      %691 = vrot.lane.b32.xlu0 %v683, 112
      %v692 = vpop.permute.xlu0 %691
      %693 = vrot.lane.b32.xlu0 %v685, 112
      %v694 = vpop.permute.xlu0 %693
      %695 = vrot.lane.b32.xlu0 %v687, 112
      %v696 = vpop.permute.xlu0 %695
      %697 = vrot.lane.b32.xlu0 %v682, 112
      %v698 = vpop.permute.xlu0 %697
      %699 = vrot.lane.b32.xlu0 %v684, 112
      %v700 = vpop.permute.xlu0 %699
      %701 = vrot.lane.b32.xlu0 %v686, 112
      %v702 = vpop.permute.xlu0 %701
      %703 = vrot.lane.b32.xlu0 %v688, 112
      %v704 = vpop.permute.xlu0 %703
      %vm705 = vcmp.lt.s32.totalorder %v272, 112
      %v706 = vsel %vm705, %v690, %v698
      %v707 = vsel %vm705, %v692, %v700
      %v708 = vsel %vm705, %v694, %v702
      %v709 = vsel %vm705, %v696, %v704
      %v710 = vsel %vm705, %v698, %v690
      %v711 = vsel %vm705, %v700, %v692
      %v712 = vsel %vm705, %v702, %v694
      %v713 = vsel %vm705, %v704, %v696
      %v714 = vsel %vm599, 1, 0
      %v715 = vsel %vm600, 1, 0
      %vm716 = vcmp.eq.s32.totalorder %v714, 1
      %vm717 = vcmp.eq.s32.totalorder %v715, 1
      %v718 = vsel %vm716, %v706, 0.0
      %v719 = vsel %vm717, %v710, 0.0
      %v720 = vsel %vm716, %v707, 0.0
      %v721 = vsel %vm717, %v711, 0.0
      %v722 = vsel %vm716, %v708, 0.0
      %v723 = vsel %vm717, %v712, 0.0
      %v724 = vsel %vm716, %v709, 0.0
      %v725 = vsel %vm717, %v713, 0.0
      %v726 = vadd.f32 %v464, %v591
      %v727 = vadd.f32 %v465, %v592
      %v728 = vadd.f32 %v466, %v593
      %v729 = vadd.f32 %v467, %v594
      %v730 = vadd.f32 %v468, %v595
      %v731 = vadd.f32 %v469, %v596
      %v732 = vadd.f32 %v470, %v597
      %v733 = vadd.f32 %v471, %v598
      %v734 = vadd.f32 %v726, %v718
      %v735 = vadd.f32 %v727, %v719
      %v736 = vadd.f32 %v728, %v720
      %v737 = vadd.f32 %v729, %v721
      %v738 = vadd.f32 %v730, %v722
      %v739 = vadd.f32 %v731, %v723
      %v740 = vadd.f32 %v732, %v724
      %v741 = vadd.f32 %v733, %v725
      %v742 = vld [vmem:[%s246] sm:$0xff]
      %v743 = vld [vmem:[%s246 + $0x8] sm:$0xff]
      %v744 = vld [vmem:[%s246 + $0x10] sm:$0xff]
      %v745 = vld [vmem:[%s246 + $0x18] sm:$0xff]
      %747 = vset.pattern.permute.xlu0 0
      %748 = vperm.xlu0 %747, %v742
      %v749 = vpop.permute.xlu0 %748
      %752 = vset.pattern.permute.xlu0 0
      %753 = vperm.xlu0 %752, %v743
      %v754 = vpop.permute.xlu0 %753
      %757 = vset.pattern.permute.xlu0 0
      %758 = vperm.xlu0 %757, %v744
      %v759 = vpop.permute.xlu0 %758
      %762 = vset.pattern.permute.xlu0 0
      %763 = vperm.xlu0 %762, %v745
      %v764 = vpop.permute.xlu0 %763
      %v766 = vadd.f32 %v734, %v749
      %v767 = vadd.f32 %v735, %v749
      %v768 = vadd.f32 %v736, %v754
      %v769 = vadd.f32 %v737, %v754
      %v770 = vadd.f32 %v738, %v759
      %v771 = vadd.f32 %v739, %v759
      %v772 = vadd.f32 %v740, %v764
      %v773 = vadd.f32 %v741, %v764
      %v774 = vpack.c.bf16 %v768, %v766
      %v775 = vpack.c.bf16 %v769, %v767
      %v776 = vpack.c.bf16 %v772, %v770
      %v777 = vpack.c.bf16 %v773, %v771
      %v782 = vunpack.c.l.b16 %v774
      %v783 = vunpack.c.l.b16 %v775
      %v784 = vunpack.c.h.b16 %v774
      %v785 = vunpack.c.h.b16 %v775
      %v786 = vunpack.c.l.b16 %v776
      %v787 = vunpack.c.l.b16 %v777
      %v788 = vunpack.c.h.b16 %v776
      %v789 = vunpack.c.h.b16 %v777
      %v790 = vpack.c.b16 %v783, %v782
      %v791 = vpack.c.b16 %v785, %v784
      %v792 = vpack.c.b16 %v787, %v786
      %v793 = vpack.c.b16 %v789, %v788
      %798 = vst [vmem:[%s257] sm:$0xff] %v790
      %799 = vst [vmem:[%s257 + $0x8] sm:$0xff] %v791
      %800 = vst [vmem:[%s257 + $0x10] sm:$0xff] %v792
      %801 = vst [vmem:[%s257 + $0x18] sm:$0xff] %v793
      %s802 = smul.u32 4, %s19
      %p803 = scmp.lt.s32.totalorder %s18, 1
      %s804 = scalar_select %p803, %s18, 1
      %p805 = scmp.lt.s32.totalorder %s802, 7
      %s806 = scalar_select %p805, %s802, 7
      %s807 = smul.addr %s806, 2
      %s808 = smul.addr %s804, 16
      %s809 = sadd.s32 %s807, %s808
      %s810 = smul.addr %s809, 4
      %s811 = scalar_lea.vmem %s3, %s810
      // Predicated region
      $region33: #{_lambda_.10} parent=31 // pred_check
        %p812 = pneg %p126
      $region34: #{_lambda_.10} parent=31 // pred_check_branch
        %814 = sbr.rel (%p812) target = $region36
      $region35: #{_lambda_.10} parent=31 // pred_region
        %s815 = smul.u32 4, %s19
      $region36: #{_lambda_.10} parent=31 // pred_fallthru
        _
    $region32: #{_lambda_.10} parent=5 // pred_fallthru
      _
    %p816 = scmp.le.s32.totalorder 2, %s9
    // Predicated region
    $region37: #{_lambda_.10} parent=5 // pred_check
      %p817 = pneg %p816
    $region38: #{_lambda_.10} parent=5 // pred_check_branch
      %819 = sbr.rel (%p817) target = $region40
    $region39: #{_lambda_.10} parent=5 // pred_region
      %s820 = ssub.s32 %s9, 2
      // Predicated region
      $region41: #{_lambda_.10} parent=39 // pred_check
        %p821 = pneg %p132
      $region42: #{_lambda_.10} parent=39 // pred_check_branch
        %823 = sbr.rel (%p821) target = $region44
      $region43: #{_lambda_.10} parent=39 // pred_region
        %s824 = smul.u32 4, %s21
        %p825 = scmp.lt.s32.totalorder %s20, 1
        %s826 = scalar_select %p825, %s20, 1
        %p827 = scmp.lt.s32.totalorder %s824, 7
        %s828 = scalar_select %p827, %s824, 7
        %s829 = smul.addr %s828, 2
        %s830 = smul.addr %s826, 16
        %s831 = sadd.s32 %s829, %s830
        %s832 = smul.addr %s831, 4
        %s833 = scalar_lea.vmem %s3, %s832
      $region44: #{_lambda_.10} parent=39 // pred_fallthru
        _
    $region40: #{_lambda_.10} parent=5 // pred_fallthru
      _
  $region6: #{_lambda_.10} parent=0 // loop_footer
    %s13 = sadd.s32 1, %s9
  $region7: #{_lambda_.10} parent=0 // loop_footer_branch
    %8 = sbr.rel target = $region3
  $region8: #{_lambda_.10} parent=0 // loop_exit
    _

// kernel: _lambda_.11
$region0: #{_lambda_.11}
  #allocation0 [shape = 'u32[]', space=smem, size = 0x4, offset = 0x4, fixed_abs, tag = 'smem constant byte address 0x4 - core index']
  #allocation1 [shape = 'u32[144,128]{1,0:T(1,128)}', space=vmem, size = 0x12000, scoped, tag = 'internal scratch']
  %s0 = inlined_call_operand.vmem [shape: bf16[2,64,256], index: 0, kind: input, shape index: {}]
  %s1 = inlined_call_operand.vmem [shape: bf16[16,32], index: 1, kind: input, shape index: {}]
  %s2 = inlined_call_operand.vmem [shape: f32[16,1], index: 2, kind: input, shape index: {}]
  %s3 = inlined_call_operand.vmem [shape: f32[2,16,256], index: 3, kind: input, shape index: {}]
  %s4 = inlined_call_operand.vmem [shape: f32[2,16,256], index: 4, kind: output, shape index: {}]
  %s5 = sld [smem:[#allocation0]]
  $region49: #{_lambda_.11} parent=0
    _
  %s7 = ssub.s32 1, %s5
  %s8 = scalar_select 0, %s7, %s5
  loop: start=0, step=1, limit=4
  $region2: #{_lambda_.11} parent=0 // loop_pre_header
    _
  $region3: #{_lambda_.11} parent=0 // loop_header
    %s10 = sphi 0, %s14
    %p11 = scmp.ge.s32.totalorder %s10, 4
    %s17 = sphi 0, %s29
    %s18 = sphi 0, %s25
    %s19 = sphi 0, %s17
    %s20 = sphi 0, %s18
    %s21 = sphi 0, %s19
    %s22 = sphi 0, %s20
    %s34 = sphi 0, %s36
    %s37 = sphi 0, %s34
    %s38 = sphi 0, %s37
    %s54 = sphi 0, %s38
    %s58 = sphi 0, %s58
    %s60 = sphi 0, %s58
    %s61 = sphi 0, %s60
    %s75 = sphi 0, %s61
    %s79 = sphi 0, %s79
    %s81 = sphi 0, %s79
    %s82 = sphi 0, %s81
    %s96 = sphi 0, %s82
    %s104 = sphi 0, %s106
    %s107 = sphi 0, %s104
    %s108 = sphi 0, %s107
    %s124 = sphi 0, %s108
    %s132 = sphi 0, %s134
    %s135 = sphi 0, %s132
    %s136 = sphi 0, %s135
    %s152 = sphi 0, %s136
  $region4: #{_lambda_.11} parent=0 // loop_header_branch
    %13 = sbr.rel (%p11) target = $region8
  $region5: #{_lambda_.11} parent=0 // loop_body
    %s15 = ssub.s32 %s10, 1
    %s16 = ssub.s32 %s10, 2
    %s23 = sadd.s32 1, %s18
    %p24 = scmp.ge.s32.totalorder %s23, 1
    %s25 = scalar_select %p24, 0, %s23
    %s26 = sadd.s32 1, %s17
    %s27 = scalar_select %p24, %s26, %s17
    %p28 = scmp.ge.s32.totalorder %s27, 2
    %s29 = scalar_select %p28, 0, %s27
    %s30 = ssub.s32 %s17, %s29
    %s31 = ssub.s32 %s18, %s25
    %s32 = sor.u32 %s30, %s31
    %p33 = scmp.eq.s32.totalorder %s32, 0
    %s35 = sadd.s32 %s34, 1
    %s36 = scalar_select %p33, %s34, %s35
    %p39 = pneg %p33
    %p40 = scmp.eq.s32.totalorder %s10, 1
    %p41 = por %p39, %p40
    %p42 = scmp.ne.s32.totalorder %s34, %s37
    %p43 = scmp.eq.s32.totalorder %s10, 0
    %p44 = por %p42, %p43
    %p45 = scmp.ne.s32.totalorder %s34, %s37
    %p46 = scmp.eq.s32.totalorder %s15, 1
    %p47 = por %p45, %p46
    %p48 = scmp.ne.s32.totalorder %s37, %s38
    %p49 = scmp.eq.s32.totalorder %s15, 0
    %p50 = por %p48, %p49
    %p51 = scmp.ne.s32.totalorder %s37, %s38
    %p52 = scmp.eq.s32.totalorder %s16, 1
    %p53 = por %p51, %p52
    %p55 = scmp.ne.s32.totalorder %s38, %s54
    %p56 = scmp.eq.s32.totalorder %s16, 0
    %p57 = por %p55, %p56
    %s59 = sadd.s32 %s58, 1
    %p62 = scmp.eq.s32.totalorder %s10, 1
    %p63 = scmp.ne.s32.totalorder %s58, %s60
    %p64 = scmp.eq.s32.totalorder %s10, 0
    %p65 = por %p63, %p64
    %p66 = scmp.ne.s32.totalorder %s58, %s60
    %p67 = scmp.eq.s32.totalorder %s15, 1
    %p68 = por %p66, %p67
    %p69 = scmp.ne.s32.totalorder %s60, %s61
    %p70 = scmp.eq.s32.totalorder %s15, 0
    %p71 = por %p69, %p70
    %p72 = scmp.ne.s32.totalorder %s60, %s61
    %p73 = scmp.eq.s32.totalorder %s16, 1
    %p74 = por %p72, %p73
    %p76 = scmp.ne.s32.totalorder %s61, %s75
    %p77 = scmp.eq.s32.totalorder %s16, 0
    %p78 = por %p76, %p77
    %s80 = sadd.s32 %s79, 1
    %p83 = scmp.eq.s32.totalorder %s10, 1
    %p84 = scmp.ne.s32.totalorder %s79, %s81
    %p85 = scmp.eq.s32.totalorder %s10, 0
    %p86 = por %p84, %p85
    %p87 = scmp.ne.s32.totalorder %s79, %s81
    %p88 = scmp.eq.s32.totalorder %s15, 1
    %p89 = por %p87, %p88
    %p90 = scmp.ne.s32.totalorder %s81, %s82
    %p91 = scmp.eq.s32.totalorder %s15, 0
    %p92 = por %p90, %p91
    %p93 = scmp.ne.s32.totalorder %s81, %s82
    %p94 = scmp.eq.s32.totalorder %s16, 1
    %p95 = por %p93, %p94
    %p97 = scmp.ne.s32.totalorder %s82, %s96
    %p98 = scmp.eq.s32.totalorder %s16, 0
    %p99 = por %p97, %p98
    %s100 = ssub.s32 %s17, %s29
    %s101 = ssub.s32 %s18, %s25
    %s102 = sor.u32 %s100, %s101
    %p103 = scmp.eq.s32.totalorder %s102, 0
    %s105 = sadd.s32 %s104, 1
    %s106 = scalar_select %p103, %s104, %s105
    %p109 = pneg %p103
    %p110 = scmp.eq.s32.totalorder %s10, 1
    %p111 = por %p109, %p110
    %p112 = scmp.ne.s32.totalorder %s104, %s107
    %p113 = scmp.eq.s32.totalorder %s10, 0
    %p114 = por %p112, %p113
    %p115 = scmp.ne.s32.totalorder %s104, %s107
    %p116 = scmp.eq.s32.totalorder %s15, 1
    %p117 = por %p115, %p116
    %p118 = scmp.ne.s32.totalorder %s107, %s108
    %p119 = scmp.eq.s32.totalorder %s15, 0
    %p120 = por %p118, %p119
    %p121 = scmp.ne.s32.totalorder %s107, %s108
    %p122 = scmp.eq.s32.totalorder %s16, 1
    %p123 = por %p121, %p122
    %p125 = scmp.ne.s32.totalorder %s108, %s124
    %p126 = scmp.eq.s32.totalorder %s16, 0
    %p127 = por %p125, %p126
    %s128 = ssub.s32 %s17, %s29
    %s129 = ssub.s32 %s18, %s25
    %s130 = sor.u32 %s128, %s129
    %p131 = scmp.eq.s32.totalorder %s130, 0
    %s133 = sadd.s32 %s132, 1
    %s134 = scalar_select %p131, %s132, %s133
    %p137 = pneg %p131
    %p138 = scmp.eq.s32.totalorder %s10, 1
    %p139 = por %p137, %p138
    %p140 = scmp.ne.s32.totalorder %s132, %s135
    %p141 = scmp.eq.s32.totalorder %s10, 0
    %p142 = por %p140, %p141
    %p143 = scmp.ne.s32.totalorder %s132, %s135
    %p144 = scmp.eq.s32.totalorder %s15, 1
    %p145 = por %p143, %p144
    %p146 = scmp.ne.s32.totalorder %s135, %s136
    %p147 = scmp.eq.s32.totalorder %s15, 0
    %p148 = por %p146, %p147
    %p149 = scmp.ne.s32.totalorder %s135, %s136
    %p150 = scmp.eq.s32.totalorder %s16, 1
    %p151 = por %p149, %p150
    %p153 = scmp.ne.s32.totalorder %s136, %s152
    %p154 = scmp.eq.s32.totalorder %s16, 0
    %p155 = por %p153, %p154
    %p156 = scmp.le.s32.totalorder 1, %s10
    %p157 = scmp.lt.s32.totalorder %s10, 3
    %p158 = pnand %p156, %p157
    %p159 = pneg %p158
    // Predicated region
    $region9: #{_lambda_.11} parent=5 // pred_check
      _
    $region10: #{_lambda_.11} parent=5 // pred_check_branch
      %161 = sbr.rel (%p158) target = $region12
    $region11: #{_lambda_.11} parent=5 // pred_region
      %s162 = ssub.s32 %s10, 1
      // Predicated region
      $region13: #{_lambda_.11} parent=11 // pred_check
        %p163 = pneg %p71
      $region14: #{_lambda_.11} parent=11 // pred_check_branch
        %165 = sbr.rel (%p163) target = $region16
      $region15: #{_lambda_.11} parent=11 // pred_region
        _
      $region16: #{_lambda_.11} parent=11 // pred_fallthru
        _
      // Predicated region
      $region17: #{_lambda_.11} parent=11 // pred_check
        %p166 = pneg %p92
      $region18: #{_lambda_.11} parent=11 // pred_check_branch
        %168 = sbr.rel (%p166) target = $region20
      $region19: #{_lambda_.11} parent=11 // pred_region
        _
      $region20: #{_lambda_.11} parent=11 // pred_fallthru
        _
    $region12: #{_lambda_.11} parent=5 // pred_fallthru
      _
    %p169 = scmp.lt.s32.totalorder %s10, 2
    // Predicated region
    $region21: #{_lambda_.11} parent=5 // pred_check
      %p170 = pneg %p169
    $region22: #{_lambda_.11} parent=5 // pred_check_branch
      %172 = sbr.rel (%p170) target = $region24
    $region23: #{_lambda_.11} parent=5 // pred_region
      // Predicated region
      $region25: #{_lambda_.11} parent=23 // pred_check
        %p173 = pneg %p44
      $region26: #{_lambda_.11} parent=23 // pred_check_branch
        %175 = sbr.rel (%p173) target = $region28
      $region27: #{_lambda_.11} parent=23 // pred_region
        %s176 = smul.u32 2, %s18
        %p177 = scmp.lt.s32.totalorder %s17, 1
        %s178 = scalar_select %p177, %s17, 1
        %p179 = scmp.lt.s32.totalorder %s176, 1
        %s180 = scalar_select %p179, %s176, 1
        %s181 = smul.addr %s178, 16
        %s182 = sadd.s32 %s180, %s181
        %s183 = smul.addr %s182, 4
        %s184 = scalar_lea.vmem %s0, %s183
        %s185 = smul.u32 2, %s18
      $region28: #{_lambda_.11} parent=23 // pred_fallthru
        _
      // Predicated region
      $region29: #{_lambda_.11} parent=23 // pred_check
        %p186 = pneg %p114
      $region30: #{_lambda_.11} parent=23 // pred_check_branch
        %188 = sbr.rel (%p186) target = $region32
      $region31: #{_lambda_.11} parent=23 // pred_region
        %s189 = smul.u32 2, %s18
        %p190 = scmp.lt.s32.totalorder %s17, 1
        %s191 = scalar_select %p190, %s17, 1
        %p192 = scmp.lt.s32.totalorder %s189, 1
        %s193 = scalar_select %p192, %s189, 1
        %s194 = smul.addr %s191, 4
        %s195 = sadd.s32 %s193, %s194
        %s196 = smul.addr %s195, 8
        %s197 = scalar_lea.vmem %s3, %s196
        %s198 = smul.u32 2, %s18
      $region32: #{_lambda_.11} parent=23 // pred_fallthru
        _
    $region24: #{_lambda_.11} parent=5 // pred_fallthru
      _
    %p199 = scmp.le.s32.totalorder 1, %s10
    %p200 = scmp.lt.s32.totalorder %s10, 3
    %p201 = pnand %p199, %p200
    %p202 = pneg %p201
    // Predicated region
    $region33: #{_lambda_.11} parent=5 // pred_check
      _
    $region34: #{_lambda_.11} parent=5 // pred_check_branch
      %204 = sbr.rel (%p201) target = $region36
    $region35: #{_lambda_.11} parent=5 // pred_region
      %s205 = ssub.s32 %s10, 1
      %s206 = smul.u32 2, %s20
      %p207 = scmp.lt.s32.totalorder %s19, 1
      %s208 = scalar_select %p207, %s19, 1
      %p209 = scmp.lt.s32.totalorder %s206, 1
      %s210 = scalar_select %p209, %s206, 1
      %s211 = smul.addr %s208, 16
      %s212 = sadd.s32 %s210, %s211
      %s213 = smul.addr %s212, 4
      %s214 = scalar_lea.vmem %s0, %s213
      %p215 = pneg %p50
      %p216 = pneg %p47
      %p217 = pneg %p71
      %p218 = pneg %p68
      %p219 = pneg %p92
      %p220 = pneg %p89
      %s221 = smul.u32 2, %s20
      %p222 = scmp.lt.s32.totalorder %s19, 1
      %s223 = scalar_select %p222, %s19, 1
      %p224 = scmp.lt.s32.totalorder %s221, 1
      %s225 = scalar_select %p224, %s221, 1
      %s226 = smul.addr %s223, 4
      %s227 = sadd.s32 %s225, %s226
      %s228 = smul.addr %s227, 8
      %s229 = scalar_lea.vmem %s3, %s228
      %p230 = pneg %p120
      %p231 = pneg %p117
      %p232 = pneg %p148
      %p233 = pneg %p145
      %s234 = smul.u32 2, %s20
      %p235 = scmp.lt.s32.totalorder %s19, 1
      %s236 = scalar_select %p235, %s19, 1
      %p237 = scmp.lt.s32.totalorder %s234, 1
      %s238 = scalar_select %p237, %s234, 1
      %s239 = smul.addr %s236, 4
      %s240 = sadd.s32 %s238, %s239
      %s241 = smul.addr %s240, 8
      %s242 = scalar_lea.vmem %s4, %s241
      %s243 = smul.u32 2, %s20
      %p244 = scmp.lt.s32.totalorder %s19, 1
      %s245 = scalar_select %p244, %s19, 1
      %p246 = scmp.lt.s32.totalorder %s243, 1
      %s247 = scalar_select %p246, %s243, 1
      %s248 = smul.addr %s245, 16
      %s249 = sadd.s32 %s247, %s248
      %s250 = smul.addr %s249, 4
      %s251 = scalar_lea.vmem %s0, %s250
      %s252 = smul.u32 2, %s20
      %s253 = smul.u32 2, %s20
      %p254 = scmp.lt.s32.totalorder %s19, 1
      %s255 = scalar_select %p254, %s19, 1
      %p256 = scmp.lt.s32.totalorder %s253, 1
      %s257 = scalar_select %p256, %s253, 1
      %s258 = smul.addr %s255, 4
      %s259 = sadd.s32 %s257, %s258
      %s260 = smul.addr %s259, 8
      %s261 = scalar_lea.vmem %s3, %s260
      %s262 = smul.u32 2, %s20
      %s263 = smul.u32 2, %s20
      %p264 = scmp.lt.s32.totalorder %s19, 1
      %s265 = scalar_select %p264, %s19, 1
      %p266 = scmp.lt.s32.totalorder %s263, 1
      %s267 = scalar_select %p266, %s263, 1
      %s268 = smul.addr %s265, 4
      %s269 = sadd.s32 %s267, %s268
      %s270 = smul.addr %s269, 8
      %s271 = scalar_lea.vmem %s4, %s270
      %s272 = smul.u32 2, %s20
      %v274 = vld [vmem:[%s251] sm:$0xff]
      %v275 = vld [vmem:[%s251 + $0x8] sm:$0xff]
      %v276 = vld [vmem:[%s251 + $0x10] sm:$0xff]
      %v277 = vld [vmem:[%s251 + $0x18] sm:$0xff]
      %v278 = vld [vmem:[%s251 + $0x20] sm:$0xff]
      %v279 = vld [vmem:[%s251 + $0x28] sm:$0xff]
      %v280 = vld [vmem:[%s251 + $0x30] sm:$0xff]
      %v281 = vld [vmem:[%s251 + $0x38] sm:$0xff]
      %v282 = vunpack.c.l.bf16 %v274
      %v283 = vunpack.c.h.bf16 %v274
      %v284 = vunpack.c.l.bf16 %v275
      %v285 = vunpack.c.h.bf16 %v275
      %v286 = vunpack.c.l.bf16 %v276
      %v287 = vunpack.c.h.bf16 %v276
      %v288 = vunpack.c.l.bf16 %v277
      %v289 = vunpack.c.h.bf16 %v277
      %v290 = vunpack.c.l.bf16 %v278
      %v291 = vunpack.c.h.bf16 %v278
      %v292 = vunpack.c.l.bf16 %v279
      %v293 = vunpack.c.h.bf16 %v279
      %v294 = vunpack.c.l.bf16 %v280
      %v295 = vunpack.c.h.bf16 %v280
      %v296 = vunpack.c.l.bf16 %v281
      %v297 = vunpack.c.h.bf16 %v281
      %v298 = vmul.f32 %v282, 0.5
      %v299 = vmul.f32 %v283, 0.5
      %v300 = vmul.f32 %v284, 0.5
      %v301 = vmul.f32 %v285, 0.5
      %v302 = vmul.f32 %v286, 0.5
      %v303 = vmul.f32 %v287, 0.5
      %v304 = vmul.f32 %v288, 0.5
      %v305 = vmul.f32 %v289, 0.5
      %v306 = vmul.f32 %v282, 0.70710677
      %v307 = vmul.f32 %v283, 0.70710677
      %v308 = vmul.f32 %v284, 0.70710677
      %v309 = vmul.f32 %v285, 0.70710677
      %v310 = vmul.f32 %v286, 0.70710677
      %v311 = vmul.f32 %v287, 0.70710677
      %v312 = vmul.f32 %v288, 0.70710677
      %v313 = vmul.f32 %v289, 0.70710677
      %v314 = verf.f32.pop %v306
      %v315 = verf.f32.pop %v307
      %v316 = verf.f32.pop %v308
      %v317 = verf.f32.pop %v309
      %v318 = verf.f32.pop %v310
      %v319 = verf.f32.pop %v311
      %v320 = verf.f32.pop %v312
      %v321 = verf.f32.pop %v313
      %v322 = vadd.f32 %v314, 1.0
      %v323 = vadd.f32 %v315, 1.0
      %v324 = vadd.f32 %v316, 1.0
      %v325 = vadd.f32 %v317, 1.0
      %v326 = vadd.f32 %v318, 1.0
      %v327 = vadd.f32 %v319, 1.0
      %v328 = vadd.f32 %v320, 1.0
      %v329 = vadd.f32 %v321, 1.0
      %v330 = vmul.f32 %v298, %v322
      %v331 = vmul.f32 %v299, %v323
      %v332 = vmul.f32 %v300, %v324
      %v333 = vmul.f32 %v301, %v325
      %v334 = vmul.f32 %v302, %v326
      %v335 = vmul.f32 %v303, %v327
      %v336 = vmul.f32 %v304, %v328
      %v337 = vmul.f32 %v305, %v329
      %v338 = vmul.f32 %v330, %v290
      %v339 = vmul.f32 %v331, %v291
      %v340 = vmul.f32 %v332, %v292
      %v341 = vmul.f32 %v333, %v293
      %v342 = vmul.f32 %v334, %v294
      %v343 = vmul.f32 %v335, %v295
      %v344 = vmul.f32 %v336, %v296
      %v345 = vmul.f32 %v337, %v297
      %v346 = vpack.c.bf16 %v340, %v338
      %v347 = vpack.c.bf16 %v341, %v339
      %v348 = vpack.c.bf16 %v344, %v342
      %v349 = vpack.c.bf16 %v345, %v343
      %v350 = vld [vmem:[%s1] sm:$0xf]
      %v351 = vld [vmem:[%s1 + $0x4] sm:$0xf]
      %v352 = vld [vmem:[%s2] sm:$0xff]
      %v353 = vld [vmem:[%s2 + $0x8] sm:$0xff]
      %355 = vset.pattern.permute.xlu0 0
      %356 = vperm.xlu0 %355, %v352
      %v357 = vpop.permute.xlu0 %356
      %360 = vset.pattern.permute.xlu0 0
      %361 = vperm.xlu0 %360, %v353
      %v362 = vpop.permute.xlu0 %361
      %v366 = vunpack.c.l.b16 %v350
      %v367 = vunpack.c.l.b16 %v351
      %v368 = vpack.c.b16 %v367, %v366
      %vm369 = vcmask 261120
      %v371 = vsel %vm369, %v368, 0
      %373 = vmatprep.subr.bf16.mxu0 %v347
      %374 = vmatpush1.bf16.msra.mxu0 %v346
      %375 = vmatprep.subr.bf16.mxu0 %v349
      %376 = vmatpush1.bf16.msra.mxu0 %v348
      %377 = vmatprep.subr.bf16.mxu0 0
      %378 = vmatpush1.bf16.msra.mxu0 0
      %379 = vmatprep.subr.bf16.mxu0 0
      %380 = vmatpush1.bf16.msra.mxu0 0
      %381 = vmatprep.subr.bf16.mxu0 0
      %382 = vmatpush1.bf16.msra.mxu0 0
      %383 = vmatprep.subr.bf16.mxu0 0
      %384 = vmatpush1.bf16.msra.mxu0 0
      %385 = vmatprep.subr.bf16.mxu0 0
      %386 = vmatpush1.bf16.msra.mxu0 0
      %387 = vmatprep.subr.bf16.mxu0 0
      %388 = vmatpush1.bf16.msra.mxu0 0
      %389 = vmatprep.subr.bf16.mxu0 0
      %390 = vmatpush1.bf16.msra.mxu0 0
      %391 = vmatprep.subr.bf16.mxu0 0
      %392 = vmatpush1.bf16.msra.mxu0 0
      %393 = vmatprep.subr.bf16.mxu0 0
      %394 = vmatpush1.bf16.msra.mxu0 0
      %395 = vmatprep.subr.bf16.mxu0 0
      %396 = vmatpush1.bf16.msra.mxu0 0
      %397 = vmatprep.subr.bf16.mxu0 0
      %398 = vmatpush1.bf16.msra.mxu0 0
      %399 = vmatprep.subr.bf16.mxu0 0
      %400 = vmatpush1.bf16.msra.mxu0 0
      %401 = vmatprep.subr.bf16.mxu0 0
      %402 = vmatpush1.bf16.msra.mxu0 0
      %403 = vmatprep.subr.bf16.mxu0 0
      %404 = vmatpush1.bf16.msra.mxu0 0
      %405 = vmatprep.mubr.bf16.mxu0 0
      %406 = vmatmul.mubr.bf16.gmra.mrb[0].mxu0 %v371
      %v407 = vpop.f32.mrb[0].mxu0
      %v408 = vadd.f32 %v357, %v407
      %v409 = vpop.f32.mrb[0].mxu0
      %v410 = vadd.f32 %v357, %v409
      %v411 = vpop.f32.mrb[0].mxu0
      %v412 = vadd.f32 %v362, %v411
      %v413 = vpop.f32.mrb[0].mxu0
      %v414 = vadd.f32 %v362, %v413
      %415 = vdwg.mxu0
      %v416 = vld [vmem:[%s261] sm:$0xff]
      %v417 = vld [vmem:[%s261 + $0x8] sm:$0xff]
      %v418 = vld [vmem:[%s261 + $0x10] sm:$0xff]
      %v419 = vld [vmem:[%s261 + $0x18] sm:$0xff]
      %v420 = vadd.f32 %v408, %v416
      %v421 = vadd.f32 %v410, %v417
      %v422 = vadd.f32 %v412, %v418
      %v423 = vadd.f32 %v414, %v419
      %424 = vst [vmem:[%s271] sm:$0xff] %v420
      %425 = vst [vmem:[%s271 + $0x8] sm:$0xff] %v421
      %426 = vst [vmem:[%s271 + $0x10] sm:$0xff] %v422
      %427 = vst [vmem:[%s271 + $0x18] sm:$0xff] %v423
      %s428 = smul.u32 2, %s20
      %p429 = scmp.lt.s32.totalorder %s19, 1
      %s430 = scalar_select %p429, %s19, 1
      %p431 = scmp.lt.s32.totalorder %s428, 1
      %s432 = scalar_select %p431, %s428, 1
      %s433 = smul.addr %s430, 4
      %s434 = sadd.s32 %s432, %s433
      %s435 = smul.addr %s434, 8
      %s436 = scalar_lea.vmem %s4, %s435
      // Predicated region
      $region37: #{_lambda_.11} parent=35 // pred_check
        %p437 = pneg %p145
      $region38: #{_lambda_.11} parent=35 // pred_check_branch
        %439 = sbr.rel (%p437) target = $region40
      $region39: #{_lambda_.11} parent=35 // pred_region
        %s440 = smul.u32 2, %s20
      $region40: #{_lambda_.11} parent=35 // pred_fallthru
        _
    $region36: #{_lambda_.11} parent=5 // pred_fallthru
      _
    %p441 = scmp.le.s32.totalorder 2, %s10
    // Predicated region
    $region41: #{_lambda_.11} parent=5 // pred_check
      %p442 = pneg %p441
    $region42: #{_lambda_.11} parent=5 // pred_check_branch
      %444 = sbr.rel (%p442) target = $region44
    $region43: #{_lambda_.11} parent=5 // pred_region
      %s445 = ssub.s32 %s10, 2
      // Predicated region
      $region45: #{_lambda_.11} parent=43 // pred_check
        %p446 = pneg %p151
      $region46: #{_lambda_.11} parent=43 // pred_check_branch
        %448 = sbr.rel (%p446) target = $region48
      $region47: #{_lambda_.11} parent=43 // pred_region
        %s449 = smul.u32 2, %s22
        %p450 = scmp.lt.s32.totalorder %s21, 1
        %s451 = scalar_select %p450, %s21, 1
        %p452 = scmp.lt.s32.totalorder %s449, 1
        %s453 = scalar_select %p452, %s449, 1
        %s454 = smul.addr %s451, 4
        %s455 = sadd.s32 %s453, %s454
        %s456 = smul.addr %s455, 8
        %s457 = scalar_lea.vmem %s4, %s456
      $region48: #{_lambda_.11} parent=43 // pred_fallthru
        _
    $region44: #{_lambda_.11} parent=5 // pred_fallthru
      _
  $region6: #{_lambda_.11} parent=0 // loop_footer
    %s14 = sadd.s32 1, %s10
  $region7: #{_lambda_.11} parent=0 // loop_footer_branch
    %9 = sbr.rel target = $region3
  $region8: #{_lambda_.11} parent=0 // loop_exit
    _

</llo_original>
